<compile_context>
chip_gen: v7x
topology: tpu7x:2x2x1
jax: 0.10.0
libtpu: 0.0.40
codegen_flags: <defaults>
</compile_context>

<pallas_src>
import functools

import jax
import jax.numpy as jnp
import numpy as np
from jax.experimental import pallas as pl
from jax.experimental.pallas import tpu as pltpu

KH, KW = 5, 3          # conv5x3 kernel
PAD = 1                # padding=1 on H and W (H shrinks by 2, W unchanged)
LEAKY_SLOPE = 0.01
BN_EPS = 1e-5


@functools.lru_cache(maxsize=None)
def _vmem_limit():
    """Per-generation scoped-VMEM limit (~3/4 of physical, capped at 100 MiB)."""
    fallback = 32 * 1024 * 1024
    try:
        info = pltpu.get_tpu_info()
        cap = getattr(info, "vmem_capacity_bytes", None)
        if not cap:
            return fallback
        return int(min(cap * 3 // 4, 100 * 1024 * 1024))
    except Exception:
        return fallback


def _row_tile(n_rows, cap=512):
    """Largest multiple-of-8 divisor of n_rows (<= cap); else full extent."""
    top = min(cap, n_rows) // 8 * 8
    for t in range(top, 0, -8):
        if n_rows % t == 0:
            return t
    return n_rows


# ----------------------------- Pallas kernels -----------------------------

def _make_conv_kernel(h_in, oh, owc, fused):
    """Conv5x3 + bias (+ optional fused input BN-affine + leaky_relu prologue).

    Layout: rows = H, lanes = W*C (W-major, C-minor).  For each kh tap the whole
    (kw, ci) reduction is one matmul against a banded (W*Cin, W*Cout) weight
    built over the UNPADDED W.  H padding is realised as partial output-row
    ranges for kh=0 / kh=KH-1, so pad positions contribute exact zeros.
    Epilogue emits per-image [sum, sumsq] partials for BatchNorm.
    """
    def body(x, w_ref, b_ref, y_ref, st_ref, acc_ref):
        acc_ref[...] = jnp.broadcast_to(b_ref[...], (oh, owc))   # bias init
        for kh in range(KH):                                     # 5 row-slab dots
            i0 = max(0, kh - PAD)                                # first input row
            r0 = max(0, PAD - kh)                                # first output row
            cnt = min(oh - 1, h_in - 1 - kh + PAD) - r0 + 1
            acc_ref[r0:r0 + cnt, :] += jnp.dot(
                x[i0:i0 + cnt, :], w_ref[kh],
                preferred_element_type=jnp.float32)
        res = acc_ref[...]
        y_ref[0] = res.astype(y_ref.dtype)
        st_ref[0] = jnp.concatenate(
            [jnp.sum(res, axis=0, keepdims=True),
             jnp.sum(res * res, axis=0, keepdims=True)], axis=0)

    if fused:
        def kernel(x_ref, w_ref, b_ref, s_ref, t_ref, y_ref, st_ref, acc_ref):
            xa = x_ref[0].astype(jnp.float32) * s_ref[...] + t_ref[...]
            xa = jnp.where(xa > 0, xa, LEAKY_SLOPE * xa)
            body(xa.astype(jnp.bfloat16), w_ref, b_ref, y_ref, st_ref, acc_ref)
    else:
        def kernel(x_ref, w_ref, b_ref, y_ref, st_ref, acc_ref):
            body(x_ref[0], w_ref, b_ref, y_ref, st_ref, acc_ref)
    return kernel


def _bn_act_kernel(x_ref, s_ref, t_ref, o_ref):
    # x: (TR, W*C) bf16; s/t: (1, W*C) f32 per-lane scale/shift (C tiled over W)
    y = x_ref[...].astype(jnp.float32) * s_ref[...] + t_ref[...]
    o_ref[...] = jnp.where(y > 0, y, LEAKY_SLOPE * y)


def _make_bn_act_pool_kernel(wc):
    """BN-apply + leaky_relu + 2x2 maxpool, fused.

    Input block: (TR, 4*wc) -- 4 consecutive image rows packed per sublane row.
    Row pool    : 128-aligned lane-slice maxes (no relayout).
    Column pool : two exact 0/1 selection matmuls (gather on the idle MXU) that
                  also pack two pooled rows into one lane-dense output row.
    """
    def kernel(x_ref, s_ref, t_ref, se_ref, so_ref, o_ref):
        y = x_ref[...].astype(jnp.float32) * s_ref[...] + t_ref[...]
        y = jnp.where(y > 0, y, LEAKY_SLOPE * y)                 # (TR, 4*wc)
        r0 = jnp.maximum(y[:, :wc], y[:, wc:2 * wc])             # pooled row 2p
        r1 = jnp.maximum(y[:, 2 * wc:3 * wc], y[:, 3 * wc:])     # pooled row 2p+1
        rp = jnp.concatenate([r0, r1], axis=-1)                  # (TR, 2*wc)
        hi = jax.lax.Precision.HIGHEST                           # exact 0/1 gather
        pe = jnp.dot(rp, se_ref[...], precision=hi,
                     preferred_element_type=jnp.float32)         # even columns
        po = jnp.dot(rp, so_ref[...], precision=hi,
                     preferred_element_type=jnp.float32)         # odd columns
        o_ref[...] = jnp.maximum(pe, po)                         # (TR, 2*PW*C)
    return kernel


# ----------------------------- weight / selection prep -----------------------------

def _band_weights(weight, w):
    """Banded conv weights over the UNPADDED W.

    band[kh, p*Cin+ci, q*Cout+co] = weight[co, ci, kh, p-q+PAD] if 0 <= p-q+PAD < KW
    (out-of-range taps dropped -> implicit zero W-padding)."""
    cout, cin = weight.shape[0], weight.shape[1]
    wv = jnp.transpose(weight, (2, 3, 1, 0)).astype(jnp.float32)   # (KH,KW,Cin,Cout)
    p = jnp.arange(w)[:, None, None]
    q = jnp.arange(w)[None, None, :]
    k = jnp.arange(KW)[None, :, None]
    onehot = (p == q + k - PAD).astype(jnp.float32)                # (W, KW, W)
    band = jnp.einsum("pkq,hkio->hpiqo", onehot, wv)               # (KH,W,Cin,W,Cout)
    return band.reshape(KH, w * cin, w * cout).astype(jnp.bfloat16)


def _pool_select_mats(w, c):
    """0/1 gather matrices for the column pool + packing (2*WC -> 2*PW*C)."""
    wc, pw = w * c, w // 2
    pwc = pw * c
    src_even = (2 * jnp.arange(pw)[:, None] * c + jnp.arange(c)[None, :]).reshape(pwc)

    def sel(src):
        full = jnp.concatenate([src, src + wc])                    # (2*pwc,)
        return (jnp.arange(2 * wc)[:, None] == full[None, :]).astype(jnp.float32)

    return sel(src_even), sel(src_even + c)


# ----------------------------- wrappers -----------------------------

def conv5x3_pallas(x3, weight, bias, act_scale=None, act_shift=None):
    """x3: (N, H, W*Cin) bf16; weight: (Cout,Cin,KH,KW); bias: (Cout,).

    If act_scale/act_shift are given (each (1, W*Cin) f32), the kernel applies
    y = leaky_relu(x*scale + shift) to the input rows before convolving
    (fused BatchNorm-apply + activation of the *previous* layer).

    Returns:
      y:     (N, OH, W*Cout) bf16   conv output + bias (lane-dense)
      stats: (N, 2, W*Cout)  f32    per-image partial [sum, sumsq] for BatchNorm
    """
    n, h_in, wc_in = x3.shape
    cout, cin = weight.shape[0], weight.shape[1]
    w = wc_in // cin
    oh = h_in + 2 * PAD - KH + 1
    owc = w * cout
    fused = act_scale is not None

    wband = _band_weights(weight, w)                                # (KH, wc_in, owc)
    btile = jnp.tile(bias.astype(jnp.float32), w).reshape(1, owc)

    in_specs = [
        pl.BlockSpec((1, h_in, wc_in), lambda i: (i, 0, 0)),
        pl.BlockSpec((KH, wc_in, owc), lambda i: (0, 0, 0)),
        pl.BlockSpec((1, owc), lambda i: (0, 0)),
    ]
    args = [x3, wband, btile]
    if fused:
        in_specs += [pl.BlockSpec((1, wc_in), lambda i: (0, 0)),
                     pl.BlockSpec((1, wc_in), lambda i: (0, 0))]
        args += [act_scale, act_shift]

    y, stats = pl.pallas_call(
        _make_conv_kernel(h_in, oh, owc, fused),
        out_shape=(jax.ShapeDtypeStruct((n, oh, owc), jnp.bfloat16),
                   jax.ShapeDtypeStruct((n, 2, owc), jnp.float32)),
        grid=(n,),
        in_specs=in_specs,
        out_specs=(pl.BlockSpec((1, oh, owc), lambda i: (i, 0, 0)),
                   pl.BlockSpec((1, 2, owc), lambda i: (i, 0, 0))),
        scratch_shapes=[pltpu.VMEM((oh, owc), jnp.float32)],
        compiler_params=pltpu.CompilerParams(
            dimension_semantics=("parallel",),
            vmem_limit_bytes=_vmem_limit()),
    )(*args)
    return y, stats


def _bn_scale_shift(stats, gamma, beta, count, w):
    """Reduce per-image partial stats to a per-lane (C tiled over W) affine."""
    c = gamma.shape[0]
    s = stats.reshape(stats.shape[0], 2, w, c).sum(axis=(0, 2))     # (2, C) f32
    mean = s[0] / count
    # NOTE: E[x^2]-mean^2 in f32; fine for standardized activations (see review).
    var = jnp.maximum(s[1] / count - mean * mean, 0.0)              # biased variance
    scale = gamma * jax.lax.rsqrt(var + BN_EPS)
    shift = beta - mean * scale
    return (jnp.tile(scale, w).reshape(1, w * c),
            jnp.tile(shift, w).reshape(1, w * c))


def bn_lrelu_pallas(y, scale_row, shift_row):
    """BN-apply + leaky_relu over (N, OH, W*C), N and OH folded into one row axis."""
    n, oh, wc = y.shape
    rows = n * oh
    x = y.reshape(rows, wc)
    tr = _row_tile(rows, 512)
    return pl.pallas_call(
        _bn_act_kernel,
        out_shape=jax.ShapeDtypeStruct((rows, wc), jnp.float32),
        grid=(rows // tr,),
        in_specs=[pl.BlockSpec((tr, wc), lambda i: (i, 0)),
                  pl.BlockSpec((1, wc), lambda i: (0, 0)),
                  pl.BlockSpec((1, wc), lambda i: (0, 0))],
        out_specs=pl.BlockSpec((tr, wc), lambda i: (i, 0)),
        compiler_params=pltpu.CompilerParams(
            dimension_semantics=("parallel",),
            vmem_limit_bytes=_vmem_limit()),
    )(x, scale_row, shift_row)


def bn_lrelu_pool_pallas(y, scale_row, shift_row, c):
    """BN-apply + leaky_relu + 2x2 maxpool; output rows are lane-dense packed pairs."""
    n, oh, wc = y.shape
    w = wc // c
    pwc = (w // 2) * c
    r4 = (n * oh) // 4
    x = y.reshape(r4, 4 * wc)                    # 4 image rows per sublane row (bitcast)
    s4 = jnp.tile(scale_row, (1, 4))
    t4 = jnp.tile(shift_row, (1, 4))
    sel_e, sel_o = _pool_select_mats(w, c)
    tr = _row_tile(r4, 256)
    return pl.pallas_call(
        _make_bn_act_pool_kernel(wc),
        out_shape=jax.ShapeDtypeStruct((r4, 2 * pwc), jnp.float32),
        grid=(r4 // tr,),
        in_specs=[
            pl.BlockSpec((tr, 4 * wc), lambda i: (i, 0)),
            pl.BlockSpec((1, 4 * wc), lambda i: (0, 0)),
            pl.BlockSpec((1, 4 * wc), lambda i: (0, 0)),
            pl.BlockSpec((2 * wc, 2 * pwc), lambda i: (0, 0)),
            pl.BlockSpec((2 * wc, 2 * pwc), lambda i: (0, 0)),
        ],
        out_specs=pl.BlockSpec((tr, 2 * pwc), lambda i: (i, 0)),
        compiler_params=pltpu.CompilerParams(
            dimension_semantics=("parallel",),
            vmem_limit_bytes=_vmem_limit()),
    )(x, s4, t4, sel_e, sel_o)


def down_conv_forward(x_nchw, params, pooling=True):
    """DownConv.forward: accepts NCHW (PyTorch), returns NCHW."""
    n, cin, h, w = x_nchw.shape
    cout = params["w1"].shape[0]
    x = jnp.transpose(x_nchw, (0, 2, 3, 1)).reshape(n, h, w * cin).astype(jnp.bfloat16)

    # conv1 (+ bias, fused BN partial stats)
    y1, s1 = conv5x3_pallas(x, params["w1"], params["b1"])           # (N, H-2, W*C)
    oh1 = h - 2
    sc1, sh1 = _bn_scale_shift(s1, params["g1"], params["beta1"], n * oh1 * w, w)

    # conv2 with BN1-apply + leaky_relu fused into its prologue (no a1 round trip)
    y2, s2 = conv5x3_pallas(y1, params["w2"], params["b2"], sc1, sh1)
    oh2 = oh1 - 2
    sc2, sh2 = _bn_scale_shift(s2, params["g2"], params["beta2"], n * oh2 * w, w)

    if pooling:
        # TODO(synk): generalize the 4-row packing for OH2 % 4 != 0 / odd W.
        assert oh2 % 4 == 0 and w % 2 == 0
        out = bn_lrelu_pool_pallas(y2, sc2, sh2, cout)               # (N*OH2/4, W*C)
        out = out.reshape(n, oh2 // 2, w // 2, cout)
    else:
        out = bn_lrelu_pallas(y2, sc2, sh2).reshape(n, oh2, w, cout)
    return jnp.transpose(out, (0, 3, 1, 2))                          # NHWC -> NCHW
    # TODO(synk): BatchNorm running-stat updates (training-time side effect) are
    # not modeled; they do not affect the forward output in training mode.


# ----------------------------- pure-JAX reference -----------------------------

def _ref_forward(x_nchw, params, pooling=True):
    def conv(x, w, b):
        y = jax.lax.conv_general_dilated(
            x, w, window_strides=(1, 1), padding=((PAD, PAD), (PAD, PAD)),
            dimension_numbers=("NCHW", "OIHW", "NCHW"),
            precision=jax.lax.Precision.HIGHEST)
        return y + b[None, :, None, None]

    def bn_lrelu(x, g, beta):
        mean = jnp.mean(x, axis=(0, 2, 3), keepdims=True)
        var = jnp.mean((x - mean) ** 2, axis=(0, 2, 3), keepdims=True)
        y = (x - mean) * jax.lax.rsqrt(var + BN_EPS)
        y = y * g[None, :, None, None] + beta[None, :, None, None]
        return jnp.where(y > 0, y, LEAKY_SLOPE * y)

    x = bn_lrelu(conv(x_nchw, params["w1"], params["b1"]), params["g1"], params["beta1"])
    x = bn_lrelu(conv(x, params["w2"], params["b2"]), params["g2"], params["beta2"])
    if pooling:
        x = jax.lax.reduce_window(x, -jnp.inf, jax.lax.max,
                                  (1, 1, 2, 2), (1, 1, 2, 2), "VALID")
    return x


if __name__ == "__main__":
    key = jax.random.PRNGKey(0)
    in_channels, out_channels = 4, 8
    n, h, w = 2, 16, 16

    ks = jax.random.split(key, 9)
    x = jax.random.normal(ks[0], (n, in_channels, h, w), jnp.float32)
    fan1 = in_channels * KH * KW
    fan2 = out_channels * KH * KW
    params = {
        "w1": jax.random.normal(ks[1], (out_channels, in_channels, KH, KW), jnp.float32) / np.sqrt(fan1),
        "b1": 0.1 * jax.random.normal(ks[2], (out_channels,), jnp.float32),
        "w2": jax.random.normal(ks[3], (out_channels, out_channels, KH, KW), jnp.float32) / np.sqrt(fan2),
        "b2": 0.1 * jax.random.normal(ks[4], (out_channels,), jnp.float32),
        "g1": 1.0 + 0.1 * jax.random.normal(ks[5], (out_channels,), jnp.float32),
        "beta1": 0.1 * jax.random.normal(ks[6], (out_channels,), jnp.float32),
        "g2": 1.0 + 0.1 * jax.random.normal(ks[7], (out_channels,), jnp.float32),
        "beta2": 0.1 * jax.random.normal(ks[8], (out_channels,), jnp.float32),
    }

    out = jax.block_until_ready(jax.jit(down_conv_forward)(x, params))

    # shape check: conv shrinks H by 2 each time (W preserved), then 2x2 pool
    assert out.shape == (n, out_channels, (h - 4) // 2, w // 2), out.shape

    # Activations/weights are stored bf16 and the MXU runs single-pass bf16
    # (explicit choice per the perf review); compare against the f32/HIGHEST
    # reference with a bf16-appropriate tolerance.
    ref = _ref_forward(x, params)
    np.testing.assert_allclose(np.asarray(out), np.asarray(ref), rtol=3e-2, atol=3e-2)

    print("KERNEL_OK")
</pallas_src>

<mosaic_0001>
module attributes {stable_mosaic.version = 11 : i64} {
  func.func @kernel(%arg0: i32, %arg1: memref<1x16x64xbf16, #tpu.memory_space<vmem>>, %arg2: memref<5x64x128xbf16, #tpu.memory_space<vmem>>, %arg3: memref<1x128xf32, #tpu.memory_space<vmem>>, %arg4: memref<1x14x128xbf16, #tpu.memory_space<vmem>>, %arg5: memref<1x2x128xf32, #tpu.memory_space<vmem>>, %arg6: memref<14x128xf32, #tpu.memory_space<vmem>>) attributes {dimension_semantics = [#tpu.dimension_semantics<parallel>], iteration_bounds = array<i64: 2>, scalar_prefetch = 0 : i64, scratch_operands = 1 : i64, tpu.core_type = #tpu.core_type<tc>, window_params = [{transform_indices = @transform_0, window_bounds = array<i64: 1, 16, 64>}, {pipeline_mode = #tpu.pipeline_mode<synchronous>, transform_indices = @transform_1, window_bounds = array<i64: 5, 64, 128>}, {pipeline_mode = #tpu.pipeline_mode<synchronous>, transform_indices = @transform_2, window_bounds = array<i64: 1, 128>}, {transform_indices = @transform_3, window_bounds = array<i64: 1, 14, 128>}, {transform_indices = @transform_4, window_bounds = array<i64: 1, 2, 128>}]} {
    %c0 = arith.constant 0 : index
    %c0_0 = arith.constant 0 : index
    %c0_1 = arith.constant 0 : index
    %0 = vector.load %arg1[%c0, %c0_0, %c0_1] : memref<1x16x64xbf16, #tpu.memory_space<vmem>>, vector<1x16x64xbf16>
    %1 = vector.shape_cast %0 : vector<1x16x64xbf16> to vector<16x64xbf16>
    %c0_2 = arith.constant 0 : index
    %c0_3 = arith.constant 0 : index
    %2 = vector.load %arg3[%c0_2, %c0_3] : memref<1x128xf32, #tpu.memory_space<vmem>>, vector<1x128xf32>
    %3 = vector.shape_cast %2 : vector<1x128xf32> to vector<1x128xf32>
    %4 = vector.broadcast %3 : vector<1x128xf32> to vector<14x128xf32>
    %c0_4 = arith.constant 0 : index
    %c0_5 = arith.constant 0 : index
    %5 = vector.load %arg6[%c0_4, %c0_5] : memref<14x128xf32, #tpu.memory_space<vmem>>, vector<14x128xf32>
    tpu.vector_store %arg6[%c0_4, %c0_5], %4 {strides = array<i32>} : memref<14x128xf32, #tpu.memory_space<vmem>>, vector<14x128xf32>,
    %c1 = arith.constant 1 : index
    %c0_6 = arith.constant 0 : index
    %6 = vector.load %arg6[%c1, %c0_6] : memref<14x128xf32, #tpu.memory_space<vmem>>, vector<13x128xf32>
    %7 = vector.extract_strided_slice %1 {offsets = [0, 0], sizes = [13, 64], strides = [1, 1]} : vector<16x64xbf16> to vector<13x64xbf16>
    %c0_7 = arith.constant 0 : index
    %c0_8 = arith.constant 0 : index
    %c0_9 = arith.constant 0 : index
    %8 = vector.load %arg2[%c0_7, %c0_8, %c0_9] : memref<5x64x128xbf16, #tpu.memory_space<vmem>>, vector<1x64x128xbf16>
    %9 = vector.shape_cast %8 : vector<1x64x128xbf16> to vector<64x128xbf16>
    %cst = arith.constant dense<0.000000e+00> : vector<13x128xf32>
    %10 = tpu.matmul %7, %9, %cst {dimension_numbers = #tpu.dot_dimension_numbers<[1], [0], [0], [1], [0, 0, 1, 1], [], []>} : vector<13x64xbf16>, vector<64x128xbf16>, vector<13x128xf32> -> vector<13x128xf32>
    %11 = arith.addf %6, %10 : vector<13x128xf32>
    %c1_10 = arith.constant 1 : index
    %c0_11 = arith.constant 0 : index
    %12 = vector.load %arg6[%c1_10, %c0_11] : memref<14x128xf32, #tpu.memory_space<vmem>>, vector<13x128xf32>
    tpu.vector_store %arg6[%c1_10, %c0_11], %11 {strides = array<i32>} : memref<14x128xf32, #tpu.memory_space<vmem>>, vector<13x128xf32>,
    %c0_12 = arith.constant 0 : index
    %c0_13 = arith.constant 0 : index
    %13 = vector.load %arg6[%c0_12, %c0_13] : memref<14x128xf32, #tpu.memory_space<vmem>>, vector<14x128xf32>
    %14 = vector.extract_strided_slice %1 {offsets = [0, 0], sizes = [14, 64], strides = [1, 1]} : vector<16x64xbf16> to vector<14x64xbf16>
    %c1_14 = arith.constant 1 : index
    %c0_15 = arith.constant 0 : index
    %c0_16 = arith.constant 0 : index
    %15 = vector.load %arg2[%c1_14, %c0_15, %c0_16] : memref<5x64x128xbf16, #tpu.memory_space<vmem>>, vector<1x64x128xbf16>
    %16 = vector.shape_cast %15 : vector<1x64x128xbf16> to vector<64x128xbf16>
    %cst_17 = arith.constant dense<0.000000e+00> : vector<14x128xf32>
    %17 = tpu.matmul %14, %16, %cst_17 {dimension_numbers = #tpu.dot_dimension_numbers<[1], [0], [0], [1], [0, 0, 1, 1], [], []>} : vector<14x64xbf16>, vector<64x128xbf16>, vector<14x128xf32> -> vector<14x128xf32>
    %18 = arith.addf %13, %17 : vector<14x128xf32>
    %c0_18 = arith.constant 0 : index
    %c0_19 = arith.constant 0 : index
    %19 = vector.load %arg6[%c0_18, %c0_19] : memref<14x128xf32, #tpu.memory_space<vmem>>, vector<14x128xf32>
    tpu.vector_store %arg6[%c0_18, %c0_19], %18 {strides = array<i32>} : memref<14x128xf32, #tpu.memory_space<vmem>>, vector<14x128xf32>,
    %c0_20 = arith.constant 0 : index
    %c0_21 = arith.constant 0 : index
    %20 = vector.load %arg6[%c0_20, %c0_21] : memref<14x128xf32, #tpu.memory_space<vmem>>, vector<14x128xf32>
    %21 = vector.extract_strided_slice %1 {offsets = [1, 0], sizes = [14, 64], strides = [1, 1]} : vector<16x64xbf16> to vector<14x64xbf16>
    %c2 = arith.constant 2 : index
    %c0_22 = arith.constant 0 : index
    %c0_23 = arith.constant 0 : index
    %22 = vector.load %arg2[%c2, %c0_22, %c0_23] : memref<5x64x128xbf16, #tpu.memory_space<vmem>>, vector<1x64x128xbf16>
    %23 = vector.shape_cast %22 : vector<1x64x128xbf16> to vector<64x128xbf16>
    %cst_24 = arith.constant dense<0.000000e+00> : vector<14x128xf32>
    %24 = tpu.matmul %21, %23, %cst_24 {dimension_numbers = #tpu.dot_dimension_numbers<[1], [0], [0], [1], [0, 0, 1, 1], [], []>} : vector<14x64xbf16>, vector<64x128xbf16>, vector<14x128xf32> -> vector<14x128xf32>
    %25 = arith.addf %20, %24 : vector<14x128xf32>
    %c0_25 = arith.constant 0 : index
    %c0_26 = arith.constant 0 : index
    %26 = vector.load %arg6[%c0_25, %c0_26] : memref<14x128xf32, #tpu.memory_space<vmem>>, vector<14x128xf32>
    tpu.vector_store %arg6[%c0_25, %c0_26], %25 {strides = array<i32>} : memref<14x128xf32, #tpu.memory_space<vmem>>, vector<14x128xf32>,
    %c0_27 = arith.constant 0 : index
    %c0_28 = arith.constant 0 : index
    %27 = vector.load %arg6[%c0_27, %c0_28] : memref<14x128xf32, #tpu.memory_space<vmem>>, vector<14x128xf32>
    %28 = vector.extract_strided_slice %1 {offsets = [2, 0], sizes = [14, 64], strides = [1, 1]} : vector<16x64xbf16> to vector<14x64xbf16>
    %c3 = arith.constant 3 : index
    %c0_29 = arith.constant 0 : index
    %c0_30 = arith.constant 0 : index
    %29 = vector.load %arg2[%c3, %c0_29, %c0_30] : memref<5x64x128xbf16, #tpu.memory_space<vmem>>, vector<1x64x128xbf16>
    %30 = vector.shape_cast %29 : vector<1x64x128xbf16> to vector<64x128xbf16>
    %cst_31 = arith.constant dense<0.000000e+00> : vector<14x128xf32>
    %31 = tpu.matmul %28, %30, %cst_31 {dimension_numbers = #tpu.dot_dimension_numbers<[1], [0], [0], [1], [0, 0, 1, 1], [], []>} : vector<14x64xbf16>, vector<64x128xbf16>, vector<14x128xf32> -> vector<14x128xf32>
    %32 = arith.addf %27, %31 : vector<14x128xf32>
    %c0_32 = arith.constant 0 : index
    %c0_33 = arith.constant 0 : index
    %33 = vector.load %arg6[%c0_32, %c0_33] : memref<14x128xf32, #tpu.memory_space<vmem>>, vector<14x128xf32>
    tpu.vector_store %arg6[%c0_32, %c0_33], %32 {strides = array<i32>} : memref<14x128xf32, #tpu.memory_space<vmem>>, vector<14x128xf32>,
    %c0_34 = arith.constant 0 : index
    %c0_35 = arith.constant 0 : index
    %34 = vector.load %arg6[%c0_34, %c0_35] : memref<14x128xf32, #tpu.memory_space<vmem>>, vector<13x128xf32>
    %35 = vector.extract_strided_slice %1 {offsets = [3, 0], sizes = [13, 64], strides = [1, 1]} : vector<16x64xbf16> to vector<13x64xbf16>
    %c4 = arith.constant 4 : index
    %c0_36 = arith.constant 0 : index
    %c0_37 = arith.constant 0 : index
    %36 = vector.load %arg2[%c4, %c0_36, %c0_37] : memref<5x64x128xbf16, #tpu.memory_space<vmem>>, vector<1x64x128xbf16>
    %37 = vector.shape_cast %36 : vector<1x64x128xbf16> to vector<64x128xbf16>
    %cst_38 = arith.constant dense<0.000000e+00> : vector<13x128xf32>
    %38 = tpu.matmul %35, %37, %cst_38 {dimension_numbers = #tpu.dot_dimension_numbers<[1], [0], [0], [1], [0, 0, 1, 1], [], []>} : vector<13x64xbf16>, vector<64x128xbf16>, vector<13x128xf32> -> vector<13x128xf32>
    %39 = arith.addf %34, %38 : vector<13x128xf32>
    %c0_39 = arith.constant 0 : index
    %c0_40 = arith.constant 0 : index
    %40 = vector.load %arg6[%c0_39, %c0_40] : memref<14x128xf32, #tpu.memory_space<vmem>>, vector<13x128xf32>
    tpu.vector_store %arg6[%c0_39, %c0_40], %39 {strides = array<i32>} : memref<14x128xf32, #tpu.memory_space<vmem>>, vector<13x128xf32>,
    %c0_41 = arith.constant 0 : index
    %c0_42 = arith.constant 0 : index
    %41 = vector.load %arg6[%c0_41, %c0_42] : memref<14x128xf32, #tpu.memory_space<vmem>>, vector<14x128xf32>
    %42 = arith.truncf %41 : vector<14x128xf32> to vector<14x128xbf16>
    %c0_43 = arith.constant 0 : index
    %c0_44 = arith.constant 0 : index
    %c0_45 = arith.constant 0 : index
    %43 = vector.load %arg4[%c0_43, %c0_44, %c0_45] : memref<1x14x128xbf16, #tpu.memory_space<vmem>>, vector<1x14x128xbf16>
    %44 = vector.shape_cast %43 : vector<1x14x128xbf16> to vector<14x128xbf16>
    %45 = vector.shape_cast %42 : vector<14x128xbf16> to vector<1x14x128xbf16>
    tpu.vector_store %arg4[%c0_43, %c0_44, %c0_45], %45 {strides = array<i32>} : memref<1x14x128xbf16, #tpu.memory_space<vmem>>, vector<1x14x128xbf16>,
    %cst_46 = arith.constant dense<0.000000e+00> : vector<128xf32>
    %46 = vector.multi_reduction <add>, %41, %cst_46 [0] : vector<14x128xf32> to vector<128xf32>
    %47 = vector.shape_cast %46 : vector<128xf32> to vector<1x128xf32>
    %48 = arith.mulf %41, %41 : vector<14x128xf32>
    %cst_47 = arith.constant dense<0.000000e+00> : vector<128xf32>
    %49 = vector.multi_reduction <add>, %48, %cst_47 [0] : vector<14x128xf32> to vector<128xf32>
    %50 = vector.shape_cast %49 : vector<128xf32> to vector<1x128xf32>
    %51 = tpu.concatenate %47, %50 in 0 : vector<1x128xf32>, vector<1x128xf32> -> vector<2x128xf32>
    %c0_48 = arith.constant 0 : index
    %c0_49 = arith.constant 0 : index
    %c0_50 = arith.constant 0 : index
    %52 = vector.load %arg5[%c0_48, %c0_49, %c0_50] : memref<1x2x128xf32, #tpu.memory_space<vmem>>, vector<1x2x128xf32>
    %53 = vector.shape_cast %52 : vector<1x2x128xf32> to vector<2x128xf32>
    %54 = vector.shape_cast %51 : vector<2x128xf32> to vector<1x2x128xf32>
    tpu.vector_store %arg5[%c0_48, %c0_49, %c0_50], %54 {strides = array<i32>} : memref<1x2x128xf32, #tpu.memory_space<vmem>>, vector<1x2x128xf32>,
    return
  }
  func.func @transform_0(%arg0: i32) -> (i32, i32, i32) {
    %c0_i32 = arith.constant 0 : i32
    %c0_i32_0 = arith.constant 0 : i32
    %c0_i32_1 = arith.constant 0 : i32
    return %arg0, %c0_i32, %c0_i32_0 : i32, i32, i32
  }
  func.func @transform_1(%arg0: i32) -> (i32, i32, i32) {
    %c0_i32 = arith.constant 0 : i32
    %c0_i32_0 = arith.constant 0 : i32
    %c0_i32_1 = arith.constant 0 : i32
    %c0_i32_2 = arith.constant 0 : i32
    return %c0_i32, %c0_i32_0, %c0_i32_1 : i32, i32, i32
  }
  func.func @transform_2(%arg0: i32) -> (i32, i32) {
    %c0_i32 = arith.constant 0 : i32
    %c0_i32_0 = arith.constant 0 : i32
    %c0_i32_1 = arith.constant 0 : i32
    return %c0_i32, %c0_i32_0 : i32, i32
  }
  func.func @transform_3(%arg0: i32) -> (i32, i32, i32) {
    %c0_i32 = arith.constant 0 : i32
    %c0_i32_0 = arith.constant 0 : i32
    %c0_i32_1 = arith.constant 0 : i32
    return %arg0, %c0_i32, %c0_i32_0 : i32, i32, i32
  }
  func.func @transform_4(%arg0: i32) -> (i32, i32, i32) {
    %c0_i32 = arith.constant 0 : i32
    %c0_i32_0 = arith.constant 0 : i32
    %c0_i32_1 = arith.constant 0 : i32
    return %arg0, %c0_i32, %c0_i32_0 : i32, i32, i32
  }
}

module attributes {stable_mosaic.version = 11 : i64} {
  func.func @kernel(%arg0: i32, %arg1: memref<1x14x128xbf16, #tpu.memory_space<vmem>>, %arg2: memref<5x128x128xbf16, #tpu.memory_space<vmem>>, %arg3: memref<1x128xf32, #tpu.memory_space<vmem>>, %arg4: memref<1x128xf32, #tpu.memory_space<vmem>>, %arg5: memref<1x128xf32, #tpu.memory_space<vmem>>, %arg6: memref<1x12x128xbf16, #tpu.memory_space<vmem>>, %arg7: memref<1x2x128xf32, #tpu.memory_space<vmem>>, %arg8: memref<12x128xf32, #tpu.memory_space<vmem>>) attributes {dimension_semantics = [#tpu.dimension_semantics<parallel>], iteration_bounds = array<i64: 2>, scalar_prefetch = 0 : i64, scratch_operands = 1 : i64, tpu.core_type = #tpu.core_type<tc>, window_params = [{transform_indices = @transform_0, window_bounds = array<i64: 1, 14, 128>}, {pipeline_mode = #tpu.pipeline_mode<synchronous>, transform_indices = @transform_1, window_bounds = array<i64: 5, 128, 128>}, {pipeline_mode = #tpu.pipeline_mode<synchronous>, transform_indices = @transform_2, window_bounds = array<i64: 1, 128>}, {pipeline_mode = #tpu.pipeline_mode<synchronous>, transform_indices = @transform_3, window_bounds = array<i64: 1, 128>}, {pipeline_mode = #tpu.pipeline_mode<synchronous>, transform_indices = @transform_4, window_bounds = array<i64: 1, 128>}, {transform_indices = @transform_5, window_bounds = array<i64: 1, 12, 128>}, {transform_indices = @transform_6, window_bounds = array<i64: 1, 2, 128>}]} {
    %c0 = arith.constant 0 : index
    %c0_0 = arith.constant 0 : index
    %c0_1 = arith.constant 0 : index
    %0 = vector.load %arg1[%c0, %c0_0, %c0_1] : memref<1x14x128xbf16, #tpu.memory_space<vmem>>, vector<1x14x128xbf16>
    %1 = vector.shape_cast %0 : vector<1x14x128xbf16> to vector<14x128xbf16>
    %2 = arith.extf %1 : vector<14x128xbf16> to vector<14x128xf32>
    %c0_2 = arith.constant 0 : index
    %c0_3 = arith.constant 0 : index
    %3 = vector.load %arg4[%c0_2, %c0_3] : memref<1x128xf32, #tpu.memory_space<vmem>>, vector<1x128xf32>
    %4 = vector.broadcast %3 : vector<1x128xf32> to vector<14x128xf32>
    %5 = arith.mulf %2, %4 : vector<14x128xf32>
    %c0_4 = arith.constant 0 : index
    %c0_5 = arith.constant 0 : index
    %6 = vector.load %arg5[%c0_4, %c0_5] : memref<1x128xf32, #tpu.memory_space<vmem>>, vector<1x128xf32>
    %7 = vector.broadcast %6 : vector<1x128xf32> to vector<14x128xf32>
    %8 = arith.addf %5, %7 : vector<14x128xf32>
    %cst = arith.constant 0.000000e+00 : f32
    %9 = vector.broadcast %cst : f32 to vector<14x128xf32>
    %10 = arith.cmpf ogt, %8, %9 : vector<14x128xf32>
    %cst_6 = arith.constant 0.00999999977 : f32
    %11 = vector.broadcast %cst_6 : f32 to vector<14x128xf32>
    %12 = arith.mulf %11, %8 : vector<14x128xf32>
    %13 = arith.select %10, %8, %12 : vector<14x128xi1>, vector<14x128xf32>
    %14 = arith.truncf %13 : vector<14x128xf32> to vector<14x128xbf16>
    %c0_7 = arith.constant 0 : index
    %c0_8 = arith.constant 0 : index
    %15 = vector.load %arg3[%c0_7, %c0_8] : memref<1x128xf32, #tpu.memory_space<vmem>>, vector<1x128xf32>
    %16 = vector.shape_cast %15 : vector<1x128xf32> to vector<1x128xf32>
    %17 = vector.broadcast %16 : vector<1x128xf32> to vector<12x128xf32>
    %c0_9 = arith.constant 0 : index
    %c0_10 = arith.constant 0 : index
    %18 = vector.load %arg8[%c0_9, %c0_10] : memref<12x128xf32, #tpu.memory_space<vmem>>, vector<12x128xf32>
    tpu.vector_store %arg8[%c0_9, %c0_10], %17 {strides = array<i32>} : memref<12x128xf32, #tpu.memory_space<vmem>>, vector<12x128xf32>,
    %c1 = arith.constant 1 : index
    %c0_11 = arith.constant 0 : index
    %19 = vector.load %arg8[%c1, %c0_11] : memref<12x128xf32, #tpu.memory_space<vmem>>, vector<11x128xf32>
    %20 = vector.extract_strided_slice %14 {offsets = [0, 0], sizes = [11, 128], strides = [1, 1]} : vector<14x128xbf16> to vector<11x128xbf16>
    %c0_12 = arith.constant 0 : index
    %c0_13 = arith.constant 0 : index
    %c0_14 = arith.constant 0 : index
    %21 = vector.load %arg2[%c0_12, %c0_13, %c0_14] : memref<5x128x128xbf16, #tpu.memory_space<vmem>>, vector<1x128x128xbf16>
    %22 = vector.shape_cast %21 : vector<1x128x128xbf16> to vector<128x128xbf16>
    %cst_15 = arith.constant dense<0.000000e+00> : vector<11x128xf32>
    %23 = tpu.matmul %20, %22, %cst_15 {dimension_numbers = #tpu.dot_dimension_numbers<[1], [0], [0], [1], [0, 0, 1, 1], [], []>} : vector<11x128xbf16>, vector<128x128xbf16>, vector<11x128xf32> -> vector<11x128xf32>
    %24 = arith.addf %19, %23 : vector<11x128xf32>
    %c1_16 = arith.constant 1 : index
    %c0_17 = arith.constant 0 : index
    %25 = vector.load %arg8[%c1_16, %c0_17] : memref<12x128xf32, #tpu.memory_space<vmem>>, vector<11x128xf32>
    tpu.vector_store %arg8[%c1_16, %c0_17], %24 {strides = array<i32>} : memref<12x128xf32, #tpu.memory_space<vmem>>, vector<11x128xf32>,
    %c0_18 = arith.constant 0 : index
    %c0_19 = arith.constant 0 : index
    %26 = vector.load %arg8[%c0_18, %c0_19] : memref<12x128xf32, #tpu.memory_space<vmem>>, vector<12x128xf32>
    %27 = vector.extract_strided_slice %14 {offsets = [0, 0], sizes = [12, 128], strides = [1, 1]} : vector<14x128xbf16> to vector<12x128xbf16>
    %c1_20 = arith.constant 1 : index
    %c0_21 = arith.constant 0 : index
    %c0_22 = arith.constant 0 : index
    %28 = vector.load %arg2[%c1_20, %c0_21, %c0_22] : memref<5x128x128xbf16, #tpu.memory_space<vmem>>, vector<1x128x128xbf16>
    %29 = vector.shape_cast %28 : vector<1x128x128xbf16> to vector<128x128xbf16>
    %cst_23 = arith.constant dense<0.000000e+00> : vector<12x128xf32>
    %30 = tpu.matmul %27, %29, %cst_23 {dimension_numbers = #tpu.dot_dimension_numbers<[1], [0], [0], [1], [0, 0, 1, 1], [], []>} : vector<12x128xbf16>, vector<128x128xbf16>, vector<12x128xf32> -> vector<12x128xf32>
    %31 = arith.addf %26, %30 : vector<12x128xf32>
    %c0_24 = arith.constant 0 : index
    %c0_25 = arith.constant 0 : index
    %32 = vector.load %arg8[%c0_24, %c0_25] : memref<12x128xf32, #tpu.memory_space<vmem>>, vector<12x128xf32>
    tpu.vector_store %arg8[%c0_24, %c0_25], %31 {strides = array<i32>} : memref<12x128xf32, #tpu.memory_space<vmem>>, vector<12x128xf32>,
    %c0_26 = arith.constant 0 : index
    %c0_27 = arith.constant 0 : index
    %33 = vector.load %arg8[%c0_26, %c0_27] : memref<12x128xf32, #tpu.memory_space<vmem>>, vector<12x128xf32>
    %34 = vector.extract_strided_slice %14 {offsets = [1, 0], sizes = [12, 128], strides = [1, 1]} : vector<14x128xbf16> to vector<12x128xbf16>
    %c2 = arith.constant 2 : index
    %c0_28 = arith.constant 0 : index
    %c0_29 = arith.constant 0 : index
    %35 = vector.load %arg2[%c2, %c0_28, %c0_29] : memref<5x128x128xbf16, #tpu.memory_space<vmem>>, vector<1x128x128xbf16>
    %36 = vector.shape_cast %35 : vector<1x128x128xbf16> to vector<128x128xbf16>
    %cst_30 = arith.constant dense<0.000000e+00> : vector<12x128xf32>
    %37 = tpu.matmul %34, %36, %cst_30 {dimension_numbers = #tpu.dot_dimension_numbers<[1], [0], [0], [1], [0, 0, 1, 1], [], []>} : vector<12x128xbf16>, vector<128x128xbf16>, vector<12x128xf32> -> vector<12x128xf32>
    %38 = arith.addf %33, %37 : vector<12x128xf32>
    %c0_31 = arith.constant 0 : index
    %c0_32 = arith.constant 0 : index
    %39 = vector.load %arg8[%c0_31, %c0_32] : memref<12x128xf32, #tpu.memory_space<vmem>>, vector<12x128xf32>
    tpu.vector_store %arg8[%c0_31, %c0_32], %38 {strides = array<i32>} : memref<12x128xf32, #tpu.memory_space<vmem>>, vector<12x128xf32>,
    %c0_33 = arith.constant 0 : index
    %c0_34 = arith.constant 0 : index
    %40 = vector.load %arg8[%c0_33, %c0_34] : memref<12x128xf32, #tpu.memory_space<vmem>>, vector<12x128xf32>
    %41 = vector.extract_strided_slice %14 {offsets = [2, 0], sizes = [12, 128], strides = [1, 1]} : vector<14x128xbf16> to vector<12x128xbf16>
    %c3 = arith.constant 3 : index
    %c0_35 = arith.constant 0 : index
    %c0_36 = arith.constant 0 : index
    %42 = vector.load %arg2[%c3, %c0_35, %c0_36] : memref<5x128x128xbf16, #tpu.memory_space<vmem>>, vector<1x128x128xbf16>
    %43 = vector.shape_cast %42 : vector<1x128x128xbf16> to vector<128x128xbf16>
    %cst_37 = arith.constant dense<0.000000e+00> : vector<12x128xf32>
    %44 = tpu.matmul %41, %43, %cst_37 {dimension_numbers = #tpu.dot_dimension_numbers<[1], [0], [0], [1], [0, 0, 1, 1], [], []>} : vector<12x128xbf16>, vector<128x128xbf16>, vector<12x128xf32> -> vector<12x128xf32>
    %45 = arith.addf %40, %44 : vector<12x128xf32>
    %c0_38 = arith.constant 0 : index
    %c0_39 = arith.constant 0 : index
    %46 = vector.load %arg8[%c0_38, %c0_39] : memref<12x128xf32, #tpu.memory_space<vmem>>, vector<12x128xf32>
    tpu.vector_store %arg8[%c0_38, %c0_39], %45 {strides = array<i32>} : memref<12x128xf32, #tpu.memory_space<vmem>>, vector<12x128xf32>,
    %c0_40 = arith.constant 0 : index
    %c0_41 = arith.constant 0 : index
    %47 = vector.load %arg8[%c0_40, %c0_41] : memref<12x128xf32, #tpu.memory_space<vmem>>, vector<11x128xf32>
    %48 = vector.extract_strided_slice %14 {offsets = [3, 0], sizes = [11, 128], strides = [1, 1]} : vector<14x128xbf16> to vector<11x128xbf16>
    %c4 = arith.constant 4 : index
    %c0_42 = arith.constant 0 : index
    %c0_43 = arith.constant 0 : index
    %49 = vector.load %arg2[%c4, %c0_42, %c0_43] : memref<5x128x128xbf16, #tpu.memory_space<vmem>>, vector<1x128x128xbf16>
    %50 = vector.shape_cast %49 : vector<1x128x128xbf16> to vector<128x128xbf16>
    %cst_44 = arith.constant dense<0.000000e+00> : vector<11x128xf32>
    %51 = tpu.matmul %48, %50, %cst_44 {dimension_numbers = #tpu.dot_dimension_numbers<[1], [0], [0], [1], [0, 0, 1, 1], [], []>} : vector<11x128xbf16>, vector<128x128xbf16>, vector<11x128xf32> -> vector<11x128xf32>
    %52 = arith.addf %47, %51 : vector<11x128xf32>
    %c0_45 = arith.constant 0 : index
    %c0_46 = arith.constant 0 : index
    %53 = vector.load %arg8[%c0_45, %c0_46] : memref<12x128xf32, #tpu.memory_space<vmem>>, vector<11x128xf32>
    tpu.vector_store %arg8[%c0_45, %c0_46], %52 {strides = array<i32>} : memref<12x128xf32, #tpu.memory_space<vmem>>, vector<11x128xf32>,
    %c0_47 = arith.constant 0 : index
    %c0_48 = arith.constant 0 : index
    %54 = vector.load %arg8[%c0_47, %c0_48] : memref<12x128xf32, #tpu.memory_space<vmem>>, vector<12x128xf32>
    %55 = arith.truncf %54 : vector<12x128xf32> to vector<12x128xbf16>
    %c0_49 = arith.constant 0 : index
    %c0_50 = arith.constant 0 : index
    %c0_51 = arith.constant 0 : index
    %56 = vector.load %arg6[%c0_49, %c0_50, %c0_51] : memref<1x12x128xbf16, #tpu.memory_space<vmem>>, vector<1x12x128xbf16>
    %57 = vector.shape_cast %56 : vector<1x12x128xbf16> to vector<12x128xbf16>
    %58 = vector.shape_cast %55 : vector<12x128xbf16> to vector<1x12x128xbf16>
    tpu.vector_store %arg6[%c0_49, %c0_50, %c0_51], %58 {strides = array<i32>} : memref<1x12x128xbf16, #tpu.memory_space<vmem>>, vector<1x12x128xbf16>,
    %cst_52 = arith.constant dense<0.000000e+00> : vector<128xf32>
    %59 = vector.multi_reduction <add>, %54, %cst_52 [0] : vector<12x128xf32> to vector<128xf32>
    %60 = vector.shape_cast %59 : vector<128xf32> to vector<1x128xf32>
    %61 = arith.mulf %54, %54 : vector<12x128xf32>
    %cst_53 = arith.constant dense<0.000000e+00> : vector<128xf32>
    %62 = vector.multi_reduction <add>, %61, %cst_53 [0] : vector<12x128xf32> to vector<128xf32>
    %63 = vector.shape_cast %62 : vector<128xf32> to vector<1x128xf32>
    %64 = tpu.concatenate %60, %63 in 0 : vector<1x128xf32>, vector<1x128xf32> -> vector<2x128xf32>
    %c0_54 = arith.constant 0 : index
    %c0_55 = arith.constant 0 : index
    %c0_56 = arith.constant 0 : index
    %65 = vector.load %arg7[%c0_54, %c0_55, %c0_56] : memref<1x2x128xf32, #tpu.memory_space<vmem>>, vector<1x2x128xf32>
    %66 = vector.shape_cast %65 : vector<1x2x128xf32> to vector<2x128xf32>
    %67 = vector.shape_cast %64 : vector<2x128xf32> to vector<1x2x128xf32>
    tpu.vector_store %arg7[%c0_54, %c0_55, %c0_56], %67 {strides = array<i32>} : memref<1x2x128xf32, #tpu.memory_space<vmem>>, vector<1x2x128xf32>,
    return
  }
  func.func @transform_0(%arg0: i32) -> (i32, i32, i32) {
    %c0_i32 = arith.constant 0 : i32
    %c0_i32_0 = arith.constant 0 : i32
    %c0_i32_1 = arith.constant 0 : i32
    return %arg0, %c0_i32, %c0_i32_0 : i32, i32, i32
  }
  func.func @transform_1(%arg0: i32) -> (i32, i32, i32) {
    %c0_i32 = arith.constant 0 : i32
    %c0_i32_0 = arith.constant 0 : i32
    %c0_i32_1 = arith.constant 0 : i32
    %c0_i32_2 = arith.constant 0 : i32
    return %c0_i32, %c0_i32_0, %c0_i32_1 : i32, i32, i32
  }
  func.func @transform_2(%arg0: i32) -> (i32, i32) {
    %c0_i32 = arith.constant 0 : i32
    %c0_i32_0 = arith.constant 0 : i32
    %c0_i32_1 = arith.constant 0 : i32
    return %c0_i32, %c0_i32_0 : i32, i32
  }
  func.func @transform_3(%arg0: i32) -> (i32, i32) {
    %c0_i32 = arith.constant 0 : i32
    %c0_i32_0 = arith.constant 0 : i32
    %c0_i32_1 = arith.constant 0 : i32
    return %c0_i32, %c0_i32_0 : i32, i32
  }
  func.func @transform_4(%arg0: i32) -> (i32, i32) {
    %c0_i32 = arith.constant 0 : i32
    %c0_i32_0 = arith.constant 0 : i32
    %c0_i32_1 = arith.constant 0 : i32
    return %c0_i32, %c0_i32_0 : i32, i32
  }
  func.func @transform_5(%arg0: i32) -> (i32, i32, i32) {
    %c0_i32 = arith.constant 0 : i32
    %c0_i32_0 = arith.constant 0 : i32
    %c0_i32_1 = arith.constant 0 : i32
    return %arg0, %c0_i32, %c0_i32_0 : i32, i32, i32
  }
  func.func @transform_6(%arg0: i32) -> (i32, i32, i32) {
    %c0_i32 = arith.constant 0 : i32
    %c0_i32_0 = arith.constant 0 : i32
    %c0_i32_1 = arith.constant 0 : i32
    return %arg0, %c0_i32, %c0_i32_0 : i32, i32, i32
  }
}

module attributes {stable_mosaic.version = 11 : i64} {
  func.func @kernel(%arg0: i32, %arg1: memref<6x512xbf16, #tpu.memory_space<vmem>>, %arg2: memref<1x512xf32, #tpu.memory_space<vmem>>, %arg3: memref<1x512xf32, #tpu.memory_space<vmem>>, %arg4: memref<256x128xf32, #tpu.memory_space<vmem>>, %arg5: memref<256x128xf32, #tpu.memory_space<vmem>>, %arg6: memref<6x128xf32, #tpu.memory_space<vmem>>) attributes {dimension_semantics = [#tpu.dimension_semantics<parallel>], iteration_bounds = array<i64: 1>, scalar_prefetch = 0 : i64, scratch_operands = 0 : i64, tpu.core_type = #tpu.core_type<tc>, window_params = [{transform_indices = @transform_0, window_bounds = array<i64: 6, 512>}, {pipeline_mode = #tpu.pipeline_mode<synchronous>, transform_indices = @transform_1, window_bounds = array<i64: 1, 512>}, {pipeline_mode = #tpu.pipeline_mode<synchronous>, transform_indices = @transform_2, window_bounds = array<i64: 1, 512>}, {pipeline_mode = #tpu.pipeline_mode<synchronous>, transform_indices = @transform_3, window_bounds = array<i64: 256, 128>}, {pipeline_mode = #tpu.pipeline_mode<synchronous>, transform_indices = @transform_4, window_bounds = array<i64: 256, 128>}, {transform_indices = @transform_5, window_bounds = array<i64: 6, 128>}]} {
    %c0 = arith.constant 0 : index
    %c0_0 = arith.constant 0 : index
    %0 = vector.load %arg1[%c0, %c0_0] : memref<6x512xbf16, #tpu.memory_space<vmem>>, vector<6x512xbf16>
    %1 = arith.extf %0 : vector<6x512xbf16> to vector<6x512xf32>
    %c0_1 = arith.constant 0 : index
    %c0_2 = arith.constant 0 : index
    %2 = vector.load %arg2[%c0_1, %c0_2] : memref<1x512xf32, #tpu.memory_space<vmem>>, vector<1x512xf32>
    %3 = vector.broadcast %2 : vector<1x512xf32> to vector<6x512xf32>
    %4 = arith.mulf %1, %3 : vector<6x512xf32>
    %c0_3 = arith.constant 0 : index
    %c0_4 = arith.constant 0 : index
    %5 = vector.load %arg3[%c0_3, %c0_4] : memref<1x512xf32, #tpu.memory_space<vmem>>, vector<1x512xf32>
    %6 = vector.broadcast %5 : vector<1x512xf32> to vector<6x512xf32>
    %7 = arith.addf %4, %6 : vector<6x512xf32>
    %cst = arith.constant 0.000000e+00 : f32
    %8 = vector.broadcast %cst : f32 to vector<6x512xf32>
    %9 = arith.cmpf ogt, %7, %8 : vector<6x512xf32>
    %cst_5 = arith.constant 0.00999999977 : f32
    %10 = vector.broadcast %cst_5 : f32 to vector<6x512xf32>
    %11 = arith.mulf %10, %7 : vector<6x512xf32>
    %12 = arith.select %9, %7, %11 : vector<6x512xi1>, vector<6x512xf32>
    %13 = vector.extract_strided_slice %12 {offsets = [0, 0], sizes = [6, 128], strides = [1, 1]} : vector<6x512xf32> to vector<6x128xf32>
    %14 = vector.extract_strided_slice %12 {offsets = [0, 128], sizes = [6, 128], strides = [1, 1]} : vector<6x512xf32> to vector<6x128xf32>
    %15 = arith.maximumf %13, %14 : vector<6x128xf32>
    %16 = vector.extract_strided_slice %12 {offsets = [0, 256], sizes = [6, 128], strides = [1, 1]} : vector<6x512xf32> to vector<6x128xf32>
    %17 = vector.extract_strided_slice %12 {offsets = [0, 384], sizes = [6, 128], strides = [1, 1]} : vector<6x512xf32> to vector<6x128xf32>
    %18 = arith.maximumf %16, %17 : vector<6x128xf32>
    %19 = tpu.concatenate %15, %18 in 1 : vector<6x128xf32>, vector<6x128xf32> -> vector<6x256xf32>
    %c0_6 = arith.constant 0 : index
    %c0_7 = arith.constant 0 : index
    %20 = vector.load %arg4[%c0_6, %c0_7] : memref<256x128xf32, #tpu.memory_space<vmem>>, vector<256x128xf32>
    %cst_8 = arith.constant dense<0.000000e+00> : vector<6x128xf32>
    %21 = tpu.matmul %19, %20, %cst_8 {dimension_numbers = #tpu.dot_dimension_numbers<[1], [0], [0], [1], [0, 0, 1, 1], [], []>, precision = #tpu.contract_precision<fp32>} : vector<6x256xf32>, vector<256x128xf32>, vector<6x128xf32> -> vector<6x128xf32>
    %c0_9 = arith.constant 0 : index
    %c0_10 = arith.constant 0 : index
    %22 = vector.load %arg5[%c0_9, %c0_10] : memref<256x128xf32, #tpu.memory_space<vmem>>, vector<256x128xf32>
    %cst_11 = arith.constant dense<0.000000e+00> : vector<6x128xf32>
    %23 = tpu.matmul %19, %22, %cst_11 {dimension_numbers = #tpu.dot_dimension_numbers<[1], [0], [0], [1], [0, 0, 1, 1], [], []>, precision = #tpu.contract_precision<fp32>} : vector<6x256xf32>, vector<256x128xf32>, vector<6x128xf32> -> vector<6x128xf32>
    %24 = arith.maximumf %21, %23 : vector<6x128xf32>
    %c0_12 = arith.constant 0 : index
    %c0_13 = arith.constant 0 : index
    %25 = vector.load %arg6[%c0_12, %c0_13] : memref<6x128xf32, #tpu.memory_space<vmem>>, vector<6x128xf32>
    tpu.vector_store %arg6[%c0_12, %c0_13], %24 {strides = array<i32>} : memref<6x128xf32, #tpu.memory_space<vmem>>, vector<6x128xf32>,
    return
  }
  func.func @transform_0(%arg0: i32) -> (i32, i32) {
    %c0_i32 = arith.constant 0 : i32
    %c0_i32_0 = arith.constant 0 : i32
    return %arg0, %c0_i32 : i32, i32
  }
  func.func @transform_1(%arg0: i32) -> (i32, i32) {
    %c0_i32 = arith.constant 0 : i32
    %c0_i32_0 = arith.constant 0 : i32
    %c0_i32_1 = arith.constant 0 : i32
    return %c0_i32, %c0_i32_0 : i32, i32
  }
  func.func @transform_2(%arg0: i32) -> (i32, i32) {
    %c0_i32 = arith.constant 0 : i32
    %c0_i32_0 = arith.constant 0 : i32
    %c0_i32_1 = arith.constant 0 : i32
    return %c0_i32, %c0_i32_0 : i32, i32
  }
  func.func @transform_3(%arg0: i32) -> (i32, i32) {
    %c0_i32 = arith.constant 0 : i32
    %c0_i32_0 = arith.constant 0 : i32
    %c0_i32_1 = arith.constant 0 : i32
    return %c0_i32, %c0_i32_0 : i32, i32
  }
  func.func @transform_4(%arg0: i32) -> (i32, i32) {
    %c0_i32 = arith.constant 0 : i32
    %c0_i32_0 = arith.constant 0 : i32
    %c0_i32_1 = arith.constant 0 : i32
    return %c0_i32, %c0_i32_0 : i32, i32
  }
  func.func @transform_5(%arg0: i32) -> (i32, i32) {
    %c0_i32 = arith.constant 0 : i32
    %c0_i32_0 = arith.constant 0 : i32
    return %arg0, %c0_i32 : i32, i32
  }
}

</mosaic_0001>

<llo_original>
// kernel: tile.41
$region0: #{tile.41}
  #allocation0 [shape = 's32[1]{0}', space=sflag, size = 0x4, scoped, tag = 'scoped memory for tile.41']
  %s0 = inlined_call_operand.vmem [shape: f32[8], index: 0, kind: input, shape index: {}]
  %s1 = inlined_call_operand.vmem [shape: f32[16,8], index: 1, kind: output, shape index: {}]
  // Predicated region
  $region2: #{tile.41} parent=0 // pred_check
    _
  $region3: #{tile.41} parent=0 // pred_check_branch
    %3 = sbr.rel (0) target = $region5
  $region4: #{tile.41} parent=0 // pred_region
    _
  $region5: #{tile.41} parent=0 // pred_fallthru
    _
  %v4 = vld [vmem:[%s0] ss:$0 sm:$0xff]
  %5 = vst [vmem:[%s1] sm:$0xff] %v4
  %s6 = scalar_lea.vmem %s1, 8
  %7 = vst [vmem:[%s6] sm:$0xff] %v4

// kernel: tile.42
$region0: #{tile.42}
  %s0 = inlined_call_operand.vmem [shape: f32[16,8], index: 0, kind: input, shape index: {}]
  %s1 = inlined_call_operand.vmem [shape: f32[1,128], index: 1, kind: output, shape index: {}]
  $region1: #{tile.42} parent=0
    #allocation0 [shape = 'u8[4096]{0}', space=vmem, size = 0x1000, scoped, tag = 'scoped mem for output reshape']
    %v2 = vld [vmem:[%s0] sm:$0x1]
    %vm3 = vcmask 64512
    %4 = vst.msk [vmem:[#allocation0] sm:$0x1] %vm3, %v2
    %s5 = scalar_lea.vmem %s0, 15
    %v6 = vld [vmem:[%s5] sm:$0x1]
    %7 = vrot.lane.b32.xlu0 %v6, 120
    %v8 = vpop.permute.xlu0 %7
    %vm9 = vcmask 1048512
    %10 = vst.msk [vmem:[#allocation0] sm:$0x1] %vm9, %v8
    %s11 = scalar_lea.vmem %s0, 14
    %v12 = vld [vmem:[%s11] sm:$0x1]
    %13 = vrot.lane.b32.xlu0 %v12, 112
    %v14 = vpop.permute.xlu0 %13
    %vm15 = vcmask 982912
    %16 = vst.msk [vmem:[#allocation0] sm:$0x1] %vm15, %v14
    %s17 = scalar_lea.vmem %s0, 13
    %v18 = vld [vmem:[%s17] sm:$0x1]
    %19 = vrot.lane.b32.xlu0 %v18, 104
    %v20 = vpop.permute.xlu0 %19
    %vm21 = vcmask 917312
    %22 = vst.msk [vmem:[#allocation0] sm:$0x1] %vm21, %v20
    %s23 = scalar_lea.vmem %s0, 12
    %v24 = vld [vmem:[%s23] sm:$0x1]
    %25 = vrot.lane.b32.xlu0 %v24, 96
    %v26 = vpop.permute.xlu0 %25
    %vm27 = vcmask 851712
    %28 = vst.msk [vmem:[#allocation0] sm:$0x1] %vm27, %v26
    %s29 = scalar_lea.vmem %s0, 11
    %v30 = vld [vmem:[%s29] sm:$0x1]
    %31 = vrot.lane.b32.xlu0 %v30, 88
    %v32 = vpop.permute.xlu0 %31
    %vm33 = vcmask 786112
    %34 = vst.msk [vmem:[#allocation0] sm:$0x1] %vm33, %v32
    %s35 = scalar_lea.vmem %s0, 10
    %v36 = vld [vmem:[%s35] sm:$0x1]
    %37 = vrot.lane.b32.xlu0 %v36, 80
    %v38 = vpop.permute.xlu0 %37
    %vm39 = vcmask 720512
    %40 = vst.msk [vmem:[#allocation0] sm:$0x1] %vm39, %v38
    %s41 = scalar_lea.vmem %s0, 9
    %v42 = vld [vmem:[%s41] sm:$0x1]
    %43 = vrot.lane.b32.xlu0 %v42, 72
    %v44 = vpop.permute.xlu0 %43
    %vm45 = vcmask 654912
    %46 = vst.msk [vmem:[#allocation0] sm:$0x1] %vm45, %v44
    %s47 = scalar_lea.vmem %s0, 8
    %v48 = vld [vmem:[%s47] sm:$0x1]
    %49 = vrot.lane.b32.xlu0 %v48, 64
    %v50 = vpop.permute.xlu0 %49
    %vm51 = vcmask 589312
    %52 = vst.msk [vmem:[#allocation0] sm:$0x1] %vm51, %v50
    %s53 = scalar_lea.vmem %s0, 7
    %v54 = vld [vmem:[%s53] sm:$0x1]
    %55 = vrot.lane.b32.xlu0 %v54, 56
    %v56 = vpop.permute.xlu0 %55
    %vm57 = vcmask 523712
    %58 = vst.msk [vmem:[#allocation0] sm:$0x1] %vm57, %v56
    %s59 = scalar_lea.vmem %s0, 6
    %v60 = vld [vmem:[%s59] sm:$0x1]
    %61 = vrot.lane.b32.xlu0 %v60, 48
    %v62 = vpop.permute.xlu0 %61
    %vm63 = vcmask 458112
    %64 = vst.msk [vmem:[#allocation0] sm:$0x1] %vm63, %v62
    %s65 = scalar_lea.vmem %s0, 5
    %v66 = vld [vmem:[%s65] sm:$0x1]
    %67 = vrot.lane.b32.xlu0 %v66, 40
    %v68 = vpop.permute.xlu0 %67
    %vm69 = vcmask 392512
    %70 = vst.msk [vmem:[#allocation0] sm:$0x1] %vm69, %v68
    %s71 = scalar_lea.vmem %s0, 4
    %v72 = vld [vmem:[%s71] sm:$0x1]
    %73 = vrot.lane.b32.xlu0 %v72, 32
    %v74 = vpop.permute.xlu0 %73
    %vm75 = vcmask 326912
    %76 = vst.msk [vmem:[#allocation0] sm:$0x1] %vm75, %v74
    %s77 = scalar_lea.vmem %s0, 3
    %v78 = vld [vmem:[%s77] sm:$0x1]
    %79 = vrot.lane.b32.xlu0 %v78, 24
    %v80 = vpop.permute.xlu0 %79
    %vm81 = vcmask 261312
    %82 = vst.msk [vmem:[#allocation0] sm:$0x1] %vm81, %v80
    %s83 = scalar_lea.vmem %s0, 2
    %v84 = vld [vmem:[%s83] sm:$0x1]
    %85 = vrot.lane.b32.xlu0 %v84, 16
    %v86 = vpop.permute.xlu0 %85
    %vm87 = vcmask 195712
    %88 = vst.msk [vmem:[#allocation0] sm:$0x1] %vm87, %v86
    %s89 = scalar_lea.vmem %s0, 1
    %v90 = vld [vmem:[%s89] sm:$0x1]
    %91 = vrot.lane.b32.xlu0 %v90, 8
    %v92 = vpop.permute.xlu0 %91
    %vm93 = vcmask 130112
    %94 = vst.msk [vmem:[#allocation0] sm:$0x1] %vm93, %v92
    %s96 = sshllo.u32 0, 1
    %v98 = vld [vmem:[#allocation0] sm:%s96]
    %s99 = sshllo.u32 0, 1
    %100 = vst [vmem:[%s1] sm:%s99] %v98

// kernel: down_conv_forward.3
$region0: #{down_conv_forward.3}
  #allocation0 [shape = 'u32[]', space=smem, size = 0x4, offset = 0x4, fixed_abs, tag = 'smem constant byte address 0x4 - core index']
  #allocation1 [shape = 'u32[144,128]{1,0:T(1,128)}', space=vmem, size = 0x12000, scoped, tag = 'internal scratch']
  #allocation2 [shape = 'f32[14,128]{1,0:T(8,128)}', space=vmem, size = 0x2000, scoped, tag = 'scratch operand']
  %s0 = inlined_call_operand.vmem [shape: bf16[2,16,64], index: 0, kind: input, shape index: {}]
  %s1 = inlined_call_operand.vmem [shape: bf16[5,64,128], index: 1, kind: input, shape index: {}]
  %s2 = inlined_call_operand.vmem [shape: f32[1,128], index: 2, kind: input, shape index: {}]
  %s3 = inlined_call_operand.vmem [shape: bf16[2,14,128], index: 3, kind: output, shape index: {0}]
  %s4 = inlined_call_operand.vmem [shape: f32[2,2,128], index: 4, kind: output, shape index: {1}]
  %5 = xla_tuple %s3, %s4
  %s6 = sld [smem:[#allocation0]]
  $region53: #{down_conv_forward.3} parent=0
    _
  %s8 = ssub.s32 1, %s6
  %s9 = scalar_select 0, %s8, %s6
  loop: start=0, step=1, limit=4
  $region2: #{down_conv_forward.3} parent=0 // loop_pre_header
    _
  $region3: #{down_conv_forward.3} parent=0 // loop_header
    %s11 = sphi 0, %s15
    %p12 = scmp.ge.s32.totalorder %s11, 4
    %s21 = sphi 0, %s23
    %s24 = sphi 0, %s21
    %s25 = sphi 0, %s24
    %s41 = sphi 0, %s25
    %s45 = sphi 0, %s45
    %s47 = sphi 0, %s45
    %s48 = sphi 0, %s47
    %s62 = sphi 0, %s48
    %s66 = sphi 0, %s66
    %s68 = sphi 0, %s66
    %s69 = sphi 0, %s68
    %s83 = sphi 0, %s69
    %s89 = sphi 0, %s91
    %s92 = sphi 0, %s89
    %s93 = sphi 0, %s92
    %s109 = sphi 0, %s93
    %s115 = sphi 0, %s117
    %s118 = sphi 0, %s115
    %s119 = sphi 0, %s118
    %s135 = sphi 0, %s119
  $region4: #{down_conv_forward.3} parent=0 // loop_header_branch
    %14 = sbr.rel (%p12) target = $region8
  $region5: #{down_conv_forward.3} parent=0 // loop_body
    %s16 = ssub.s32 %s11, 1
    %s17 = ssub.s32 %s11, 2
    %s18 = sadd.s32 %s11, 1
    %s19 = ssub.s32 %s11, %s18
    %p20 = scmp.eq.s32.totalorder %s19, 0
    %s22 = sadd.s32 %s21, 1
    %s23 = scalar_select %p20, %s21, %s22
    %p26 = pneg %p20
    %p27 = scmp.eq.s32.totalorder %s11, 1
    %p28 = por %p26, %p27
    %p29 = scmp.ne.s32.totalorder %s21, %s24
    %p30 = scmp.eq.s32.totalorder %s11, 0
    %p31 = por %p29, %p30
    %p32 = scmp.ne.s32.totalorder %s21, %s24
    %p33 = scmp.eq.s32.totalorder %s16, 1
    %p34 = por %p32, %p33
    %p35 = scmp.ne.s32.totalorder %s24, %s25
    %p36 = scmp.eq.s32.totalorder %s16, 0
    %p37 = por %p35, %p36
    %p38 = scmp.ne.s32.totalorder %s24, %s25
    %p39 = scmp.eq.s32.totalorder %s17, 1
    %p40 = por %p38, %p39
    %p42 = scmp.ne.s32.totalorder %s25, %s41
    %p43 = scmp.eq.s32.totalorder %s17, 0
    %p44 = por %p42, %p43
    %s46 = sadd.s32 %s45, 1
    %p49 = scmp.eq.s32.totalorder %s11, 1
    %p50 = scmp.ne.s32.totalorder %s45, %s47
    %p51 = scmp.eq.s32.totalorder %s11, 0
    %p52 = por %p50, %p51
    %p53 = scmp.ne.s32.totalorder %s45, %s47
    %p54 = scmp.eq.s32.totalorder %s16, 1
    %p55 = por %p53, %p54
    %p56 = scmp.ne.s32.totalorder %s47, %s48
    %p57 = scmp.eq.s32.totalorder %s16, 0
    %p58 = por %p56, %p57
    %p59 = scmp.ne.s32.totalorder %s47, %s48
    %p60 = scmp.eq.s32.totalorder %s17, 1
    %p61 = por %p59, %p60
    %p63 = scmp.ne.s32.totalorder %s48, %s62
    %p64 = scmp.eq.s32.totalorder %s17, 0
    %p65 = por %p63, %p64
    %s67 = sadd.s32 %s66, 1
    %p70 = scmp.eq.s32.totalorder %s11, 1
    %p71 = scmp.ne.s32.totalorder %s66, %s68
    %p72 = scmp.eq.s32.totalorder %s11, 0
    %p73 = por %p71, %p72
    %p74 = scmp.ne.s32.totalorder %s66, %s68
    %p75 = scmp.eq.s32.totalorder %s16, 1
    %p76 = por %p74, %p75
    %p77 = scmp.ne.s32.totalorder %s68, %s69
    %p78 = scmp.eq.s32.totalorder %s16, 0
    %p79 = por %p77, %p78
    %p80 = scmp.ne.s32.totalorder %s68, %s69
    %p81 = scmp.eq.s32.totalorder %s17, 1
    %p82 = por %p80, %p81
    %p84 = scmp.ne.s32.totalorder %s69, %s83
    %p85 = scmp.eq.s32.totalorder %s17, 0
    %p86 = por %p84, %p85
    %s87 = ssub.s32 %s11, %s18
    %p88 = scmp.eq.s32.totalorder %s87, 0
    %s90 = sadd.s32 %s89, 1
    %s91 = scalar_select %p88, %s89, %s90
    %p94 = pneg %p88
    %p95 = scmp.eq.s32.totalorder %s11, 1
    %p96 = por %p94, %p95
    %p97 = scmp.ne.s32.totalorder %s89, %s92
    %p98 = scmp.eq.s32.totalorder %s11, 0
    %p99 = por %p97, %p98
    %p100 = scmp.ne.s32.totalorder %s89, %s92
    %p101 = scmp.eq.s32.totalorder %s16, 1
    %p102 = por %p100, %p101
    %p103 = scmp.ne.s32.totalorder %s92, %s93
    %p104 = scmp.eq.s32.totalorder %s16, 0
    %p105 = por %p103, %p104
    %p106 = scmp.ne.s32.totalorder %s92, %s93
    %p107 = scmp.eq.s32.totalorder %s17, 1
    %p108 = por %p106, %p107
    %p110 = scmp.ne.s32.totalorder %s93, %s109
    %p111 = scmp.eq.s32.totalorder %s17, 0
    %p112 = por %p110, %p111
    %s113 = ssub.s32 %s11, %s18
    %p114 = scmp.eq.s32.totalorder %s113, 0
    %s116 = sadd.s32 %s115, 1
    %s117 = scalar_select %p114, %s115, %s116
    %p120 = pneg %p114
    %p121 = scmp.eq.s32.totalorder %s11, 1
    %p122 = por %p120, %p121
    %p123 = scmp.ne.s32.totalorder %s115, %s118
    %p124 = scmp.eq.s32.totalorder %s11, 0
    %p125 = por %p123, %p124
    %p126 = scmp.ne.s32.totalorder %s115, %s118
    %p127 = scmp.eq.s32.totalorder %s16, 1
    %p128 = por %p126, %p127
    %p129 = scmp.ne.s32.totalorder %s118, %s119
    %p130 = scmp.eq.s32.totalorder %s16, 0
    %p131 = por %p129, %p130
    %p132 = scmp.ne.s32.totalorder %s118, %s119
    %p133 = scmp.eq.s32.totalorder %s17, 1
    %p134 = por %p132, %p133
    %p136 = scmp.ne.s32.totalorder %s119, %s135
    %p137 = scmp.eq.s32.totalorder %s17, 0
    %p138 = por %p136, %p137
    %p139 = scmp.le.s32.totalorder 1, %s11
    %p140 = scmp.lt.s32.totalorder %s11, 3
    %p141 = pnand %p139, %p140
    %p142 = pneg %p141
    // Predicated region
    $region9: #{down_conv_forward.3} parent=5 // pred_check
      _
    $region10: #{down_conv_forward.3} parent=5 // pred_check_branch
      %144 = sbr.rel (%p141) target = $region12
    $region11: #{down_conv_forward.3} parent=5 // pred_region
      %s145 = ssub.s32 %s11, 1
      // Predicated region
      $region13: #{down_conv_forward.3} parent=11 // pred_check
        %p146 = pneg %p58
      $region14: #{down_conv_forward.3} parent=11 // pred_check_branch
        %148 = sbr.rel (%p146) target = $region16
      $region15: #{down_conv_forward.3} parent=11 // pred_region
        _
      $region16: #{down_conv_forward.3} parent=11 // pred_fallthru
        _
      // Predicated region
      $region17: #{down_conv_forward.3} parent=11 // pred_check
        %p149 = pneg %p79
      $region18: #{down_conv_forward.3} parent=11 // pred_check_branch
        %151 = sbr.rel (%p149) target = $region20
      $region19: #{down_conv_forward.3} parent=11 // pred_region
        _
      $region20: #{down_conv_forward.3} parent=11 // pred_fallthru
        _
    $region12: #{down_conv_forward.3} parent=5 // pred_fallthru
      _
    %p152 = scmp.lt.s32.totalorder %s11, 2
    // Predicated region
    $region21: #{down_conv_forward.3} parent=5 // pred_check
      %p153 = pneg %p152
    $region22: #{down_conv_forward.3} parent=5 // pred_check_branch
      %155 = sbr.rel (%p153) target = $region24
    $region23: #{down_conv_forward.3} parent=5 // pred_region
      // Predicated region
      $region25: #{down_conv_forward.3} parent=23 // pred_check
        %p156 = pneg %p31
      $region26: #{down_conv_forward.3} parent=23 // pred_check_branch
        %158 = sbr.rel (%p156) target = $region28
      $region27: #{down_conv_forward.3} parent=23 // pred_region
        %p159 = scmp.lt.s32.totalorder %s11, 1
        %s160 = scalar_select %p159, %s11, 1
        %s161 = smul.addr %s160, 2
        %s162 = smul.addr %s161, 4
        %s163 = scalar_lea.vmem %s0, %s162
      $region28: #{down_conv_forward.3} parent=23 // pred_fallthru
        _
    $region24: #{down_conv_forward.3} parent=5 // pred_fallthru
      _
    %p164 = scmp.le.s32.totalorder 1, %s11
    %p165 = scmp.lt.s32.totalorder %s11, 3
    %p166 = pnand %p164, %p165
    %p167 = pneg %p166
    // Predicated region
    $region29: #{down_conv_forward.3} parent=5 // pred_check
      _
    $region30: #{down_conv_forward.3} parent=5 // pred_check_branch
      %169 = sbr.rel (%p166) target = $region32
    $region31: #{down_conv_forward.3} parent=5 // pred_region
      %s170 = ssub.s32 %s11, 1
      %p171 = scmp.lt.s32.totalorder %s16, 1
      %s172 = scalar_select %p171, %s16, 1
      %s173 = smul.addr %s172, 2
      %s174 = smul.addr %s173, 4
      %s175 = scalar_lea.vmem %s0, %s174
      %p176 = pneg %p37
      %p177 = pneg %p34
      %p178 = pneg %p58
      %p179 = pneg %p55
      %p180 = pneg %p79
      %p181 = pneg %p76
      %p182 = pneg %p105
      %p183 = pneg %p102
      %p184 = scmp.lt.s32.totalorder %s16, 1
      %s185 = scalar_select %p184, %s16, 1
      %s186 = smul.addr %s185, 2
      %s187 = smul.addr %s186, 4
      %s188 = scalar_lea.vmem %s3, %s187
      %p189 = pneg %p131
      %p190 = pneg %p128
      %p191 = scmp.lt.s32.totalorder %s16, 1
      %s192 = scalar_select %p191, %s16, 1
      %s193 = smul.addr %s192, 2
      %s194 = scalar_lea.vmem %s4, %s193
      %p195 = scmp.lt.s32.totalorder %s16, 1
      %s196 = scalar_select %p195, %s16, 1
      %s197 = smul.addr %s196, 2
      %s198 = smul.addr %s197, 4
      %s199 = scalar_lea.vmem %s0, %s198
      %p200 = scmp.lt.s32.totalorder %s16, 1
      %s201 = scalar_select %p200, %s16, 1
      %s202 = smul.addr %s201, 2
      %s203 = smul.addr %s202, 4
      %s204 = scalar_lea.vmem %s3, %s203
      %p205 = scmp.lt.s32.totalorder %s16, 1
      %s206 = scalar_select %p205, %s16, 1
      %s207 = smul.addr %s206, 2
      %s208 = scalar_lea.vmem %s4, %s207
      %v210 = vld [vmem:[%s199] sm:$0xf]
      %v211 = vld [vmem:[%s199 + $0x4] sm:$0xf]
      %v212 = vld [vmem:[%s2] sm:$0x1]
      %v214 = vlaneseq
      %v215 = vshrl.u32 %v214, 7
      %v216 = vsub.s32 0, %v215
      %v217 = vrot.slane %v212, %v216
      %219 = vst [vmem:[#allocation2] sm:$0xff] %v217
      %220 = vst [vmem:[#allocation2 + $0x8] sm:$0x3f] %v217
      %v221 = vld [vmem:[#allocation2 + $0x1] sm:$0xff]
      %v222 = vld [vmem:[#allocation2 + $0x9] sm:$0x1f]
      %v223 = vld [vmem:[%s1] sm:$0xf]
      %v224 = vld [vmem:[%s1 + $0x4] sm:$0xf]
      %v225 = vld [vmem:[%s1 + $0x8] sm:$0xf]
      %v226 = vld [vmem:[%s1 + $0xc] sm:$0xf]
      %v227 = vld [vmem:[%s1 + $0x10] sm:$0xf]
      %v228 = vld [vmem:[%s1 + $0x14] sm:$0xf]
      %v229 = vld [vmem:[%s1 + $0x18] sm:$0xf]
      %v230 = vld [vmem:[%s1 + $0x1c] sm:$0xf]
      %v233 = vunpack.c.l.b16 %v210
      %v234 = vunpack.c.l.b16 %v211
      %v235 = vpack.c.b16 %v234, %v233
      %v244 = vunpack.c.l.b16 %v223
      %v245 = vunpack.c.l.b16 %v224
      %v246 = vunpack.c.l.b16 %v225
      %v247 = vunpack.c.l.b16 %v226
      %v248 = vunpack.c.l.b16 %v227
      %v249 = vunpack.c.l.b16 %v228
      %v250 = vunpack.c.l.b16 %v229
      %v251 = vunpack.c.l.b16 %v230
      %v252 = vpack.c.b16 %v245, %v244
      %v253 = vpack.c.b16 %v247, %v246
      %v254 = vpack.c.b16 %v249, %v248
      %v255 = vpack.c.b16 %v251, %v250
      %vm260 = vcmask 523264
      %v262 = vsel %vm260, %v235, 0
      %264 = vmatprep.subr.bf16.mxu0 0
      %265 = vmatpush1.bf16.msra.mxu0 %v252
      %266 = vmatprep.subr.bf16.mxu0 0
      %267 = vmatpush1.bf16.msra.mxu0 %v253
      %268 = vmatprep.subr.bf16.mxu0 0
      %269 = vmatpush1.bf16.msra.mxu0 %v254
      %270 = vmatprep.subr.bf16.mxu0 0
      %271 = vmatpush1.bf16.msra.mxu0 %v255
      %272 = vmatprep.subr.bf16.mxu0 0
      %273 = vmatpush1.bf16.msra.mxu0 0
      %274 = vmatprep.subr.bf16.mxu0 0
      %275 = vmatpush1.bf16.msra.mxu0 0
      %276 = vmatprep.subr.bf16.mxu0 0
      %277 = vmatpush1.bf16.msra.mxu0 0
      %278 = vmatprep.subr.bf16.mxu0 0
      %279 = vmatpush1.bf16.msra.mxu0 0
      %280 = vmatprep.subr.bf16.mxu0 0
      %281 = vmatpush1.bf16.msra.mxu0 0
      %282 = vmatprep.subr.bf16.mxu0 0
      %283 = vmatpush1.bf16.msra.mxu0 0
      %284 = vmatprep.subr.bf16.mxu0 0
      %285 = vmatpush1.bf16.msra.mxu0 0
      %286 = vmatprep.subr.bf16.mxu0 0
      %287 = vmatpush1.bf16.msra.mxu0 0
      %288 = vmatprep.subr.bf16.mxu0 0
      %289 = vmatpush1.bf16.msra.mxu0 0
      %290 = vmatprep.subr.bf16.mxu0 0
      %291 = vmatpush1.bf16.msra.mxu0 0
      %292 = vmatprep.subr.bf16.mxu0 0
      %293 = vmatpush1.bf16.msra.mxu0 0
      %294 = vmatprep.subr.bf16.mxu0 0
      %295 = vmatpush1.bf16.msra.mxu0 0
      %296 = vmatprep.mubr.bf16.mxu0 0
      %297 = vmatmul.mubr.bf16.gmra.mrb[0].mxu0 %v262
      %v298 = vpop.f32.mrb[0].mxu0
      %v299 = vadd.f32 0.0, %v298
      %v300 = vpop.f32.mrb[0].mxu0
      %v301 = vpop.f32.mrb[0].mxu0
      %v302 = vadd.f32 0.0, %v301
      %v303 = vpop.f32.mrb[0].mxu0
      %304 = vdwg.mxu0
      %v305 = vadd.f32 %v221, %v299
      %v306 = vadd.f32 %v222, %v302
      %307 = vst [vmem:[#allocation2 + $0x1] sm:$0xff] %v305
      %308 = vst [vmem:[#allocation2 + $0x9] sm:$0x1f] %v306
      %v309 = vld [vmem:[#allocation2] sm:$0xff]
      %v310 = vld [vmem:[#allocation2 + $0x8] sm:$0x3f]
      %s311 = scalar_lea.vmem %s1, 32
      %v312 = vld [vmem:[%s311] sm:$0xf]
      %v313 = vld [vmem:[%s311 + $0x4] sm:$0xf]
      %v314 = vld [vmem:[%s311 + $0x8] sm:$0xf]
      %v315 = vld [vmem:[%s311 + $0xc] sm:$0xf]
      %v316 = vld [vmem:[%s311 + $0x10] sm:$0xf]
      %v317 = vld [vmem:[%s311 + $0x14] sm:$0xf]
      %v318 = vld [vmem:[%s311 + $0x18] sm:$0xf]
      %v319 = vld [vmem:[%s311 + $0x1c] sm:$0xf]
      %v328 = vunpack.c.l.b16 %v312
      %v329 = vunpack.c.l.b16 %v313
      %v330 = vunpack.c.l.b16 %v314
      %v331 = vunpack.c.l.b16 %v315
      %v332 = vunpack.c.l.b16 %v316
      %v333 = vunpack.c.l.b16 %v317
      %v334 = vunpack.c.l.b16 %v318
      %v335 = vunpack.c.l.b16 %v319
      %v336 = vpack.c.b16 %v329, %v328
      %v337 = vpack.c.b16 %v331, %v330
      %v338 = vpack.c.b16 %v333, %v332
      %v339 = vpack.c.b16 %v335, %v334
      %344 = vmatprep.subr.bf16.mxu0 0
      %345 = vmatpush1.bf16.msra.mxu0 %v336
      %346 = vmatprep.subr.bf16.mxu0 0
      %347 = vmatpush1.bf16.msra.mxu0 %v337
      %348 = vmatprep.subr.bf16.mxu0 0
      %349 = vmatpush1.bf16.msra.mxu0 %v338
      %350 = vmatprep.subr.bf16.mxu0 0
      %351 = vmatpush1.bf16.msra.mxu0 %v339
      %352 = vmatprep.subr.bf16.mxu0 0
      %353 = vmatpush1.bf16.msra.mxu0 0
      %354 = vmatprep.subr.bf16.mxu0 0
      %355 = vmatpush1.bf16.msra.mxu0 0
      %356 = vmatprep.subr.bf16.mxu0 0
      %357 = vmatpush1.bf16.msra.mxu0 0
      %358 = vmatprep.subr.bf16.mxu0 0
      %359 = vmatpush1.bf16.msra.mxu0 0
      %360 = vmatprep.subr.bf16.mxu0 0
      %361 = vmatpush1.bf16.msra.mxu0 0
      %362 = vmatprep.subr.bf16.mxu0 0
      %363 = vmatpush1.bf16.msra.mxu0 0
      %364 = vmatprep.subr.bf16.mxu0 0
      %365 = vmatpush1.bf16.msra.mxu0 0
      %366 = vmatprep.subr.bf16.mxu0 0
      %367 = vmatpush1.bf16.msra.mxu0 0
      %368 = vmatprep.subr.bf16.mxu0 0
      %369 = vmatpush1.bf16.msra.mxu0 0
      %370 = vmatprep.subr.bf16.mxu0 0
      %371 = vmatpush1.bf16.msra.mxu0 0
      %372 = vmatprep.subr.bf16.mxu0 0
      %373 = vmatpush1.bf16.msra.mxu0 0
      %374 = vmatprep.subr.bf16.mxu0 0
      %375 = vmatpush1.bf16.msra.mxu0 0
      %376 = vmatprep.mubr.bf16.mxu0 0
      %377 = vmatmul.mubr.bf16.gmra.mrb[0].mxu0 %v262
      %v378 = vpop.f32.mrb[0].mxu0
      %v379 = vadd.f32 0.0, %v378
      %v380 = vpop.f32.mrb[0].mxu0
      %v381 = vpop.f32.mrb[0].mxu0
      %v382 = vadd.f32 0.0, %v381
      %v383 = vpop.f32.mrb[0].mxu0
      %384 = vdwg.mxu0
      %v385 = vadd.f32 %v309, %v379
      %v386 = vadd.f32 %v310, %v382
      %387 = vst [vmem:[#allocation2] sm:$0xff] %v385
      %388 = vst [vmem:[#allocation2 + $0x8] sm:$0x3f] %v386
      %v389 = vld [vmem:[#allocation2] sm:$0xff]
      %v390 = vld [vmem:[#allocation2 + $0x8] sm:$0x3f]
      %s391 = scalar_lea.vmem %s1, 64
      %v392 = vld [vmem:[%s391] sm:$0xf]
      %v393 = vld [vmem:[%s391 + $0x4] sm:$0xf]
      %v394 = vld [vmem:[%s391 + $0x8] sm:$0xf]
      %v395 = vld [vmem:[%s391 + $0xc] sm:$0xf]
      %v396 = vld [vmem:[%s391 + $0x10] sm:$0xf]
      %v397 = vld [vmem:[%s391 + $0x14] sm:$0xf]
      %v398 = vld [vmem:[%s391 + $0x18] sm:$0xf]
      %v399 = vld [vmem:[%s391 + $0x1c] sm:$0xf]
      %v400 = vshrl.u32 %v235, 16
      %v402 = vshll.u32 %v235, 16
      %v404 = vrot.slane %v402, 1
      %v405 = vor.u32 %v400, %v404
      %v414 = vunpack.c.l.b16 %v392
      %v415 = vunpack.c.l.b16 %v393
      %v416 = vunpack.c.l.b16 %v394
      %v417 = vunpack.c.l.b16 %v395
      %v418 = vunpack.c.l.b16 %v396
      %v419 = vunpack.c.l.b16 %v397
      %v420 = vunpack.c.l.b16 %v398
      %v421 = vunpack.c.l.b16 %v399
      %v422 = vpack.c.b16 %v415, %v414
      %v423 = vpack.c.b16 %v417, %v416
      %v424 = vpack.c.b16 %v419, %v418
      %v425 = vpack.c.b16 %v421, %v420
      %v431 = vsel %vm260, %v405, 0
      %433 = vmatprep.subr.bf16.mxu0 0
      %434 = vmatpush1.bf16.msra.mxu0 %v422
      %435 = vmatprep.subr.bf16.mxu0 0
      %436 = vmatpush1.bf16.msra.mxu0 %v423
      %437 = vmatprep.subr.bf16.mxu0 0
      %438 = vmatpush1.bf16.msra.mxu0 %v424
      %439 = vmatprep.subr.bf16.mxu0 0
      %440 = vmatpush1.bf16.msra.mxu0 %v425
      %441 = vmatprep.subr.bf16.mxu0 0
      %442 = vmatpush1.bf16.msra.mxu0 0
      %443 = vmatprep.subr.bf16.mxu0 0
      %444 = vmatpush1.bf16.msra.mxu0 0
      %445 = vmatprep.subr.bf16.mxu0 0
      %446 = vmatpush1.bf16.msra.mxu0 0
      %447 = vmatprep.subr.bf16.mxu0 0
      %448 = vmatpush1.bf16.msra.mxu0 0
      %449 = vmatprep.subr.bf16.mxu0 0
      %450 = vmatpush1.bf16.msra.mxu0 0
      %451 = vmatprep.subr.bf16.mxu0 0
      %452 = vmatpush1.bf16.msra.mxu0 0
      %453 = vmatprep.subr.bf16.mxu0 0
      %454 = vmatpush1.bf16.msra.mxu0 0
      %455 = vmatprep.subr.bf16.mxu0 0
      %456 = vmatpush1.bf16.msra.mxu0 0
      %457 = vmatprep.subr.bf16.mxu0 0
      %458 = vmatpush1.bf16.msra.mxu0 0
      %459 = vmatprep.subr.bf16.mxu0 0
      %460 = vmatpush1.bf16.msra.mxu0 0
      %461 = vmatprep.subr.bf16.mxu0 0
      %462 = vmatpush1.bf16.msra.mxu0 0
      %463 = vmatprep.subr.bf16.mxu0 0
      %464 = vmatpush1.bf16.msra.mxu0 0
      %465 = vmatprep.mubr.bf16.mxu0 0
      %466 = vmatmul.mubr.bf16.gmra.mrb[0].mxu0 %v431
      %v467 = vpop.f32.mrb[0].mxu0
      %v468 = vadd.f32 0.0, %v467
      %v469 = vpop.f32.mrb[0].mxu0
      %v470 = vpop.f32.mrb[0].mxu0
      %v471 = vadd.f32 0.0, %v470
      %v472 = vpop.f32.mrb[0].mxu0
      %473 = vdwg.mxu0
      %v474 = vadd.f32 %v389, %v468
      %v475 = vadd.f32 %v390, %v471
      %476 = vst [vmem:[#allocation2] sm:$0xff] %v474
      %477 = vst [vmem:[#allocation2 + $0x8] sm:$0x3f] %v475
      %v478 = vld [vmem:[#allocation2] sm:$0xff]
      %v479 = vld [vmem:[#allocation2 + $0x8] sm:$0x3f]
      %s480 = scalar_lea.vmem %s1, 96
      %v481 = vld [vmem:[%s480] sm:$0xf]
      %v482 = vld [vmem:[%s480 + $0x4] sm:$0xf]
      %v483 = vld [vmem:[%s480 + $0x8] sm:$0xf]
      %v484 = vld [vmem:[%s480 + $0xc] sm:$0xf]
      %v485 = vld [vmem:[%s480 + $0x10] sm:$0xf]
      %v486 = vld [vmem:[%s480 + $0x14] sm:$0xf]
      %v487 = vld [vmem:[%s480 + $0x18] sm:$0xf]
      %v488 = vld [vmem:[%s480 + $0x1c] sm:$0xf]
      %v489 = vrot.slane %v235, 1
      %v498 = vunpack.c.l.b16 %v481
      %v499 = vunpack.c.l.b16 %v482
      %v500 = vunpack.c.l.b16 %v483
      %v501 = vunpack.c.l.b16 %v484
      %v502 = vunpack.c.l.b16 %v485
      %v503 = vunpack.c.l.b16 %v486
      %v504 = vunpack.c.l.b16 %v487
      %v505 = vunpack.c.l.b16 %v488
      %v506 = vpack.c.b16 %v499, %v498
      %v507 = vpack.c.b16 %v501, %v500
      %v508 = vpack.c.b16 %v503, %v502
      %v509 = vpack.c.b16 %v505, %v504
      %v515 = vsel %vm260, %v489, 0
      %517 = vmatprep.subr.bf16.mxu0 0
      %518 = vmatpush1.bf16.msra.mxu0 %v506
      %519 = vmatprep.subr.bf16.mxu0 0
      %520 = vmatpush1.bf16.msra.mxu0 %v507
      %521 = vmatprep.subr.bf16.mxu0 0
      %522 = vmatpush1.bf16.msra.mxu0 %v508
      %523 = vmatprep.subr.bf16.mxu0 0
      %524 = vmatpush1.bf16.msra.mxu0 %v509
      %525 = vmatprep.subr.bf16.mxu0 0
      %526 = vmatpush1.bf16.msra.mxu0 0
      %527 = vmatprep.subr.bf16.mxu0 0
      %528 = vmatpush1.bf16.msra.mxu0 0
      %529 = vmatprep.subr.bf16.mxu0 0
      %530 = vmatpush1.bf16.msra.mxu0 0
      %531 = vmatprep.subr.bf16.mxu0 0
      %532 = vmatpush1.bf16.msra.mxu0 0
      %533 = vmatprep.subr.bf16.mxu0 0
      %534 = vmatpush1.bf16.msra.mxu0 0
      %535 = vmatprep.subr.bf16.mxu0 0
      %536 = vmatpush1.bf16.msra.mxu0 0
      %537 = vmatprep.subr.bf16.mxu0 0
      %538 = vmatpush1.bf16.msra.mxu0 0
      %539 = vmatprep.subr.bf16.mxu0 0
      %540 = vmatpush1.bf16.msra.mxu0 0
      %541 = vmatprep.subr.bf16.mxu0 0
      %542 = vmatpush1.bf16.msra.mxu0 0
      %543 = vmatprep.subr.bf16.mxu0 0
      %544 = vmatpush1.bf16.msra.mxu0 0
      %545 = vmatprep.subr.bf16.mxu0 0
      %546 = vmatpush1.bf16.msra.mxu0 0
      %547 = vmatprep.subr.bf16.mxu0 0
      %548 = vmatpush1.bf16.msra.mxu0 0
      %549 = vmatprep.mubr.bf16.mxu0 0
      %550 = vmatmul.mubr.bf16.gmra.mrb[0].mxu0 %v515
      %v551 = vpop.f32.mrb[0].mxu0
      %v552 = vadd.f32 0.0, %v551
      %v553 = vpop.f32.mrb[0].mxu0
      %v554 = vpop.f32.mrb[0].mxu0
      %v555 = vadd.f32 0.0, %v554
      %v556 = vpop.f32.mrb[0].mxu0
      %557 = vdwg.mxu0
      %v558 = vadd.f32 %v478, %v552
      %v559 = vadd.f32 %v479, %v555
      %560 = vst [vmem:[#allocation2] sm:$0xff] %v558
      %561 = vst [vmem:[#allocation2 + $0x8] sm:$0x3f] %v559
      %v562 = vld [vmem:[#allocation2] sm:$0xff]
      %v563 = vld [vmem:[#allocation2 + $0x8] sm:$0x1f]
      %s564 = scalar_lea.vmem %s1, 128
      %v565 = vld [vmem:[%s564] sm:$0xf]
      %v566 = vld [vmem:[%s564 + $0x4] sm:$0xf]
      %v567 = vld [vmem:[%s564 + $0x8] sm:$0xf]
      %v568 = vld [vmem:[%s564 + $0xc] sm:$0xf]
      %v569 = vld [vmem:[%s564 + $0x10] sm:$0xf]
      %v570 = vld [vmem:[%s564 + $0x14] sm:$0xf]
      %v571 = vld [vmem:[%s564 + $0x18] sm:$0xf]
      %v572 = vld [vmem:[%s564 + $0x1c] sm:$0xf]
      %v573 = vrot.slane %v400, 1
      %v574 = vrot.slane %v402, 2
      %v575 = vor.u32 %v573, %v574
      %v584 = vunpack.c.l.b16 %v565
      %v585 = vunpack.c.l.b16 %v566
      %v586 = vunpack.c.l.b16 %v567
      %v587 = vunpack.c.l.b16 %v568
      %v588 = vunpack.c.l.b16 %v569
      %v589 = vunpack.c.l.b16 %v570
      %v590 = vunpack.c.l.b16 %v571
      %v591 = vunpack.c.l.b16 %v572
      %v592 = vpack.c.b16 %v585, %v584
      %v593 = vpack.c.b16 %v587, %v586
      %v594 = vpack.c.b16 %v589, %v588
      %v595 = vpack.c.b16 %v591, %v590
      %v601 = vsel %vm260, %v575, 0
      %603 = vmatprep.subr.bf16.mxu0 0
      %604 = vmatpush1.bf16.msra.mxu0 %v592
      %605 = vmatprep.subr.bf16.mxu0 0
      %606 = vmatpush1.bf16.msra.mxu0 %v593
      %607 = vmatprep.subr.bf16.mxu0 0
      %608 = vmatpush1.bf16.msra.mxu0 %v594
      %609 = vmatprep.subr.bf16.mxu0 0
      %610 = vmatpush1.bf16.msra.mxu0 %v595
      %611 = vmatprep.subr.bf16.mxu0 0
      %612 = vmatpush1.bf16.msra.mxu0 0
      %613 = vmatprep.subr.bf16.mxu0 0
      %614 = vmatpush1.bf16.msra.mxu0 0
      %615 = vmatprep.subr.bf16.mxu0 0
      %616 = vmatpush1.bf16.msra.mxu0 0
      %617 = vmatprep.subr.bf16.mxu0 0
      %618 = vmatpush1.bf16.msra.mxu0 0
      %619 = vmatprep.subr.bf16.mxu0 0
      %620 = vmatpush1.bf16.msra.mxu0 0
      %621 = vmatprep.subr.bf16.mxu0 0
      %622 = vmatpush1.bf16.msra.mxu0 0
      %623 = vmatprep.subr.bf16.mxu0 0
      %624 = vmatpush1.bf16.msra.mxu0 0
      %625 = vmatprep.subr.bf16.mxu0 0
      %626 = vmatpush1.bf16.msra.mxu0 0
      %627 = vmatprep.subr.bf16.mxu0 0
      %628 = vmatpush1.bf16.msra.mxu0 0
      %629 = vmatprep.subr.bf16.mxu0 0
      %630 = vmatpush1.bf16.msra.mxu0 0
      %631 = vmatprep.subr.bf16.mxu0 0
      %632 = vmatpush1.bf16.msra.mxu0 0
      %633 = vmatprep.subr.bf16.mxu0 0
      %634 = vmatpush1.bf16.msra.mxu0 0
      %635 = vmatprep.mubr.bf16.mxu0 0
      %636 = vmatmul.mubr.bf16.gmra.mrb[0].mxu0 %v601
      %v637 = vpop.f32.mrb[0].mxu0
      %v638 = vadd.f32 0.0, %v637
      %v639 = vpop.f32.mrb[0].mxu0
      %v640 = vpop.f32.mrb[0].mxu0
      %v641 = vadd.f32 0.0, %v640
      %v642 = vpop.f32.mrb[0].mxu0
      %643 = vdwg.mxu0
      %v644 = vadd.f32 %v562, %v638
      %v645 = vadd.f32 %v563, %v641
      %646 = vst [vmem:[#allocation2] sm:$0xff] %v644
      %647 = vst [vmem:[#allocation2 + $0x8] sm:$0x1f] %v645
      %v648 = vld [vmem:[#allocation2] sm:$0xff]
      %v649 = vld [vmem:[#allocation2 + $0x8] sm:$0x3f]
      %v650 = vpack.c.bf16 %v649, %v648
      %v652 = vunpack.c.l.b16 %v650
      %v653 = vunpack.c.h.b16 %v650
      %v654 = vpack.c.b16 %v652, %v652
      %v655 = vpack.c.b16 %v653, %v653
      %658 = vst [vmem:[%s204] sm:$0xf] %v654
      %659 = vst [vmem:[%s204 + $0x4] sm:$0x7] %v655
      %vm660 = vcmask 1045504
      %v661 = vsel %vm660, %v649, 0.0
      %v662 = vadd.f32 %v648, %v661
      %v663 = vrot.slane %v662, 4
      %v664 = vadd.f32 %v662, %v663
      %v665 = vrot.slane %v664, 2
      %v666 = vadd.f32 %v664, %v665
      %v667 = vrot.slane %v666, 1
      %v668 = vadd.f32 %v666, %v667
      %v669 = vmul.f32 %v648, %v648
      %v670 = vmul.f32 %v649, %v649
      %v671 = vsel %vm660, %v670, 0.0
      %v672 = vadd.f32 %v669, %v671
      %v673 = vrot.slane %v672, 4
      %v674 = vadd.f32 %v672, %v673
      %v675 = vrot.slane %v674, 2
      %v676 = vadd.f32 %v674, %v675
      %v677 = vrot.slane %v676, 1
      %v678 = vadd.f32 %v676, %v677
      %vm679 = vcmask 1040384
      %v680 = vsel %vm679, %v668, %v678
      %681 = vst [vmem:[%s208] sm:$0x3] %v680
      %p682 = scmp.lt.s32.totalorder %s16, 1
      %s683 = scalar_select %p682, %s16, 1
      %s684 = smul.addr %s683, 2
      %s685 = smul.addr %s684, 4
      %s686 = scalar_lea.vmem %s3, %s685
      %p687 = scmp.lt.s32.totalorder %s16, 1
      %s688 = scalar_select %p687, %s16, 1
      %s689 = smul.addr %s688, 2
      %s690 = scalar_lea.vmem %s4, %s689
      // Predicated region
      $region33: #{down_conv_forward.3} parent=31 // pred_check
        %p691 = pneg %p102
      $region34: #{down_conv_forward.3} parent=31 // pred_check_branch
        %693 = sbr.rel (%p691) target = $region36
      $region35: #{down_conv_forward.3} parent=31 // pred_region
        _
      $region36: #{down_conv_forward.3} parent=31 // pred_fallthru
        _
      // Predicated region
      $region37: #{down_conv_forward.3} parent=31 // pred_check
        %p694 = pneg %p128
      $region38: #{down_conv_forward.3} parent=31 // pred_check_branch
        %696 = sbr.rel (%p694) target = $region40
      $region39: #{down_conv_forward.3} parent=31 // pred_region
        _
      $region40: #{down_conv_forward.3} parent=31 // pred_fallthru
        _
    $region32: #{down_conv_forward.3} parent=5 // pred_fallthru
      _
    %p697 = scmp.le.s32.totalorder 2, %s11
    // Predicated region
    $region41: #{down_conv_forward.3} parent=5 // pred_check
      %p698 = pneg %p697
    $region42: #{down_conv_forward.3} parent=5 // pred_check_branch
      %700 = sbr.rel (%p698) target = $region44
    $region43: #{down_conv_forward.3} parent=5 // pred_region
      %s701 = ssub.s32 %s11, 2
      // Predicated region
      $region45: #{down_conv_forward.3} parent=43 // pred_check
        %p702 = pneg %p108
      $region46: #{down_conv_forward.3} parent=43 // pred_check_branch
        %704 = sbr.rel (%p702) target = $region48
      $region47: #{down_conv_forward.3} parent=43 // pred_region
        %p705 = scmp.lt.s32.totalorder %s17, 1
        %s706 = scalar_select %p705, %s17, 1
        %s707 = smul.addr %s706, 2
        %s708 = smul.addr %s707, 4
        %s709 = scalar_lea.vmem %s3, %s708
      $region48: #{down_conv_forward.3} parent=43 // pred_fallthru
        _
      // Predicated region
      $region49: #{down_conv_forward.3} parent=43 // pred_check
        %p710 = pneg %p134
      $region50: #{down_conv_forward.3} parent=43 // pred_check_branch
        %712 = sbr.rel (%p710) target = $region52
      $region51: #{down_conv_forward.3} parent=43 // pred_region
        %p713 = scmp.lt.s32.totalorder %s17, 1
        %s714 = scalar_select %p713, %s17, 1
        %s715 = smul.addr %s714, 2
        %s716 = scalar_lea.vmem %s4, %s715
      $region52: #{down_conv_forward.3} parent=43 // pred_fallthru
        _
    $region44: #{down_conv_forward.3} parent=5 // pred_fallthru
      _
  $region6: #{down_conv_forward.3} parent=0 // loop_footer
    %s15 = sadd.s32 1, %s11
  $region7: #{down_conv_forward.3} parent=0 // loop_footer_branch
    %10 = sbr.rel target = $region3
  $region8: #{down_conv_forward.3} parent=0 // loop_exit
    _

// kernel: down_conv_forward.4
$region0: #{down_conv_forward.4}
  #allocation0 [shape = 'u32[]', space=smem, size = 0x4, offset = 0x4, fixed_abs, tag = 'smem constant byte address 0x4 - core index']
  #allocation1 [shape = 'u32[144,128]{1,0:T(1,128)}', space=vmem, size = 0x12000, scoped, tag = 'internal scratch']
  #allocation2 [shape = 'f32[12,128]{1,0:T(8,128)}', space=vmem, size = 0x2000, scoped, tag = 'scratch operand']
  %s0 = inlined_call_operand.vmem [shape: bf16[2,14,128], index: 0, kind: input, shape index: {}]
  %s1 = inlined_call_operand.vmem [shape: bf16[5,128,128], index: 1, kind: input, shape index: {}]
  %s2 = inlined_call_operand.vmem [shape: f32[1,128], index: 2, kind: input, shape index: {}]
  %s3 = inlined_call_operand.vmem [shape: f32[1,128], index: 3, kind: input, shape index: {}]
  %s4 = inlined_call_operand.vmem [shape: f32[1,128], index: 4, kind: input, shape index: {}]
  %s5 = inlined_call_operand.vmem [shape: bf16[2,12,128], index: 5, kind: output, shape index: {0}]
  %s6 = inlined_call_operand.vmem [shape: f32[2,2,128], index: 6, kind: output, shape index: {1}]
  %7 = xla_tuple %s5, %s6
  %s8 = sld [smem:[#allocation0]]
  $region61: #{down_conv_forward.4} parent=0
    _
  %s10 = ssub.s32 1, %s8
  %s11 = scalar_select 0, %s10, %s8
  loop: start=0, step=1, limit=4
  $region2: #{down_conv_forward.4} parent=0 // loop_pre_header
    _
  $region3: #{down_conv_forward.4} parent=0 // loop_header
    %s13 = sphi 0, %s17
    %p14 = scmp.ge.s32.totalorder %s13, 4
    %s23 = sphi 0, %s25
    %s26 = sphi 0, %s23
    %s27 = sphi 0, %s26
    %s43 = sphi 0, %s27
    %s47 = sphi 0, %s47
    %s49 = sphi 0, %s47
    %s50 = sphi 0, %s49
    %s64 = sphi 0, %s50
    %s68 = sphi 0, %s68
    %s70 = sphi 0, %s68
    %s71 = sphi 0, %s70
    %s85 = sphi 0, %s71
    %s89 = sphi 0, %s89
    %s91 = sphi 0, %s89
    %s92 = sphi 0, %s91
    %s106 = sphi 0, %s92
    %s110 = sphi 0, %s110
    %s112 = sphi 0, %s110
    %s113 = sphi 0, %s112
    %s127 = sphi 0, %s113
    %s133 = sphi 0, %s135
    %s136 = sphi 0, %s133
    %s137 = sphi 0, %s136
    %s153 = sphi 0, %s137
    %s159 = sphi 0, %s161
    %s162 = sphi 0, %s159
    %s163 = sphi 0, %s162
    %s179 = sphi 0, %s163
  $region4: #{down_conv_forward.4} parent=0 // loop_header_branch
    %16 = sbr.rel (%p14) target = $region8
  $region5: #{down_conv_forward.4} parent=0 // loop_body
    %s18 = ssub.s32 %s13, 1
    %s19 = ssub.s32 %s13, 2
    %s20 = sadd.s32 %s13, 1
    %s21 = ssub.s32 %s13, %s20
    %p22 = scmp.eq.s32.totalorder %s21, 0
    %s24 = sadd.s32 %s23, 1
    %s25 = scalar_select %p22, %s23, %s24
    %p28 = pneg %p22
    %p29 = scmp.eq.s32.totalorder %s13, 1
    %p30 = por %p28, %p29
    %p31 = scmp.ne.s32.totalorder %s23, %s26
    %p32 = scmp.eq.s32.totalorder %s13, 0
    %p33 = por %p31, %p32
    %p34 = scmp.ne.s32.totalorder %s23, %s26
    %p35 = scmp.eq.s32.totalorder %s18, 1
    %p36 = por %p34, %p35
    %p37 = scmp.ne.s32.totalorder %s26, %s27
    %p38 = scmp.eq.s32.totalorder %s18, 0
    %p39 = por %p37, %p38
    %p40 = scmp.ne.s32.totalorder %s26, %s27
    %p41 = scmp.eq.s32.totalorder %s19, 1
    %p42 = por %p40, %p41
    %p44 = scmp.ne.s32.totalorder %s27, %s43
    %p45 = scmp.eq.s32.totalorder %s19, 0
    %p46 = por %p44, %p45
    %s48 = sadd.s32 %s47, 1
    %p51 = scmp.eq.s32.totalorder %s13, 1
    %p52 = scmp.ne.s32.totalorder %s47, %s49
    %p53 = scmp.eq.s32.totalorder %s13, 0
    %p54 = por %p52, %p53
    %p55 = scmp.ne.s32.totalorder %s47, %s49
    %p56 = scmp.eq.s32.totalorder %s18, 1
    %p57 = por %p55, %p56
    %p58 = scmp.ne.s32.totalorder %s49, %s50
    %p59 = scmp.eq.s32.totalorder %s18, 0
    %p60 = por %p58, %p59
    %p61 = scmp.ne.s32.totalorder %s49, %s50
    %p62 = scmp.eq.s32.totalorder %s19, 1
    %p63 = por %p61, %p62
    %p65 = scmp.ne.s32.totalorder %s50, %s64
    %p66 = scmp.eq.s32.totalorder %s19, 0
    %p67 = por %p65, %p66
    %s69 = sadd.s32 %s68, 1
    %p72 = scmp.eq.s32.totalorder %s13, 1
    %p73 = scmp.ne.s32.totalorder %s68, %s70
    %p74 = scmp.eq.s32.totalorder %s13, 0
    %p75 = por %p73, %p74
    %p76 = scmp.ne.s32.totalorder %s68, %s70
    %p77 = scmp.eq.s32.totalorder %s18, 1
    %p78 = por %p76, %p77
    %p79 = scmp.ne.s32.totalorder %s70, %s71
    %p80 = scmp.eq.s32.totalorder %s18, 0
    %p81 = por %p79, %p80
    %p82 = scmp.ne.s32.totalorder %s70, %s71
    %p83 = scmp.eq.s32.totalorder %s19, 1
    %p84 = por %p82, %p83
    %p86 = scmp.ne.s32.totalorder %s71, %s85
    %p87 = scmp.eq.s32.totalorder %s19, 0
    %p88 = por %p86, %p87
    %s90 = sadd.s32 %s89, 1
    %p93 = scmp.eq.s32.totalorder %s13, 1
    %p94 = scmp.ne.s32.totalorder %s89, %s91
    %p95 = scmp.eq.s32.totalorder %s13, 0
    %p96 = por %p94, %p95
    %p97 = scmp.ne.s32.totalorder %s89, %s91
    %p98 = scmp.eq.s32.totalorder %s18, 1
    %p99 = por %p97, %p98
    %p100 = scmp.ne.s32.totalorder %s91, %s92
    %p101 = scmp.eq.s32.totalorder %s18, 0
    %p102 = por %p100, %p101
    %p103 = scmp.ne.s32.totalorder %s91, %s92
    %p104 = scmp.eq.s32.totalorder %s19, 1
    %p105 = por %p103, %p104
    %p107 = scmp.ne.s32.totalorder %s92, %s106
    %p108 = scmp.eq.s32.totalorder %s19, 0
    %p109 = por %p107, %p108
    %s111 = sadd.s32 %s110, 1
    %p114 = scmp.eq.s32.totalorder %s13, 1
    %p115 = scmp.ne.s32.totalorder %s110, %s112
    %p116 = scmp.eq.s32.totalorder %s13, 0
    %p117 = por %p115, %p116
    %p118 = scmp.ne.s32.totalorder %s110, %s112
    %p119 = scmp.eq.s32.totalorder %s18, 1
    %p120 = por %p118, %p119
    %p121 = scmp.ne.s32.totalorder %s112, %s113
    %p122 = scmp.eq.s32.totalorder %s18, 0
    %p123 = por %p121, %p122
    %p124 = scmp.ne.s32.totalorder %s112, %s113
    %p125 = scmp.eq.s32.totalorder %s19, 1
    %p126 = por %p124, %p125
    %p128 = scmp.ne.s32.totalorder %s113, %s127
    %p129 = scmp.eq.s32.totalorder %s19, 0
    %p130 = por %p128, %p129
    %s131 = ssub.s32 %s13, %s20
    %p132 = scmp.eq.s32.totalorder %s131, 0
    %s134 = sadd.s32 %s133, 1
    %s135 = scalar_select %p132, %s133, %s134
    %p138 = pneg %p132
    %p139 = scmp.eq.s32.totalorder %s13, 1
    %p140 = por %p138, %p139
    %p141 = scmp.ne.s32.totalorder %s133, %s136
    %p142 = scmp.eq.s32.totalorder %s13, 0
    %p143 = por %p141, %p142
    %p144 = scmp.ne.s32.totalorder %s133, %s136
    %p145 = scmp.eq.s32.totalorder %s18, 1
    %p146 = por %p144, %p145
    %p147 = scmp.ne.s32.totalorder %s136, %s137
    %p148 = scmp.eq.s32.totalorder %s18, 0
    %p149 = por %p147, %p148
    %p150 = scmp.ne.s32.totalorder %s136, %s137
    %p151 = scmp.eq.s32.totalorder %s19, 1
    %p152 = por %p150, %p151
    %p154 = scmp.ne.s32.totalorder %s137, %s153
    %p155 = scmp.eq.s32.totalorder %s19, 0
    %p156 = por %p154, %p155
    %s157 = ssub.s32 %s13, %s20
    %p158 = scmp.eq.s32.totalorder %s157, 0
    %s160 = sadd.s32 %s159, 1
    %s161 = scalar_select %p158, %s159, %s160
    %p164 = pneg %p158
    %p165 = scmp.eq.s32.totalorder %s13, 1
    %p166 = por %p164, %p165
    %p167 = scmp.ne.s32.totalorder %s159, %s162
    %p168 = scmp.eq.s32.totalorder %s13, 0
    %p169 = por %p167, %p168
    %p170 = scmp.ne.s32.totalorder %s159, %s162
    %p171 = scmp.eq.s32.totalorder %s18, 1
    %p172 = por %p170, %p171
    %p173 = scmp.ne.s32.totalorder %s162, %s163
    %p174 = scmp.eq.s32.totalorder %s18, 0
    %p175 = por %p173, %p174
    %p176 = scmp.ne.s32.totalorder %s162, %s163
    %p177 = scmp.eq.s32.totalorder %s19, 1
    %p178 = por %p176, %p177
    %p180 = scmp.ne.s32.totalorder %s163, %s179
    %p181 = scmp.eq.s32.totalorder %s19, 0
    %p182 = por %p180, %p181
    %p183 = scmp.le.s32.totalorder 1, %s13
    %p184 = scmp.lt.s32.totalorder %s13, 3
    %p185 = pnand %p183, %p184
    %p186 = pneg %p185
    // Predicated region
    $region9: #{down_conv_forward.4} parent=5 // pred_check
      _
    $region10: #{down_conv_forward.4} parent=5 // pred_check_branch
      %188 = sbr.rel (%p185) target = $region12
    $region11: #{down_conv_forward.4} parent=5 // pred_region
      %s189 = ssub.s32 %s13, 1
      // Predicated region
      $region13: #{down_conv_forward.4} parent=11 // pred_check
        %p190 = pneg %p60
      $region14: #{down_conv_forward.4} parent=11 // pred_check_branch
        %192 = sbr.rel (%p190) target = $region16
      $region15: #{down_conv_forward.4} parent=11 // pred_region
        _
      $region16: #{down_conv_forward.4} parent=11 // pred_fallthru
        _
      // Predicated region
      $region17: #{down_conv_forward.4} parent=11 // pred_check
        %p193 = pneg %p81
      $region18: #{down_conv_forward.4} parent=11 // pred_check_branch
        %195 = sbr.rel (%p193) target = $region20
      $region19: #{down_conv_forward.4} parent=11 // pred_region
        _
      $region20: #{down_conv_forward.4} parent=11 // pred_fallthru
        _
      // Predicated region
      $region21: #{down_conv_forward.4} parent=11 // pred_check
        %p196 = pneg %p102
      $region22: #{down_conv_forward.4} parent=11 // pred_check_branch
        %198 = sbr.rel (%p196) target = $region24
      $region23: #{down_conv_forward.4} parent=11 // pred_region
        _
      $region24: #{down_conv_forward.4} parent=11 // pred_fallthru
        _
      // Predicated region
      $region25: #{down_conv_forward.4} parent=11 // pred_check
        %p199 = pneg %p123
      $region26: #{down_conv_forward.4} parent=11 // pred_check_branch
        %201 = sbr.rel (%p199) target = $region28
      $region27: #{down_conv_forward.4} parent=11 // pred_region
        _
      $region28: #{down_conv_forward.4} parent=11 // pred_fallthru
        _
    $region12: #{down_conv_forward.4} parent=5 // pred_fallthru
      _
    %p202 = scmp.lt.s32.totalorder %s13, 2
    // Predicated region
    $region29: #{down_conv_forward.4} parent=5 // pred_check
      %p203 = pneg %p202
    $region30: #{down_conv_forward.4} parent=5 // pred_check_branch
      %205 = sbr.rel (%p203) target = $region32
    $region31: #{down_conv_forward.4} parent=5 // pred_region
      // Predicated region
      $region33: #{down_conv_forward.4} parent=31 // pred_check
        %p206 = pneg %p33
      $region34: #{down_conv_forward.4} parent=31 // pred_check_branch
        %208 = sbr.rel (%p206) target = $region36
      $region35: #{down_conv_forward.4} parent=31 // pred_region
        %p209 = scmp.lt.s32.totalorder %s13, 1
        %s210 = scalar_select %p209, %s13, 1
        %s211 = smul.addr %s210, 2
        %s212 = smul.addr %s211, 4
        %s213 = scalar_lea.vmem %s0, %s212
      $region36: #{down_conv_forward.4} parent=31 // pred_fallthru
        _
    $region32: #{down_conv_forward.4} parent=5 // pred_fallthru
      _
    %p214 = scmp.le.s32.totalorder 1, %s13
    %p215 = scmp.lt.s32.totalorder %s13, 3
    %p216 = pnand %p214, %p215
    %p217 = pneg %p216
    // Predicated region
    $region37: #{down_conv_forward.4} parent=5 // pred_check
      _
    $region38: #{down_conv_forward.4} parent=5 // pred_check_branch
      %219 = sbr.rel (%p216) target = $region40
    $region39: #{down_conv_forward.4} parent=5 // pred_region
      %s220 = ssub.s32 %s13, 1
      %p221 = scmp.lt.s32.totalorder %s18, 1
      %s222 = scalar_select %p221, %s18, 1
      %s223 = smul.addr %s222, 2
      %s224 = smul.addr %s223, 4
      %s225 = scalar_lea.vmem %s0, %s224
      %p226 = pneg %p39
      %p227 = pneg %p36
      %p228 = pneg %p60
      %p229 = pneg %p57
      %p230 = pneg %p81
      %p231 = pneg %p78
      %p232 = pneg %p102
      %p233 = pneg %p99
      %p234 = pneg %p123
      %p235 = pneg %p120
      %p236 = pneg %p149
      %p237 = pneg %p146
      %p238 = scmp.lt.s32.totalorder %s18, 1
      %s239 = scalar_select %p238, %s18, 1
      %s240 = smul.addr %s239, 2
      %s241 = smul.addr %s240, 4
      %s242 = scalar_lea.vmem %s5, %s241
      %p243 = pneg %p175
      %p244 = pneg %p172
      %p245 = scmp.lt.s32.totalorder %s18, 1
      %s246 = scalar_select %p245, %s18, 1
      %s247 = smul.addr %s246, 2
      %s248 = scalar_lea.vmem %s6, %s247
      %p249 = scmp.lt.s32.totalorder %s18, 1
      %s250 = scalar_select %p249, %s18, 1
      %s251 = smul.addr %s250, 2
      %s252 = smul.addr %s251, 4
      %s253 = scalar_lea.vmem %s0, %s252
      %p254 = scmp.lt.s32.totalorder %s18, 1
      %s255 = scalar_select %p254, %s18, 1
      %s256 = smul.addr %s255, 2
      %s257 = smul.addr %s256, 4
      %s258 = scalar_lea.vmem %s5, %s257
      %p259 = scmp.lt.s32.totalorder %s18, 1
      %s260 = scalar_select %p259, %s18, 1
      %s261 = smul.addr %s260, 2
      %s262 = scalar_lea.vmem %s6, %s261
      %v264 = vld [vmem:[%s253] sm:$0xf]
      %v265 = vld [vmem:[%s253 + $0x4] sm:$0x7]
      %v266 = vunpack.c.l.bf16 %v264
      %v267 = vunpack.c.l.bf16 %v265
      %v268 = vld [vmem:[%s3] sm:$0x1]
      %v270 = vlaneseq
      %v271 = vshrl.u32 %v270, 7
      %v272 = vsub.s32 0, %v271
      %v273 = vrot.slane %v268, %v272
      %v275 = vmul.f32 %v266, %v273
      %v276 = vmul.f32 %v267, %v273
      %v277 = vld [vmem:[%s4] sm:$0x1]
      %v279 = vlaneseq
      %v280 = vshrl.u32 %v279, 7
      %v281 = vsub.s32 0, %v280
      %v282 = vrot.slane %v277, %v281
      %v284 = vadd.f32 %v275, %v282
      %v285 = vadd.f32 %v276, %v282
      %vm286 = vcmp.gt.f32.partialorder %v284, 0.0
      %vm287 = vcmp.gt.f32.partialorder %v285, 0.0
      %v288 = vmul.f32 %v284, 0.01
      %v289 = vmul.f32 %v285, 0.01
      %v290 = vsel %vm286, %v284, %v288
      %v291 = vsel %vm287, %v285, %v289
      %v292 = vpack.c.bf16 %v291, %v290
      %v293 = vld [vmem:[%s2] sm:$0x1]
      %v295 = vlaneseq
      %v296 = vshrl.u32 %v295, 7
      %v297 = vsub.s32 0, %v296
      %v298 = vrot.slane %v293, %v297
      %300 = vst [vmem:[#allocation2] sm:$0xff] %v298
      %301 = vst [vmem:[#allocation2 + $0x8] sm:$0xf] %v298
      %v302 = vld [vmem:[#allocation2 + $0x1] sm:$0xff]
      %v303 = vld [vmem:[#allocation2 + $0x9] sm:$0x7]
      %v304 = vld [vmem:[%s1] sm:$0xf]
      %v305 = vld [vmem:[%s1 + $0x4] sm:$0xf]
      %v306 = vld [vmem:[%s1 + $0x8] sm:$0xf]
      %v307 = vld [vmem:[%s1 + $0xc] sm:$0xf]
      %v308 = vld [vmem:[%s1 + $0x10] sm:$0xf]
      %v309 = vld [vmem:[%s1 + $0x14] sm:$0xf]
      %v310 = vld [vmem:[%s1 + $0x18] sm:$0xf]
      %v311 = vld [vmem:[%s1 + $0x1c] sm:$0xf]
      %v312 = vld [vmem:[%s1 + $0x20] sm:$0xf]
      %v313 = vld [vmem:[%s1 + $0x24] sm:$0xf]
      %v314 = vld [vmem:[%s1 + $0x28] sm:$0xf]
      %v315 = vld [vmem:[%s1 + $0x2c] sm:$0xf]
      %v316 = vld [vmem:[%s1 + $0x30] sm:$0xf]
      %v317 = vld [vmem:[%s1 + $0x34] sm:$0xf]
      %v318 = vld [vmem:[%s1 + $0x38] sm:$0xf]
      %v319 = vld [vmem:[%s1 + $0x3c] sm:$0xf]
      %v336 = vunpack.c.l.b16 %v304
      %v337 = vunpack.c.l.b16 %v305
      %v338 = vunpack.c.l.b16 %v306
      %v339 = vunpack.c.l.b16 %v307
      %v340 = vunpack.c.l.b16 %v308
      %v341 = vunpack.c.l.b16 %v309
      %v342 = vunpack.c.l.b16 %v310
      %v343 = vunpack.c.l.b16 %v311
      %v344 = vunpack.c.l.b16 %v312
      %v345 = vunpack.c.l.b16 %v313
      %v346 = vunpack.c.l.b16 %v314
      %v347 = vunpack.c.l.b16 %v315
      %v348 = vunpack.c.l.b16 %v316
      %v349 = vunpack.c.l.b16 %v317
      %v350 = vunpack.c.l.b16 %v318
      %v351 = vunpack.c.l.b16 %v319
      %v352 = vpack.c.b16 %v337, %v336
      %v353 = vpack.c.b16 %v339, %v338
      %v354 = vpack.c.b16 %v341, %v340
      %v355 = vpack.c.b16 %v343, %v342
      %v356 = vpack.c.b16 %v345, %v344
      %v357 = vpack.c.b16 %v347, %v346
      %v358 = vpack.c.b16 %v349, %v348
      %v359 = vpack.c.b16 %v351, %v350
      %368 = vmatprep.subr.bf16.mxu0 0
      %369 = vmatpush1.bf16.msra.mxu0 %v352
      %370 = vmatprep.subr.bf16.mxu0 0
      %371 = vmatpush1.bf16.msra.mxu0 %v353
      %372 = vmatprep.subr.bf16.mxu0 0
      %373 = vmatpush1.bf16.msra.mxu0 %v354
      %374 = vmatprep.subr.bf16.mxu0 0
      %375 = vmatpush1.bf16.msra.mxu0 %v355
      %376 = vmatprep.subr.bf16.mxu0 0
      %377 = vmatpush1.bf16.msra.mxu0 %v356
      %378 = vmatprep.subr.bf16.mxu0 0
      %379 = vmatpush1.bf16.msra.mxu0 %v357
      %380 = vmatprep.subr.bf16.mxu0 0
      %381 = vmatpush1.bf16.msra.mxu0 %v358
      %382 = vmatprep.subr.bf16.mxu0 0
      %383 = vmatpush1.bf16.msra.mxu0 %v359
      %384 = vmatprep.subr.bf16.mxu0 0
      %385 = vmatpush1.bf16.msra.mxu0 0
      %386 = vmatprep.subr.bf16.mxu0 0
      %387 = vmatpush1.bf16.msra.mxu0 0
      %388 = vmatprep.subr.bf16.mxu0 0
      %389 = vmatpush1.bf16.msra.mxu0 0
      %390 = vmatprep.subr.bf16.mxu0 0
      %391 = vmatpush1.bf16.msra.mxu0 0
      %392 = vmatprep.subr.bf16.mxu0 0
      %393 = vmatpush1.bf16.msra.mxu0 0
      %394 = vmatprep.subr.bf16.mxu0 0
      %395 = vmatpush1.bf16.msra.mxu0 0
      %396 = vmatprep.subr.bf16.mxu0 0
      %397 = vmatpush1.bf16.msra.mxu0 0
      %398 = vmatprep.subr.bf16.mxu0 0
      %399 = vmatpush1.bf16.msra.mxu0 0
      %400 = vmatprep.mubr.bf16.mxu0 0
      %401 = vmatmul.mubr.bf16.gmra.mrb[0].mxu0 %v292
      %v402 = vpop.f32.mrb[0].mxu0
      %v403 = vadd.f32 0.0, %v402
      %v404 = vpop.f32.mrb[0].mxu0
      %v405 = vpop.f32.mrb[0].mxu0
      %v406 = vadd.f32 0.0, %v405
      %v407 = vpop.f32.mrb[0].mxu0
      %408 = vdwg.mxu0
      %v409 = vadd.f32 %v302, %v403
      %v410 = vadd.f32 %v303, %v406
      %411 = vst [vmem:[#allocation2 + $0x1] sm:$0xff] %v409
      %412 = vst [vmem:[#allocation2 + $0x9] sm:$0x7] %v410
      %v413 = vld [vmem:[#allocation2] sm:$0xff]
      %v414 = vld [vmem:[#allocation2 + $0x8] sm:$0xf]
      %s415 = scalar_lea.vmem %s1, 64
      %v416 = vld [vmem:[%s415] sm:$0xf]
      %v417 = vld [vmem:[%s415 + $0x4] sm:$0xf]
      %v418 = vld [vmem:[%s415 + $0x8] sm:$0xf]
      %v419 = vld [vmem:[%s415 + $0xc] sm:$0xf]
      %v420 = vld [vmem:[%s415 + $0x10] sm:$0xf]
      %v421 = vld [vmem:[%s415 + $0x14] sm:$0xf]
      %v422 = vld [vmem:[%s415 + $0x18] sm:$0xf]
      %v423 = vld [vmem:[%s415 + $0x1c] sm:$0xf]
      %v424 = vld [vmem:[%s415 + $0x20] sm:$0xf]
      %v425 = vld [vmem:[%s415 + $0x24] sm:$0xf]
      %v426 = vld [vmem:[%s415 + $0x28] sm:$0xf]
      %v427 = vld [vmem:[%s415 + $0x2c] sm:$0xf]
      %v428 = vld [vmem:[%s415 + $0x30] sm:$0xf]
      %v429 = vld [vmem:[%s415 + $0x34] sm:$0xf]
      %v430 = vld [vmem:[%s415 + $0x38] sm:$0xf]
      %v431 = vld [vmem:[%s415 + $0x3c] sm:$0xf]
      %v448 = vunpack.c.l.b16 %v416
      %v449 = vunpack.c.l.b16 %v417
      %v450 = vunpack.c.l.b16 %v418
      %v451 = vunpack.c.l.b16 %v419
      %v452 = vunpack.c.l.b16 %v420
      %v453 = vunpack.c.l.b16 %v421
      %v454 = vunpack.c.l.b16 %v422
      %v455 = vunpack.c.l.b16 %v423
      %v456 = vunpack.c.l.b16 %v424
      %v457 = vunpack.c.l.b16 %v425
      %v458 = vunpack.c.l.b16 %v426
      %v459 = vunpack.c.l.b16 %v427
      %v460 = vunpack.c.l.b16 %v428
      %v461 = vunpack.c.l.b16 %v429
      %v462 = vunpack.c.l.b16 %v430
      %v463 = vunpack.c.l.b16 %v431
      %v464 = vpack.c.b16 %v449, %v448
      %v465 = vpack.c.b16 %v451, %v450
      %v466 = vpack.c.b16 %v453, %v452
      %v467 = vpack.c.b16 %v455, %v454
      %v468 = vpack.c.b16 %v457, %v456
      %v469 = vpack.c.b16 %v459, %v458
      %v470 = vpack.c.b16 %v461, %v460
      %v471 = vpack.c.b16 %v463, %v462
      %480 = vmatprep.subr.bf16.mxu0 0
      %481 = vmatpush1.bf16.msra.mxu0 %v464
      %482 = vmatprep.subr.bf16.mxu0 0
      %483 = vmatpush1.bf16.msra.mxu0 %v465
      %484 = vmatprep.subr.bf16.mxu0 0
      %485 = vmatpush1.bf16.msra.mxu0 %v466
      %486 = vmatprep.subr.bf16.mxu0 0
      %487 = vmatpush1.bf16.msra.mxu0 %v467
      %488 = vmatprep.subr.bf16.mxu0 0
      %489 = vmatpush1.bf16.msra.mxu0 %v468
      %490 = vmatprep.subr.bf16.mxu0 0
      %491 = vmatpush1.bf16.msra.mxu0 %v469
      %492 = vmatprep.subr.bf16.mxu0 0
      %493 = vmatpush1.bf16.msra.mxu0 %v470
      %494 = vmatprep.subr.bf16.mxu0 0
      %495 = vmatpush1.bf16.msra.mxu0 %v471
      %496 = vmatprep.subr.bf16.mxu0 0
      %497 = vmatpush1.bf16.msra.mxu0 0
      %498 = vmatprep.subr.bf16.mxu0 0
      %499 = vmatpush1.bf16.msra.mxu0 0
      %500 = vmatprep.subr.bf16.mxu0 0
      %501 = vmatpush1.bf16.msra.mxu0 0
      %502 = vmatprep.subr.bf16.mxu0 0
      %503 = vmatpush1.bf16.msra.mxu0 0
      %504 = vmatprep.subr.bf16.mxu0 0
      %505 = vmatpush1.bf16.msra.mxu0 0
      %506 = vmatprep.subr.bf16.mxu0 0
      %507 = vmatpush1.bf16.msra.mxu0 0
      %508 = vmatprep.subr.bf16.mxu0 0
      %509 = vmatpush1.bf16.msra.mxu0 0
      %510 = vmatprep.subr.bf16.mxu0 0
      %511 = vmatpush1.bf16.msra.mxu0 0
      %512 = vmatprep.mubr.bf16.mxu0 0
      %513 = vmatmul.mubr.bf16.gmra.mrb[0].mxu0 %v292
      %v514 = vpop.f32.mrb[0].mxu0
      %v515 = vadd.f32 0.0, %v514
      %v516 = vpop.f32.mrb[0].mxu0
      %v517 = vpop.f32.mrb[0].mxu0
      %v518 = vadd.f32 0.0, %v517
      %v519 = vpop.f32.mrb[0].mxu0
      %520 = vdwg.mxu0
      %v521 = vadd.f32 %v413, %v515
      %v522 = vadd.f32 %v414, %v518
      %523 = vst [vmem:[#allocation2] sm:$0xff] %v521
      %524 = vst [vmem:[#allocation2 + $0x8] sm:$0xf] %v522
      %v525 = vld [vmem:[#allocation2] sm:$0xff]
      %v526 = vld [vmem:[#allocation2 + $0x8] sm:$0xf]
      %s527 = scalar_lea.vmem %s1, 128
      %v528 = vld [vmem:[%s527] sm:$0xf]
      %v529 = vld [vmem:[%s527 + $0x4] sm:$0xf]
      %v530 = vld [vmem:[%s527 + $0x8] sm:$0xf]
      %v531 = vld [vmem:[%s527 + $0xc] sm:$0xf]
      %v532 = vld [vmem:[%s527 + $0x10] sm:$0xf]
      %v533 = vld [vmem:[%s527 + $0x14] sm:$0xf]
      %v534 = vld [vmem:[%s527 + $0x18] sm:$0xf]
      %v535 = vld [vmem:[%s527 + $0x1c] sm:$0xf]
      %v536 = vld [vmem:[%s527 + $0x20] sm:$0xf]
      %v537 = vld [vmem:[%s527 + $0x24] sm:$0xf]
      %v538 = vld [vmem:[%s527 + $0x28] sm:$0xf]
      %v539 = vld [vmem:[%s527 + $0x2c] sm:$0xf]
      %v540 = vld [vmem:[%s527 + $0x30] sm:$0xf]
      %v541 = vld [vmem:[%s527 + $0x34] sm:$0xf]
      %v542 = vld [vmem:[%s527 + $0x38] sm:$0xf]
      %v543 = vld [vmem:[%s527 + $0x3c] sm:$0xf]
      %v545 = vshrl.u32 %v292, 16
      %v547 = vshll.u32 %v292, 16
      %v549 = vrot.slane %v547, 1
      %v550 = vor.u32 %v545, %v549
      %v568 = vunpack.c.l.b16 %v528
      %v569 = vunpack.c.l.b16 %v529
      %v570 = vunpack.c.l.b16 %v530
      %v571 = vunpack.c.l.b16 %v531
      %v572 = vunpack.c.l.b16 %v532
      %v573 = vunpack.c.l.b16 %v533
      %v574 = vunpack.c.l.b16 %v534
      %v575 = vunpack.c.l.b16 %v535
      %v576 = vunpack.c.l.b16 %v536
      %v577 = vunpack.c.l.b16 %v537
      %v578 = vunpack.c.l.b16 %v538
      %v579 = vunpack.c.l.b16 %v539
      %v580 = vunpack.c.l.b16 %v540
      %v581 = vunpack.c.l.b16 %v541
      %v582 = vunpack.c.l.b16 %v542
      %v583 = vunpack.c.l.b16 %v543
      %v584 = vpack.c.b16 %v569, %v568
      %v585 = vpack.c.b16 %v571, %v570
      %v586 = vpack.c.b16 %v573, %v572
      %v587 = vpack.c.b16 %v575, %v574
      %v588 = vpack.c.b16 %v577, %v576
      %v589 = vpack.c.b16 %v579, %v578
      %v590 = vpack.c.b16 %v581, %v580
      %v591 = vpack.c.b16 %v583, %v582
      %600 = vmatprep.subr.bf16.mxu0 0
      %601 = vmatpush1.bf16.msra.mxu0 %v584
      %602 = vmatprep.subr.bf16.mxu0 0
      %603 = vmatpush1.bf16.msra.mxu0 %v585
      %604 = vmatprep.subr.bf16.mxu0 0
      %605 = vmatpush1.bf16.msra.mxu0 %v586
      %606 = vmatprep.subr.bf16.mxu0 0
      %607 = vmatpush1.bf16.msra.mxu0 %v587
      %608 = vmatprep.subr.bf16.mxu0 0
      %609 = vmatpush1.bf16.msra.mxu0 %v588
      %610 = vmatprep.subr.bf16.mxu0 0
      %611 = vmatpush1.bf16.msra.mxu0 %v589
      %612 = vmatprep.subr.bf16.mxu0 0
      %613 = vmatpush1.bf16.msra.mxu0 %v590
      %614 = vmatprep.subr.bf16.mxu0 0
      %615 = vmatpush1.bf16.msra.mxu0 %v591
      %616 = vmatprep.subr.bf16.mxu0 0
      %617 = vmatpush1.bf16.msra.mxu0 0
      %618 = vmatprep.subr.bf16.mxu0 0
      %619 = vmatpush1.bf16.msra.mxu0 0
      %620 = vmatprep.subr.bf16.mxu0 0
      %621 = vmatpush1.bf16.msra.mxu0 0
      %622 = vmatprep.subr.bf16.mxu0 0
      %623 = vmatpush1.bf16.msra.mxu0 0
      %624 = vmatprep.subr.bf16.mxu0 0
      %625 = vmatpush1.bf16.msra.mxu0 0
      %626 = vmatprep.subr.bf16.mxu0 0
      %627 = vmatpush1.bf16.msra.mxu0 0
      %628 = vmatprep.subr.bf16.mxu0 0
      %629 = vmatpush1.bf16.msra.mxu0 0
      %630 = vmatprep.subr.bf16.mxu0 0
      %631 = vmatpush1.bf16.msra.mxu0 0
      %632 = vmatprep.mubr.bf16.mxu0 0
      %633 = vmatmul.mubr.bf16.gmra.mrb[0].mxu0 %v550
      %v634 = vpop.f32.mrb[0].mxu0
      %v635 = vadd.f32 0.0, %v634
      %v636 = vpop.f32.mrb[0].mxu0
      %v637 = vpop.f32.mrb[0].mxu0
      %v638 = vadd.f32 0.0, %v637
      %v639 = vpop.f32.mrb[0].mxu0
      %640 = vdwg.mxu0
      %v641 = vadd.f32 %v525, %v635
      %v642 = vadd.f32 %v526, %v638
      %643 = vst [vmem:[#allocation2] sm:$0xff] %v641
      %644 = vst [vmem:[#allocation2 + $0x8] sm:$0xf] %v642
      %v645 = vld [vmem:[#allocation2] sm:$0xff]
      %v646 = vld [vmem:[#allocation2 + $0x8] sm:$0xf]
      %s647 = scalar_lea.vmem %s1, 192
      %v648 = vld [vmem:[%s647] sm:$0xf]
      %v649 = vld [vmem:[%s647 + $0x4] sm:$0xf]
      %v650 = vld [vmem:[%s647 + $0x8] sm:$0xf]
      %v651 = vld [vmem:[%s647 + $0xc] sm:$0xf]
      %v652 = vld [vmem:[%s647 + $0x10] sm:$0xf]
      %v653 = vld [vmem:[%s647 + $0x14] sm:$0xf]
      %v654 = vld [vmem:[%s647 + $0x18] sm:$0xf]
      %v655 = vld [vmem:[%s647 + $0x1c] sm:$0xf]
      %v656 = vld [vmem:[%s647 + $0x20] sm:$0xf]
      %v657 = vld [vmem:[%s647 + $0x24] sm:$0xf]
      %v658 = vld [vmem:[%s647 + $0x28] sm:$0xf]
      %v659 = vld [vmem:[%s647 + $0x2c] sm:$0xf]
      %v660 = vld [vmem:[%s647 + $0x30] sm:$0xf]
      %v661 = vld [vmem:[%s647 + $0x34] sm:$0xf]
      %v662 = vld [vmem:[%s647 + $0x38] sm:$0xf]
      %v663 = vld [vmem:[%s647 + $0x3c] sm:$0xf]
      %v665 = vrot.slane %v292, 1
      %v683 = vunpack.c.l.b16 %v648
      %v684 = vunpack.c.l.b16 %v649
      %v685 = vunpack.c.l.b16 %v650
      %v686 = vunpack.c.l.b16 %v651
      %v687 = vunpack.c.l.b16 %v652
      %v688 = vunpack.c.l.b16 %v653
      %v689 = vunpack.c.l.b16 %v654
      %v690 = vunpack.c.l.b16 %v655
      %v691 = vunpack.c.l.b16 %v656
      %v692 = vunpack.c.l.b16 %v657
      %v693 = vunpack.c.l.b16 %v658
      %v694 = vunpack.c.l.b16 %v659
      %v695 = vunpack.c.l.b16 %v660
      %v696 = vunpack.c.l.b16 %v661
      %v697 = vunpack.c.l.b16 %v662
      %v698 = vunpack.c.l.b16 %v663
      %v699 = vpack.c.b16 %v684, %v683
      %v700 = vpack.c.b16 %v686, %v685
      %v701 = vpack.c.b16 %v688, %v687
      %v702 = vpack.c.b16 %v690, %v689
      %v703 = vpack.c.b16 %v692, %v691
      %v704 = vpack.c.b16 %v694, %v693
      %v705 = vpack.c.b16 %v696, %v695
      %v706 = vpack.c.b16 %v698, %v697
      %715 = vmatprep.subr.bf16.mxu0 0
      %716 = vmatpush1.bf16.msra.mxu0 %v699
      %717 = vmatprep.subr.bf16.mxu0 0
      %718 = vmatpush1.bf16.msra.mxu0 %v700
      %719 = vmatprep.subr.bf16.mxu0 0
      %720 = vmatpush1.bf16.msra.mxu0 %v701
      %721 = vmatprep.subr.bf16.mxu0 0
      %722 = vmatpush1.bf16.msra.mxu0 %v702
      %723 = vmatprep.subr.bf16.mxu0 0
      %724 = vmatpush1.bf16.msra.mxu0 %v703
      %725 = vmatprep.subr.bf16.mxu0 0
      %726 = vmatpush1.bf16.msra.mxu0 %v704
      %727 = vmatprep.subr.bf16.mxu0 0
      %728 = vmatpush1.bf16.msra.mxu0 %v705
      %729 = vmatprep.subr.bf16.mxu0 0
      %730 = vmatpush1.bf16.msra.mxu0 %v706
      %731 = vmatprep.subr.bf16.mxu0 0
      %732 = vmatpush1.bf16.msra.mxu0 0
      %733 = vmatprep.subr.bf16.mxu0 0
      %734 = vmatpush1.bf16.msra.mxu0 0
      %735 = vmatprep.subr.bf16.mxu0 0
      %736 = vmatpush1.bf16.msra.mxu0 0
      %737 = vmatprep.subr.bf16.mxu0 0
      %738 = vmatpush1.bf16.msra.mxu0 0
      %739 = vmatprep.subr.bf16.mxu0 0
      %740 = vmatpush1.bf16.msra.mxu0 0
      %741 = vmatprep.subr.bf16.mxu0 0
      %742 = vmatpush1.bf16.msra.mxu0 0
      %743 = vmatprep.subr.bf16.mxu0 0
      %744 = vmatpush1.bf16.msra.mxu0 0
      %745 = vmatprep.subr.bf16.mxu0 0
      %746 = vmatpush1.bf16.msra.mxu0 0
      %747 = vmatprep.mubr.bf16.mxu0 0
      %748 = vmatmul.mubr.bf16.gmra.mrb[0].mxu0 %v665
      %v749 = vpop.f32.mrb[0].mxu0
      %v750 = vadd.f32 0.0, %v749
      %v751 = vpop.f32.mrb[0].mxu0
      %v752 = vpop.f32.mrb[0].mxu0
      %v753 = vadd.f32 0.0, %v752
      %v754 = vpop.f32.mrb[0].mxu0
      %755 = vdwg.mxu0
      %v756 = vadd.f32 %v645, %v750
      %v757 = vadd.f32 %v646, %v753
      %758 = vst [vmem:[#allocation2] sm:$0xff] %v756
      %759 = vst [vmem:[#allocation2 + $0x8] sm:$0xf] %v757
      %v760 = vld [vmem:[#allocation2] sm:$0xff]
      %v761 = vld [vmem:[#allocation2 + $0x8] sm:$0x7]
      %s762 = scalar_lea.vmem %s1, 256
      %v763 = vld [vmem:[%s762] sm:$0xf]
      %v764 = vld [vmem:[%s762 + $0x4] sm:$0xf]
      %v765 = vld [vmem:[%s762 + $0x8] sm:$0xf]
      %v766 = vld [vmem:[%s762 + $0xc] sm:$0xf]
      %v767 = vld [vmem:[%s762 + $0x10] sm:$0xf]
      %v768 = vld [vmem:[%s762 + $0x14] sm:$0xf]
      %v769 = vld [vmem:[%s762 + $0x18] sm:$0xf]
      %v770 = vld [vmem:[%s762 + $0x1c] sm:$0xf]
      %v771 = vld [vmem:[%s762 + $0x20] sm:$0xf]
      %v772 = vld [vmem:[%s762 + $0x24] sm:$0xf]
      %v773 = vld [vmem:[%s762 + $0x28] sm:$0xf]
      %v774 = vld [vmem:[%s762 + $0x2c] sm:$0xf]
      %v775 = vld [vmem:[%s762 + $0x30] sm:$0xf]
      %v776 = vld [vmem:[%s762 + $0x34] sm:$0xf]
      %v777 = vld [vmem:[%s762 + $0x38] sm:$0xf]
      %v778 = vld [vmem:[%s762 + $0x3c] sm:$0xf]
      %v779 = vrot.slane %v545, 1
      %v780 = vrot.slane %v547, 2
      %v781 = vor.u32 %v779, %v780
      %v799 = vunpack.c.l.b16 %v763
      %v800 = vunpack.c.l.b16 %v764
      %v801 = vunpack.c.l.b16 %v765
      %v802 = vunpack.c.l.b16 %v766
      %v803 = vunpack.c.l.b16 %v767
      %v804 = vunpack.c.l.b16 %v768
      %v805 = vunpack.c.l.b16 %v769
      %v806 = vunpack.c.l.b16 %v770
      %v807 = vunpack.c.l.b16 %v771
      %v808 = vunpack.c.l.b16 %v772
      %v809 = vunpack.c.l.b16 %v773
      %v810 = vunpack.c.l.b16 %v774
      %v811 = vunpack.c.l.b16 %v775
      %v812 = vunpack.c.l.b16 %v776
      %v813 = vunpack.c.l.b16 %v777
      %v814 = vunpack.c.l.b16 %v778
      %v815 = vpack.c.b16 %v800, %v799
      %v816 = vpack.c.b16 %v802, %v801
      %v817 = vpack.c.b16 %v804, %v803
      %v818 = vpack.c.b16 %v806, %v805
      %v819 = vpack.c.b16 %v808, %v807
      %v820 = vpack.c.b16 %v810, %v809
      %v821 = vpack.c.b16 %v812, %v811
      %v822 = vpack.c.b16 %v814, %v813
      %831 = vmatprep.subr.bf16.mxu0 0
      %832 = vmatpush1.bf16.msra.mxu0 %v815
      %833 = vmatprep.subr.bf16.mxu0 0
      %834 = vmatpush1.bf16.msra.mxu0 %v816
      %835 = vmatprep.subr.bf16.mxu0 0
      %836 = vmatpush1.bf16.msra.mxu0 %v817
      %837 = vmatprep.subr.bf16.mxu0 0
      %838 = vmatpush1.bf16.msra.mxu0 %v818
      %839 = vmatprep.subr.bf16.mxu0 0
      %840 = vmatpush1.bf16.msra.mxu0 %v819
      %841 = vmatprep.subr.bf16.mxu0 0
      %842 = vmatpush1.bf16.msra.mxu0 %v820
      %843 = vmatprep.subr.bf16.mxu0 0
      %844 = vmatpush1.bf16.msra.mxu0 %v821
      %845 = vmatprep.subr.bf16.mxu0 0
      %846 = vmatpush1.bf16.msra.mxu0 %v822
      %847 = vmatprep.subr.bf16.mxu0 0
      %848 = vmatpush1.bf16.msra.mxu0 0
      %849 = vmatprep.subr.bf16.mxu0 0
      %850 = vmatpush1.bf16.msra.mxu0 0
      %851 = vmatprep.subr.bf16.mxu0 0
      %852 = vmatpush1.bf16.msra.mxu0 0
      %853 = vmatprep.subr.bf16.mxu0 0
      %854 = vmatpush1.bf16.msra.mxu0 0
      %855 = vmatprep.subr.bf16.mxu0 0
      %856 = vmatpush1.bf16.msra.mxu0 0
      %857 = vmatprep.subr.bf16.mxu0 0
      %858 = vmatpush1.bf16.msra.mxu0 0
      %859 = vmatprep.subr.bf16.mxu0 0
      %860 = vmatpush1.bf16.msra.mxu0 0
      %861 = vmatprep.subr.bf16.mxu0 0
      %862 = vmatpush1.bf16.msra.mxu0 0
      %863 = vmatprep.mubr.bf16.mxu0 0
      %864 = vmatmul.mubr.bf16.gmra.mrb[0].mxu0 %v781
      %v865 = vpop.f32.mrb[0].mxu0
      %v866 = vadd.f32 0.0, %v865
      %v867 = vpop.f32.mrb[0].mxu0
      %v868 = vpop.f32.mrb[0].mxu0
      %v869 = vadd.f32 0.0, %v868
      %v870 = vpop.f32.mrb[0].mxu0
      %871 = vdwg.mxu0
      %v872 = vadd.f32 %v760, %v866
      %v873 = vadd.f32 %v761, %v869
      %874 = vst [vmem:[#allocation2] sm:$0xff] %v872
      %875 = vst [vmem:[#allocation2 + $0x8] sm:$0x7] %v873
      %v876 = vld [vmem:[#allocation2] sm:$0xff]
      %v877 = vld [vmem:[#allocation2 + $0x8] sm:$0xf]
      %v878 = vpack.c.bf16 %v877, %v876
      %v880 = vunpack.c.l.b16 %v878
      %v881 = vunpack.c.h.b16 %v878
      %v882 = vpack.c.b16 %v880, %v880
      %v883 = vpack.c.b16 %v881, %v881
      %886 = vst [vmem:[%s258] sm:$0xf] %v882
      %887 = vst [vmem:[%s258 + $0x4] sm:$0x3] %v883
      %vm888 = vcmask 1043456
      %v889 = vsel %vm888, %v877, 0.0
      %v890 = vadd.f32 %v876, %v889
      %v891 = vrot.slane %v890, 4
      %v892 = vadd.f32 %v890, %v891
      %v893 = vrot.slane %v892, 2
      %v894 = vadd.f32 %v892, %v893
      %v895 = vrot.slane %v894, 1
      %v896 = vadd.f32 %v894, %v895
      %v897 = vmul.f32 %v876, %v876
      %v898 = vmul.f32 %v877, %v877
      %v899 = vsel %vm888, %v898, 0.0
      %v900 = vadd.f32 %v897, %v899
      %v901 = vrot.slane %v900, 4
      %v902 = vadd.f32 %v900, %v901
      %v903 = vrot.slane %v902, 2
      %v904 = vadd.f32 %v902, %v903
      %v905 = vrot.slane %v904, 1
      %v906 = vadd.f32 %v904, %v905
      %vm907 = vcmask 1040384
      %v908 = vsel %vm907, %v896, %v906
      %909 = vst [vmem:[%s262] sm:$0x3] %v908
      %p910 = scmp.lt.s32.totalorder %s18, 1
      %s911 = scalar_select %p910, %s18, 1
      %s912 = smul.addr %s911, 2
      %s913 = smul.addr %s912, 4
      %s914 = scalar_lea.vmem %s5, %s913
      %p915 = scmp.lt.s32.totalorder %s18, 1
      %s916 = scalar_select %p915, %s18, 1
      %s917 = smul.addr %s916, 2
      %s918 = scalar_lea.vmem %s6, %s917
      // Predicated region
      $region41: #{down_conv_forward.4} parent=39 // pred_check
        %p919 = pneg %p146
      $region42: #{down_conv_forward.4} parent=39 // pred_check_branch
        %921 = sbr.rel (%p919) target = $region44
      $region43: #{down_conv_forward.4} parent=39 // pred_region
        _
      $region44: #{down_conv_forward.4} parent=39 // pred_fallthru
        _
      // Predicated region
      $region45: #{down_conv_forward.4} parent=39 // pred_check
        %p922 = pneg %p172
      $region46: #{down_conv_forward.4} parent=39 // pred_check_branch
        %924 = sbr.rel (%p922) target = $region48
      $region47: #{down_conv_forward.4} parent=39 // pred_region
        _
      $region48: #{down_conv_forward.4} parent=39 // pred_fallthru
        _
    $region40: #{down_conv_forward.4} parent=5 // pred_fallthru
      _
    %p925 = scmp.le.s32.totalorder 2, %s13
    // Predicated region
    $region49: #{down_conv_forward.4} parent=5 // pred_check
      %p926 = pneg %p925
    $region50: #{down_conv_forward.4} parent=5 // pred_check_branch
      %928 = sbr.rel (%p926) target = $region52
    $region51: #{down_conv_forward.4} parent=5 // pred_region
      %s929 = ssub.s32 %s13, 2
      // Predicated region
      $region53: #{down_conv_forward.4} parent=51 // pred_check
        %p930 = pneg %p152
      $region54: #{down_conv_forward.4} parent=51 // pred_check_branch
        %932 = sbr.rel (%p930) target = $region56
      $region55: #{down_conv_forward.4} parent=51 // pred_region
        %p933 = scmp.lt.s32.totalorder %s19, 1
        %s934 = scalar_select %p933, %s19, 1
        %s935 = smul.addr %s934, 2
        %s936 = smul.addr %s935, 4
        %s937 = scalar_lea.vmem %s5, %s936
      $region56: #{down_conv_forward.4} parent=51 // pred_fallthru
        _
      // Predicated region
      $region57: #{down_conv_forward.4} parent=51 // pred_check
        %p938 = pneg %p178
      $region58: #{down_conv_forward.4} parent=51 // pred_check_branch
        %940 = sbr.rel (%p938) target = $region60
      $region59: #{down_conv_forward.4} parent=51 // pred_region
        %p941 = scmp.lt.s32.totalorder %s19, 1
        %s942 = scalar_select %p941, %s19, 1
        %s943 = smul.addr %s942, 2
        %s944 = scalar_lea.vmem %s6, %s943
      $region60: #{down_conv_forward.4} parent=51 // pred_fallthru
        _
    $region52: #{down_conv_forward.4} parent=5 // pred_fallthru
      _
  $region6: #{down_conv_forward.4} parent=0 // loop_footer
    %s17 = sadd.s32 1, %s13
  $region7: #{down_conv_forward.4} parent=0 // loop_footer_branch
    %12 = sbr.rel target = $region3
  $region8: #{down_conv_forward.4} parent=0 // loop_exit
    _

// kernel: down_conv_forward.5
$region0: #{down_conv_forward.5}
  #allocation0 [shape = 'u32[]', space=smem, size = 0x4, offset = 0x4, fixed_abs, tag = 'smem constant byte address 0x4 - core index']
  #allocation1 [shape = 'u32[144,128]{1,0:T(1,128)}', space=vmem, size = 0x12000, scoped, tag = 'internal scratch']
  %s0 = inlined_call_operand.vmem [shape: bf16[6,512], index: 0, kind: input, shape index: {}]
  %s1 = inlined_call_operand.vmem [shape: f32[1,512], index: 1, kind: input, shape index: {}]
  %s2 = inlined_call_operand.vmem [shape: f32[1,512], index: 2, kind: input, shape index: {}]
  %s3 = inlined_call_operand.vmem [shape: f32[256,128], index: 3, kind: input, shape index: {}]
  %s4 = inlined_call_operand.vmem [shape: f32[256,128], index: 4, kind: input, shape index: {}]
  %s5 = inlined_call_operand.vmem [shape: f32[6,128], index: 5, kind: output, shape index: {}]
  %s6 = sld [smem:[#allocation0]]
  $region30: #{down_conv_forward.5} parent=0
    _
  %s8 = ssub.s32 1, %s6
  %s9 = scalar_select 0, %s8, %s6
  // Predicated region
  $region2: #{down_conv_forward.5} parent=0 // pred_check
    _
  $region3: #{down_conv_forward.5} parent=0 // pred_check_branch
    %11 = sbr.rel (0) target = $region5
  $region4: #{down_conv_forward.5} parent=0 // pred_region
    _
  $region5: #{down_conv_forward.5} parent=0 // pred_fallthru
    _
  // Predicated region
  $region6: #{down_conv_forward.5} parent=0 // pred_check
    _
  $region7: #{down_conv_forward.5} parent=0 // pred_check_branch
    %13 = sbr.rel (0) target = $region9
  $region8: #{down_conv_forward.5} parent=0 // pred_region
    _
  $region9: #{down_conv_forward.5} parent=0 // pred_fallthru
    _
  // Predicated region
  $region10: #{down_conv_forward.5} parent=0 // pred_check
    _
  $region11: #{down_conv_forward.5} parent=0 // pred_check_branch
    %15 = sbr.rel (0) target = $region13
  $region12: #{down_conv_forward.5} parent=0 // pred_region
    _
  $region13: #{down_conv_forward.5} parent=0 // pred_fallthru
    _
  // Predicated region
  $region14: #{down_conv_forward.5} parent=0 // pred_check
    _
  $region15: #{down_conv_forward.5} parent=0 // pred_check_branch
    %17 = sbr.rel (0) target = $region17
  $region16: #{down_conv_forward.5} parent=0 // pred_region
    _
  $region17: #{down_conv_forward.5} parent=0 // pred_fallthru
    _
  // Predicated region
  $region18: #{down_conv_forward.5} parent=0 // pred_check
    _
  $region19: #{down_conv_forward.5} parent=0 // pred_check_branch
    %19 = sbr.rel (0) target = $region21
  $region20: #{down_conv_forward.5} parent=0 // pred_region
    _
  $region21: #{down_conv_forward.5} parent=0 // pred_fallthru
    _
  %v20 = vld [vmem:[%s0] sm:$0x77]
  %v21 = vld [vmem:[%s0 + $0x8] sm:$0x77]
  %v22 = vunpack.c.l.bf16 %v20
  %v23 = vunpack.c.h.bf16 %v20
  %v24 = vunpack.c.l.bf16 %v21
  %v25 = vunpack.c.h.bf16 %v21
  %v26 = vld [vmem:[%s1] sm:$0xf]
  %v28 = vlaneseq
  %v29 = vshrl.u32 %v28, 7
  %v30 = vsub.s32 0, %v29
  %v31 = vrot.slane %v26, %v30
  %v32 = vlaneseq
  %v33 = vshrl.u32 %v32, 7
  %v34 = vsub.s32 1, %v33
  %v35 = vrot.slane %v26, %v34
  %v36 = vlaneseq
  %v37 = vshrl.u32 %v36, 7
  %v38 = vsub.s32 2, %v37
  %v39 = vrot.slane %v26, %v38
  %v40 = vlaneseq
  %v41 = vshrl.u32 %v40, 7
  %v42 = vsub.s32 3, %v41
  %v43 = vrot.slane %v26, %v42
  %v48 = vmul.f32 %v22, %v31
  %v49 = vmul.f32 %v23, %v35
  %v50 = vmul.f32 %v24, %v39
  %v51 = vmul.f32 %v25, %v43
  %v52 = vld [vmem:[%s2] sm:$0xf]
  %v54 = vlaneseq
  %v55 = vshrl.u32 %v54, 7
  %v56 = vsub.s32 0, %v55
  %v57 = vrot.slane %v52, %v56
  %v58 = vlaneseq
  %v59 = vshrl.u32 %v58, 7
  %v60 = vsub.s32 1, %v59
  %v61 = vrot.slane %v52, %v60
  %v62 = vlaneseq
  %v63 = vshrl.u32 %v62, 7
  %v64 = vsub.s32 2, %v63
  %v65 = vrot.slane %v52, %v64
  %v66 = vlaneseq
  %v67 = vshrl.u32 %v66, 7
  %v68 = vsub.s32 3, %v67
  %v69 = vrot.slane %v52, %v68
  %v74 = vadd.f32 %v48, %v57
  %v75 = vadd.f32 %v49, %v61
  %v76 = vadd.f32 %v50, %v65
  %v77 = vadd.f32 %v51, %v69
  %vm78 = vcmp.gt.f32.partialorder %v74, 0.0
  %vm79 = vcmp.gt.f32.partialorder %v75, 0.0
  %vm80 = vcmp.gt.f32.partialorder %v76, 0.0
  %vm81 = vcmp.gt.f32.partialorder %v77, 0.0
  %v82 = vmul.f32 %v74, 0.01
  %v83 = vmul.f32 %v75, 0.01
  %v84 = vmul.f32 %v76, 0.01
  %v85 = vmul.f32 %v77, 0.01
  %v86 = vsel %vm78, %v74, %v82
  %v87 = vsel %vm79, %v75, %v83
  %v88 = vsel %vm80, %v76, %v84
  %v89 = vsel %vm81, %v77, %v85
  %v90 = vmax.f32 %v86, %v87
  %v91 = vmax.f32 %v88, %v89
  %v92 = vld [vmem:[%s3] sm:$0xff]
  %v93 = vld [vmem:[%s3 + $0x8] sm:$0xff]
  %v94 = vld [vmem:[%s3 + $0x10] sm:$0xff]
  %v95 = vld [vmem:[%s3 + $0x18] sm:$0xff]
  %v96 = vld [vmem:[%s3 + $0x20] sm:$0xff]
  %v97 = vld [vmem:[%s3 + $0x28] sm:$0xff]
  %v98 = vld [vmem:[%s3 + $0x30] sm:$0xff]
  %v99 = vld [vmem:[%s3 + $0x38] sm:$0xff]
  %v100 = vld [vmem:[%s3 + $0x40] sm:$0xff]
  %v101 = vld [vmem:[%s3 + $0x48] sm:$0xff]
  %v102 = vld [vmem:[%s3 + $0x50] sm:$0xff]
  %v103 = vld [vmem:[%s3 + $0x58] sm:$0xff]
  %v104 = vld [vmem:[%s3 + $0x60] sm:$0xff]
  %v105 = vld [vmem:[%s3 + $0x68] sm:$0xff]
  %v106 = vld [vmem:[%s3 + $0x70] sm:$0xff]
  %v107 = vld [vmem:[%s3 + $0x78] sm:$0xff]
  %v108 = vld [vmem:[%s3 + $0x80] sm:$0xff]
  %v109 = vld [vmem:[%s3 + $0x88] sm:$0xff]
  %v110 = vld [vmem:[%s3 + $0x90] sm:$0xff]
  %v111 = vld [vmem:[%s3 + $0x98] sm:$0xff]
  %v112 = vld [vmem:[%s3 + $0xa0] sm:$0xff]
  %v113 = vld [vmem:[%s3 + $0xa8] sm:$0xff]
  %v114 = vld [vmem:[%s3 + $0xb0] sm:$0xff]
  %v115 = vld [vmem:[%s3 + $0xb8] sm:$0xff]
  %v116 = vld [vmem:[%s3 + $0xc0] sm:$0xff]
  %v117 = vld [vmem:[%s3 + $0xc8] sm:$0xff]
  %v118 = vld [vmem:[%s3 + $0xd0] sm:$0xff]
  %v119 = vld [vmem:[%s3 + $0xd8] sm:$0xff]
  %v120 = vld [vmem:[%s3 + $0xe0] sm:$0xff]
  %v121 = vld [vmem:[%s3 + $0xe8] sm:$0xff]
  %v122 = vld [vmem:[%s3 + $0xf0] sm:$0xff]
  %v123 = vld [vmem:[%s3 + $0xf8] sm:$0xff]
  %124 = vmatprep.subr.mxu0 0.0
  %v125 = vand.u32 %v92, 4294901760
  %126 = vmatpush1.msra.mxu0 %v125
  %127 = vmatprep.subr.mxu0 0.0
  %v128 = vand.u32 %v93, 4294901760
  %129 = vmatpush1.msra.mxu0 %v128
  %130 = vmatprep.subr.mxu0 0.0
  %v131 = vand.u32 %v94, 4294901760
  %132 = vmatpush1.msra.mxu0 %v131
  %133 = vmatprep.subr.mxu0 0.0
  %v134 = vand.u32 %v95, 4294901760
  %135 = vmatpush1.msra.mxu0 %v134
  %136 = vmatprep.subr.mxu0 0.0
  %v137 = vand.u32 %v96, 4294901760
  %138 = vmatpush1.msra.mxu0 %v137
  %139 = vmatprep.subr.mxu0 0.0
  %v140 = vand.u32 %v97, 4294901760
  %141 = vmatpush1.msra.mxu0 %v140
  %142 = vmatprep.subr.mxu0 0.0
  %v143 = vand.u32 %v98, 4294901760
  %144 = vmatpush1.msra.mxu0 %v143
  %145 = vmatprep.subr.mxu0 0.0
  %v146 = vand.u32 %v99, 4294901760
  %147 = vmatpush1.msra.mxu0 %v146
  %148 = vmatprep.subr.mxu0 0.0
  %v149 = vand.u32 %v100, 4294901760
  %150 = vmatpush1.msra.mxu0 %v149
  %151 = vmatprep.subr.mxu0 0.0
  %v152 = vand.u32 %v101, 4294901760
  %153 = vmatpush1.msra.mxu0 %v152
  %154 = vmatprep.subr.mxu0 0.0
  %v155 = vand.u32 %v102, 4294901760
  %156 = vmatpush1.msra.mxu0 %v155
  %157 = vmatprep.subr.mxu0 0.0
  %v158 = vand.u32 %v103, 4294901760
  %159 = vmatpush1.msra.mxu0 %v158
  %160 = vmatprep.subr.mxu0 0.0
  %v161 = vand.u32 %v104, 4294901760
  %162 = vmatpush1.msra.mxu0 %v161
  %163 = vmatprep.subr.mxu0 0.0
  %v164 = vand.u32 %v105, 4294901760
  %165 = vmatpush1.msra.mxu0 %v164
  %166 = vmatprep.subr.mxu0 0.0
  %v167 = vand.u32 %v106, 4294901760
  %168 = vmatpush1.msra.mxu0 %v167
  %169 = vmatprep.subr.mxu0 0.0
  %v170 = vand.u32 %v107, 4294901760
  %171 = vmatpush1.msra.mxu0 %v170
  %172 = vmatprep.subr.mxu0 0.0
  %v173 = vand.u32 %v108, 4294901760
  %174 = vmatpush1.msra.mxu0 %v173
  %175 = vmatprep.subr.mxu0 0.0
  %v176 = vand.u32 %v109, 4294901760
  %177 = vmatpush1.msra.mxu0 %v176
  %178 = vmatprep.subr.mxu0 0.0
  %v179 = vand.u32 %v110, 4294901760
  %180 = vmatpush1.msra.mxu0 %v179
  %181 = vmatprep.subr.mxu0 0.0
  %v182 = vand.u32 %v111, 4294901760
  %183 = vmatpush1.msra.mxu0 %v182
  %184 = vmatprep.subr.mxu0 0.0
  %v185 = vand.u32 %v112, 4294901760
  %186 = vmatpush1.msra.mxu0 %v185
  %187 = vmatprep.subr.mxu0 0.0
  %v188 = vand.u32 %v113, 4294901760
  %189 = vmatpush1.msra.mxu0 %v188
  %190 = vmatprep.subr.mxu0 0.0
  %v191 = vand.u32 %v114, 4294901760
  %192 = vmatpush1.msra.mxu0 %v191
  %193 = vmatprep.subr.mxu0 0.0
  %v194 = vand.u32 %v115, 4294901760
  %195 = vmatpush1.msra.mxu0 %v194
  %196 = vmatprep.subr.mxu0 0.0
  %v197 = vand.u32 %v116, 4294901760
  %198 = vmatpush1.msra.mxu0 %v197
  %199 = vmatprep.subr.mxu0 0.0
  %v200 = vand.u32 %v117, 4294901760
  %201 = vmatpush1.msra.mxu0 %v200
  %202 = vmatprep.subr.mxu0 0.0
  %v203 = vand.u32 %v118, 4294901760
  %204 = vmatpush1.msra.mxu0 %v203
  %205 = vmatprep.subr.mxu0 0.0
  %v206 = vand.u32 %v119, 4294901760
  %207 = vmatpush1.msra.mxu0 %v206
  %208 = vmatprep.subr.mxu0 0.0
  %v209 = vand.u32 %v120, 4294901760
  %210 = vmatpush1.msra.mxu0 %v209
  %211 = vmatprep.subr.mxu0 0.0
  %v212 = vand.u32 %v121, 4294901760
  %213 = vmatpush1.msra.mxu0 %v212
  %214 = vmatprep.subr.mxu0 0.0
  %v215 = vand.u32 %v122, 4294901760
  %216 = vmatpush1.msra.mxu0 %v215
  %217 = vmatprep.subr.mxu0 0.0
  %v218 = vand.u32 %v123, 4294901760
  %219 = vmatpush1.msra.mxu0 %v218
  %v220 = vand.u32 %v91, 4294901760
  %v221 = vsub.f32 %v91, %v220
  %v222 = vand.u32 %v221, 4294901760
  %v223 = vsub.f32 %v221, %v222
  %v224 = vand.u32 %v223, 4294901760
  %225 = vmatprep.mubr.f32.mxu0 %v224
  %v226 = vand.u32 %v90, 4294901760
  %v227 = vsub.f32 %v90, %v226
  %v228 = vand.u32 %v227, 4294901760
  %v229 = vsub.f32 %v227, %v228
  %v230 = vand.u32 %v229, 4294901760
  %231 = vmatmul.mubr.f32.gmra.mrb[0].mxu0 %v230
  %v232 = vpop.f32.mrb[0].mxu0
  %v233 = vadd.f32 0.0, %v232
  %v234 = vpop.f32.mrb[0].mxu0
  %235 = vdwg.mxu0
  %236 = vmatprep.subr.mxu0 0.0
  %v237 = vand.u32 %v92, 4294901760
  %v238 = vsub.f32 %v92, %v237
  %v239 = vand.u32 %v238, 4294901760
  %v240 = vsub.f32 %v238, %v239
  %v241 = vand.u32 %v240, 4294901760
  %242 = vmatpush1.msra.mxu0 %v241
  %243 = vmatprep.subr.mxu0 0.0
  %v244 = vand.u32 %v93, 4294901760
  %v245 = vsub.f32 %v93, %v244
  %v246 = vand.u32 %v245, 4294901760
  %v247 = vsub.f32 %v245, %v246
  %v248 = vand.u32 %v247, 4294901760
  %249 = vmatpush1.msra.mxu0 %v248
  %250 = vmatprep.subr.mxu0 0.0
  %v251 = vand.u32 %v94, 4294901760
  %v252 = vsub.f32 %v94, %v251
  %v253 = vand.u32 %v252, 4294901760
  %v254 = vsub.f32 %v252, %v253
  %v255 = vand.u32 %v254, 4294901760
  %256 = vmatpush1.msra.mxu0 %v255
  %257 = vmatprep.subr.mxu0 0.0
  %v258 = vand.u32 %v95, 4294901760
  %v259 = vsub.f32 %v95, %v258
  %v260 = vand.u32 %v259, 4294901760
  %v261 = vsub.f32 %v259, %v260
  %v262 = vand.u32 %v261, 4294901760
  %263 = vmatpush1.msra.mxu0 %v262
  %264 = vmatprep.subr.mxu0 0.0
  %v265 = vand.u32 %v96, 4294901760
  %v266 = vsub.f32 %v96, %v265
  %v267 = vand.u32 %v266, 4294901760
  %v268 = vsub.f32 %v266, %v267
  %v269 = vand.u32 %v268, 4294901760
  %270 = vmatpush1.msra.mxu0 %v269
  %271 = vmatprep.subr.mxu0 0.0
  %v272 = vand.u32 %v97, 4294901760
  %v273 = vsub.f32 %v97, %v272
  %v274 = vand.u32 %v273, 4294901760
  %v275 = vsub.f32 %v273, %v274
  %v276 = vand.u32 %v275, 4294901760
  %277 = vmatpush1.msra.mxu0 %v276
  %278 = vmatprep.subr.mxu0 0.0
  %v279 = vand.u32 %v98, 4294901760
  %v280 = vsub.f32 %v98, %v279
  %v281 = vand.u32 %v280, 4294901760
  %v282 = vsub.f32 %v280, %v281
  %v283 = vand.u32 %v282, 4294901760
  %284 = vmatpush1.msra.mxu0 %v283
  %285 = vmatprep.subr.mxu0 0.0
  %v286 = vand.u32 %v99, 4294901760
  %v287 = vsub.f32 %v99, %v286
  %v288 = vand.u32 %v287, 4294901760
  %v289 = vsub.f32 %v287, %v288
  %v290 = vand.u32 %v289, 4294901760
  %291 = vmatpush1.msra.mxu0 %v290
  %292 = vmatprep.subr.mxu0 0.0
  %v293 = vand.u32 %v100, 4294901760
  %v294 = vsub.f32 %v100, %v293
  %v295 = vand.u32 %v294, 4294901760
  %v296 = vsub.f32 %v294, %v295
  %v297 = vand.u32 %v296, 4294901760
  %298 = vmatpush1.msra.mxu0 %v297
  %299 = vmatprep.subr.mxu0 0.0
  %v300 = vand.u32 %v101, 4294901760
  %v301 = vsub.f32 %v101, %v300
  %v302 = vand.u32 %v301, 4294901760
  %v303 = vsub.f32 %v301, %v302
  %v304 = vand.u32 %v303, 4294901760
  %305 = vmatpush1.msra.mxu0 %v304
  %306 = vmatprep.subr.mxu0 0.0
  %v307 = vand.u32 %v102, 4294901760
  %v308 = vsub.f32 %v102, %v307
  %v309 = vand.u32 %v308, 4294901760
  %v310 = vsub.f32 %v308, %v309
  %v311 = vand.u32 %v310, 4294901760
  %312 = vmatpush1.msra.mxu0 %v311
  %313 = vmatprep.subr.mxu0 0.0
  %v314 = vand.u32 %v103, 4294901760
  %v315 = vsub.f32 %v103, %v314
  %v316 = vand.u32 %v315, 4294901760
  %v317 = vsub.f32 %v315, %v316
  %v318 = vand.u32 %v317, 4294901760
  %319 = vmatpush1.msra.mxu0 %v318
  %320 = vmatprep.subr.mxu0 0.0
  %v321 = vand.u32 %v104, 4294901760
  %v322 = vsub.f32 %v104, %v321
  %v323 = vand.u32 %v322, 4294901760
  %v324 = vsub.f32 %v322, %v323
  %v325 = vand.u32 %v324, 4294901760
  %326 = vmatpush1.msra.mxu0 %v325
  %327 = vmatprep.subr.mxu0 0.0
  %v328 = vand.u32 %v105, 4294901760
  %v329 = vsub.f32 %v105, %v328
  %v330 = vand.u32 %v329, 4294901760
  %v331 = vsub.f32 %v329, %v330
  %v332 = vand.u32 %v331, 4294901760
  %333 = vmatpush1.msra.mxu0 %v332
  %334 = vmatprep.subr.mxu0 0.0
  %v335 = vand.u32 %v106, 4294901760
  %v336 = vsub.f32 %v106, %v335
  %v337 = vand.u32 %v336, 4294901760
  %v338 = vsub.f32 %v336, %v337
  %v339 = vand.u32 %v338, 4294901760
  %340 = vmatpush1.msra.mxu0 %v339
  %341 = vmatprep.subr.mxu0 0.0
  %v342 = vand.u32 %v107, 4294901760
  %v343 = vsub.f32 %v107, %v342
  %v344 = vand.u32 %v343, 4294901760
  %v345 = vsub.f32 %v343, %v344
  %v346 = vand.u32 %v345, 4294901760
  %347 = vmatpush1.msra.mxu0 %v346
  %348 = vmatprep.subr.mxu0 0.0
  %v349 = vand.u32 %v108, 4294901760
  %v350 = vsub.f32 %v108, %v349
  %v351 = vand.u32 %v350, 4294901760
  %v352 = vsub.f32 %v350, %v351
  %v353 = vand.u32 %v352, 4294901760
  %354 = vmatpush1.msra.mxu0 %v353
  %355 = vmatprep.subr.mxu0 0.0
  %v356 = vand.u32 %v109, 4294901760
  %v357 = vsub.f32 %v109, %v356
  %v358 = vand.u32 %v357, 4294901760
  %v359 = vsub.f32 %v357, %v358
  %v360 = vand.u32 %v359, 4294901760
  %361 = vmatpush1.msra.mxu0 %v360
  %362 = vmatprep.subr.mxu0 0.0
  %v363 = vand.u32 %v110, 4294901760
  %v364 = vsub.f32 %v110, %v363
  %v365 = vand.u32 %v364, 4294901760
  %v366 = vsub.f32 %v364, %v365
  %v367 = vand.u32 %v366, 4294901760
  %368 = vmatpush1.msra.mxu0 %v367
  %369 = vmatprep.subr.mxu0 0.0
  %v370 = vand.u32 %v111, 4294901760
  %v371 = vsub.f32 %v111, %v370
  %v372 = vand.u32 %v371, 4294901760
  %v373 = vsub.f32 %v371, %v372
  %v374 = vand.u32 %v373, 4294901760
  %375 = vmatpush1.msra.mxu0 %v374
  %376 = vmatprep.subr.mxu0 0.0
  %v377 = vand.u32 %v112, 4294901760
  %v378 = vsub.f32 %v112, %v377
  %v379 = vand.u32 %v378, 4294901760
  %v380 = vsub.f32 %v378, %v379
  %v381 = vand.u32 %v380, 4294901760
  %382 = vmatpush1.msra.mxu0 %v381
  %383 = vmatprep.subr.mxu0 0.0
  %v384 = vand.u32 %v113, 4294901760
  %v385 = vsub.f32 %v113, %v384
  %v386 = vand.u32 %v385, 4294901760
  %v387 = vsub.f32 %v385, %v386
  %v388 = vand.u32 %v387, 4294901760
  %389 = vmatpush1.msra.mxu0 %v388
  %390 = vmatprep.subr.mxu0 0.0
  %v391 = vand.u32 %v114, 4294901760
  %v392 = vsub.f32 %v114, %v391
  %v393 = vand.u32 %v392, 4294901760
  %v394 = vsub.f32 %v392, %v393
  %v395 = vand.u32 %v394, 4294901760
  %396 = vmatpush1.msra.mxu0 %v395
  %397 = vmatprep.subr.mxu0 0.0
  %v398 = vand.u32 %v115, 4294901760
  %v399 = vsub.f32 %v115, %v398
  %v400 = vand.u32 %v399, 4294901760
  %v401 = vsub.f32 %v399, %v400
  %v402 = vand.u32 %v401, 4294901760
  %403 = vmatpush1.msra.mxu0 %v402
  %404 = vmatprep.subr.mxu0 0.0
  %v405 = vand.u32 %v116, 4294901760
  %v406 = vsub.f32 %v116, %v405
  %v407 = vand.u32 %v406, 4294901760
  %v408 = vsub.f32 %v406, %v407
  %v409 = vand.u32 %v408, 4294901760
  %410 = vmatpush1.msra.mxu0 %v409
  %411 = vmatprep.subr.mxu0 0.0
  %v412 = vand.u32 %v117, 4294901760
  %v413 = vsub.f32 %v117, %v412
  %v414 = vand.u32 %v413, 4294901760
  %v415 = vsub.f32 %v413, %v414
  %v416 = vand.u32 %v415, 4294901760
  %417 = vmatpush1.msra.mxu0 %v416
  %418 = vmatprep.subr.mxu0 0.0
  %v419 = vand.u32 %v118, 4294901760
  %v420 = vsub.f32 %v118, %v419
  %v421 = vand.u32 %v420, 4294901760
  %v422 = vsub.f32 %v420, %v421
  %v423 = vand.u32 %v422, 4294901760
  %424 = vmatpush1.msra.mxu0 %v423
  %425 = vmatprep.subr.mxu0 0.0
  %v426 = vand.u32 %v119, 4294901760
  %v427 = vsub.f32 %v119, %v426
  %v428 = vand.u32 %v427, 4294901760
  %v429 = vsub.f32 %v427, %v428
  %v430 = vand.u32 %v429, 4294901760
  %431 = vmatpush1.msra.mxu0 %v430
  %432 = vmatprep.subr.mxu0 0.0
  %v433 = vand.u32 %v120, 4294901760
  %v434 = vsub.f32 %v120, %v433
  %v435 = vand.u32 %v434, 4294901760
  %v436 = vsub.f32 %v434, %v435
  %v437 = vand.u32 %v436, 4294901760
  %438 = vmatpush1.msra.mxu0 %v437
  %439 = vmatprep.subr.mxu0 0.0
  %v440 = vand.u32 %v121, 4294901760
  %v441 = vsub.f32 %v121, %v440
  %v442 = vand.u32 %v441, 4294901760
  %v443 = vsub.f32 %v441, %v442
  %v444 = vand.u32 %v443, 4294901760
  %445 = vmatpush1.msra.mxu0 %v444
  %446 = vmatprep.subr.mxu0 0.0
  %v447 = vand.u32 %v122, 4294901760
  %v448 = vsub.f32 %v122, %v447
  %v449 = vand.u32 %v448, 4294901760
  %v450 = vsub.f32 %v448, %v449
  %v451 = vand.u32 %v450, 4294901760
  %452 = vmatpush1.msra.mxu0 %v451
  %453 = vmatprep.subr.mxu0 0.0
  %v454 = vand.u32 %v123, 4294901760
  %v455 = vsub.f32 %v123, %v454
  %v456 = vand.u32 %v455, 4294901760
  %v457 = vsub.f32 %v455, %v456
  %v458 = vand.u32 %v457, 4294901760
  %459 = vmatpush1.msra.mxu0 %v458
  %v460 = vand.u32 %v91, 4294901760
  %461 = vmatprep.mubr.f32.mxu0 %v460
  %v462 = vand.u32 %v90, 4294901760
  %463 = vmatmul.mubr.f32.gmra.mrb[0].mxu0 %v462
  %v464 = vpop.f32.mrb[0].mxu0
  %v465 = vadd.f32 %v233, %v464
  %v466 = vpop.f32.mrb[0].mxu0
  %467 = vdwg.mxu0
  %468 = vmatprep.subr.mxu0 0.0
  %v469 = vand.u32 %v92, 4294901760
  %v470 = vsub.f32 %v92, %v469
  %471 = vmatpush1.msra.mxu0 %v470
  %472 = vmatprep.subr.mxu0 0.0
  %v473 = vand.u32 %v93, 4294901760
  %v474 = vsub.f32 %v93, %v473
  %475 = vmatpush1.msra.mxu0 %v474
  %476 = vmatprep.subr.mxu0 0.0
  %v477 = vand.u32 %v94, 4294901760
  %v478 = vsub.f32 %v94, %v477
  %479 = vmatpush1.msra.mxu0 %v478
  %480 = vmatprep.subr.mxu0 0.0
  %v481 = vand.u32 %v95, 4294901760
  %v482 = vsub.f32 %v95, %v481
  %483 = vmatpush1.msra.mxu0 %v482
  %484 = vmatprep.subr.mxu0 0.0
  %v485 = vand.u32 %v96, 4294901760
  %v486 = vsub.f32 %v96, %v485
  %487 = vmatpush1.msra.mxu0 %v486
  %488 = vmatprep.subr.mxu0 0.0
  %v489 = vand.u32 %v97, 4294901760
  %v490 = vsub.f32 %v97, %v489
  %491 = vmatpush1.msra.mxu0 %v490
  %492 = vmatprep.subr.mxu0 0.0
  %v493 = vand.u32 %v98, 4294901760
  %v494 = vsub.f32 %v98, %v493
  %495 = vmatpush1.msra.mxu0 %v494
  %496 = vmatprep.subr.mxu0 0.0
  %v497 = vand.u32 %v99, 4294901760
  %v498 = vsub.f32 %v99, %v497
  %499 = vmatpush1.msra.mxu0 %v498
  %500 = vmatprep.subr.mxu0 0.0
  %v501 = vand.u32 %v100, 4294901760
  %v502 = vsub.f32 %v100, %v501
  %503 = vmatpush1.msra.mxu0 %v502
  %504 = vmatprep.subr.mxu0 0.0
  %v505 = vand.u32 %v101, 4294901760
  %v506 = vsub.f32 %v101, %v505
  %507 = vmatpush1.msra.mxu0 %v506
  %508 = vmatprep.subr.mxu0 0.0
  %v509 = vand.u32 %v102, 4294901760
  %v510 = vsub.f32 %v102, %v509
  %511 = vmatpush1.msra.mxu0 %v510
  %512 = vmatprep.subr.mxu0 0.0
  %v513 = vand.u32 %v103, 4294901760
  %v514 = vsub.f32 %v103, %v513
  %515 = vmatpush1.msra.mxu0 %v514
  %516 = vmatprep.subr.mxu0 0.0
  %v517 = vand.u32 %v104, 4294901760
  %v518 = vsub.f32 %v104, %v517
  %519 = vmatpush1.msra.mxu0 %v518
  %520 = vmatprep.subr.mxu0 0.0
  %v521 = vand.u32 %v105, 4294901760
  %v522 = vsub.f32 %v105, %v521
  %523 = vmatpush1.msra.mxu0 %v522
  %524 = vmatprep.subr.mxu0 0.0
  %v525 = vand.u32 %v106, 4294901760
  %v526 = vsub.f32 %v106, %v525
  %527 = vmatpush1.msra.mxu0 %v526
  %528 = vmatprep.subr.mxu0 0.0
  %v529 = vand.u32 %v107, 4294901760
  %v530 = vsub.f32 %v107, %v529
  %531 = vmatpush1.msra.mxu0 %v530
  %532 = vmatprep.subr.mxu0 0.0
  %v533 = vand.u32 %v108, 4294901760
  %v534 = vsub.f32 %v108, %v533
  %535 = vmatpush1.msra.mxu0 %v534
  %536 = vmatprep.subr.mxu0 0.0
  %v537 = vand.u32 %v109, 4294901760
  %v538 = vsub.f32 %v109, %v537
  %539 = vmatpush1.msra.mxu0 %v538
  %540 = vmatprep.subr.mxu0 0.0
  %v541 = vand.u32 %v110, 4294901760
  %v542 = vsub.f32 %v110, %v541
  %543 = vmatpush1.msra.mxu0 %v542
  %544 = vmatprep.subr.mxu0 0.0
  %v545 = vand.u32 %v111, 4294901760
  %v546 = vsub.f32 %v111, %v545
  %547 = vmatpush1.msra.mxu0 %v546
  %548 = vmatprep.subr.mxu0 0.0
  %v549 = vand.u32 %v112, 4294901760
  %v550 = vsub.f32 %v112, %v549
  %551 = vmatpush1.msra.mxu0 %v550
  %552 = vmatprep.subr.mxu0 0.0
  %v553 = vand.u32 %v113, 4294901760
  %v554 = vsub.f32 %v113, %v553
  %555 = vmatpush1.msra.mxu0 %v554
  %556 = vmatprep.subr.mxu0 0.0
  %v557 = vand.u32 %v114, 4294901760
  %v558 = vsub.f32 %v114, %v557
  %559 = vmatpush1.msra.mxu0 %v558
  %560 = vmatprep.subr.mxu0 0.0
  %v561 = vand.u32 %v115, 4294901760
  %v562 = vsub.f32 %v115, %v561
  %563 = vmatpush1.msra.mxu0 %v562
  %564 = vmatprep.subr.mxu0 0.0
  %v565 = vand.u32 %v116, 4294901760
  %v566 = vsub.f32 %v116, %v565
  %567 = vmatpush1.msra.mxu0 %v566
  %568 = vmatprep.subr.mxu0 0.0
  %v569 = vand.u32 %v117, 4294901760
  %v570 = vsub.f32 %v117, %v569
  %571 = vmatpush1.msra.mxu0 %v570
  %572 = vmatprep.subr.mxu0 0.0
  %v573 = vand.u32 %v118, 4294901760
  %v574 = vsub.f32 %v118, %v573
  %575 = vmatpush1.msra.mxu0 %v574
  %576 = vmatprep.subr.mxu0 0.0
  %v577 = vand.u32 %v119, 4294901760
  %v578 = vsub.f32 %v119, %v577
  %579 = vmatpush1.msra.mxu0 %v578
  %580 = vmatprep.subr.mxu0 0.0
  %v581 = vand.u32 %v120, 4294901760
  %v582 = vsub.f32 %v120, %v581
  %583 = vmatpush1.msra.mxu0 %v582
  %584 = vmatprep.subr.mxu0 0.0
  %v585 = vand.u32 %v121, 4294901760
  %v586 = vsub.f32 %v121, %v585
  %587 = vmatpush1.msra.mxu0 %v586
  %588 = vmatprep.subr.mxu0 0.0
  %v589 = vand.u32 %v122, 4294901760
  %v590 = vsub.f32 %v122, %v589
  %591 = vmatpush1.msra.mxu0 %v590
  %592 = vmatprep.subr.mxu0 0.0
  %v593 = vand.u32 %v123, 4294901760
  %v594 = vsub.f32 %v123, %v593
  %595 = vmatpush1.msra.mxu0 %v594
  %v596 = vand.u32 %v91, 4294901760
  %v597 = vsub.f32 %v91, %v596
  %598 = vmatprep.mubr.f32.mxu0 %v597
  %v599 = vand.u32 %v90, 4294901760
  %v600 = vsub.f32 %v90, %v599
  %601 = vmatmul.mubr.f32.gmra.mrb[0].mxu0 %v600
  %v602 = vpop.f32.mrb[0].mxu0
  %v603 = vadd.f32 %v465, %v602
  %v604 = vpop.f32.mrb[0].mxu0
  %605 = vdwg.mxu0
  %606 = vmatprep.subr.mxu0 0.0
  %v607 = vand.u32 %v92, 4294901760
  %608 = vmatpush1.msra.mxu0 %v607
  %609 = vmatprep.subr.mxu0 0.0
  %v610 = vand.u32 %v93, 4294901760
  %611 = vmatpush1.msra.mxu0 %v610
  %612 = vmatprep.subr.mxu0 0.0
  %v613 = vand.u32 %v94, 4294901760
  %614 = vmatpush1.msra.mxu0 %v613
  %615 = vmatprep.subr.mxu0 0.0
  %v616 = vand.u32 %v95, 4294901760
  %617 = vmatpush1.msra.mxu0 %v616
  %618 = vmatprep.subr.mxu0 0.0
  %v619 = vand.u32 %v96, 4294901760
  %620 = vmatpush1.msra.mxu0 %v619
  %621 = vmatprep.subr.mxu0 0.0
  %v622 = vand.u32 %v97, 4294901760
  %623 = vmatpush1.msra.mxu0 %v622
  %624 = vmatprep.subr.mxu0 0.0
  %v625 = vand.u32 %v98, 4294901760
  %626 = vmatpush1.msra.mxu0 %v625
  %627 = vmatprep.subr.mxu0 0.0
  %v628 = vand.u32 %v99, 4294901760
  %629 = vmatpush1.msra.mxu0 %v628
  %630 = vmatprep.subr.mxu0 0.0
  %v631 = vand.u32 %v100, 4294901760
  %632 = vmatpush1.msra.mxu0 %v631
  %633 = vmatprep.subr.mxu0 0.0
  %v634 = vand.u32 %v101, 4294901760
  %635 = vmatpush1.msra.mxu0 %v634
  %636 = vmatprep.subr.mxu0 0.0
  %v637 = vand.u32 %v102, 4294901760
  %638 = vmatpush1.msra.mxu0 %v637
  %639 = vmatprep.subr.mxu0 0.0
  %v640 = vand.u32 %v103, 4294901760
  %641 = vmatpush1.msra.mxu0 %v640
  %642 = vmatprep.subr.mxu0 0.0
  %v643 = vand.u32 %v104, 4294901760
  %644 = vmatpush1.msra.mxu0 %v643
  %645 = vmatprep.subr.mxu0 0.0
  %v646 = vand.u32 %v105, 4294901760
  %647 = vmatpush1.msra.mxu0 %v646
  %648 = vmatprep.subr.mxu0 0.0
  %v649 = vand.u32 %v106, 4294901760
  %650 = vmatpush1.msra.mxu0 %v649
  %651 = vmatprep.subr.mxu0 0.0
  %v652 = vand.u32 %v107, 4294901760
  %653 = vmatpush1.msra.mxu0 %v652
  %654 = vmatprep.subr.mxu0 0.0
  %v655 = vand.u32 %v108, 4294901760
  %656 = vmatpush1.msra.mxu0 %v655
  %657 = vmatprep.subr.mxu0 0.0
  %v658 = vand.u32 %v109, 4294901760
  %659 = vmatpush1.msra.mxu0 %v658
  %660 = vmatprep.subr.mxu0 0.0
  %v661 = vand.u32 %v110, 4294901760
  %662 = vmatpush1.msra.mxu0 %v661
  %663 = vmatprep.subr.mxu0 0.0
  %v664 = vand.u32 %v111, 4294901760
  %665 = vmatpush1.msra.mxu0 %v664
  %666 = vmatprep.subr.mxu0 0.0
  %v667 = vand.u32 %v112, 4294901760
  %668 = vmatpush1.msra.mxu0 %v667
  %669 = vmatprep.subr.mxu0 0.0
  %v670 = vand.u32 %v113, 4294901760
  %671 = vmatpush1.msra.mxu0 %v670
  %672 = vmatprep.subr.mxu0 0.0
  %v673 = vand.u32 %v114, 4294901760
  %674 = vmatpush1.msra.mxu0 %v673
  %675 = vmatprep.subr.mxu0 0.0
  %v676 = vand.u32 %v115, 4294901760
  %677 = vmatpush1.msra.mxu0 %v676
  %678 = vmatprep.subr.mxu0 0.0
  %v679 = vand.u32 %v116, 4294901760
  %680 = vmatpush1.msra.mxu0 %v679
  %681 = vmatprep.subr.mxu0 0.0
  %v682 = vand.u32 %v117, 4294901760
  %683 = vmatpush1.msra.mxu0 %v682
  %684 = vmatprep.subr.mxu0 0.0
  %v685 = vand.u32 %v118, 4294901760
  %686 = vmatpush1.msra.mxu0 %v685
  %687 = vmatprep.subr.mxu0 0.0
  %v688 = vand.u32 %v119, 4294901760
  %689 = vmatpush1.msra.mxu0 %v688
  %690 = vmatprep.subr.mxu0 0.0
  %v691 = vand.u32 %v120, 4294901760
  %692 = vmatpush1.msra.mxu0 %v691
  %693 = vmatprep.subr.mxu0 0.0
  %v694 = vand.u32 %v121, 4294901760
  %695 = vmatpush1.msra.mxu0 %v694
  %696 = vmatprep.subr.mxu0 0.0
  %v697 = vand.u32 %v122, 4294901760
  %698 = vmatpush1.msra.mxu0 %v697
  %699 = vmatprep.subr.mxu0 0.0
  %v700 = vand.u32 %v123, 4294901760
  %701 = vmatpush1.msra.mxu0 %v700
  %v702 = vand.u32 %v91, 4294901760
  %v703 = vsub.f32 %v91, %v702
  %v704 = vand.u32 %v703, 4294901760
  %705 = vmatprep.mubr.f32.mxu0 %v704
  %v706 = vand.u32 %v90, 4294901760
  %v707 = vsub.f32 %v90, %v706
  %v708 = vand.u32 %v707, 4294901760
  %709 = vmatmul.mubr.f32.gmra.mrb[0].mxu0 %v708
  %v710 = vpop.f32.mrb[0].mxu0
  %v711 = vadd.f32 %v603, %v710
  %v712 = vpop.f32.mrb[0].mxu0
  %713 = vdwg.mxu0
  %714 = vmatprep.subr.mxu0 0.0
  %v715 = vand.u32 %v92, 4294901760
  %v716 = vsub.f32 %v92, %v715
  %v717 = vand.u32 %v716, 4294901760
  %718 = vmatpush1.msra.mxu0 %v717
  %719 = vmatprep.subr.mxu0 0.0
  %v720 = vand.u32 %v93, 4294901760
  %v721 = vsub.f32 %v93, %v720
  %v722 = vand.u32 %v721, 4294901760
  %723 = vmatpush1.msra.mxu0 %v722
  %724 = vmatprep.subr.mxu0 0.0
  %v725 = vand.u32 %v94, 4294901760
  %v726 = vsub.f32 %v94, %v725
  %v727 = vand.u32 %v726, 4294901760
  %728 = vmatpush1.msra.mxu0 %v727
  %729 = vmatprep.subr.mxu0 0.0
  %v730 = vand.u32 %v95, 4294901760
  %v731 = vsub.f32 %v95, %v730
  %v732 = vand.u32 %v731, 4294901760
  %733 = vmatpush1.msra.mxu0 %v732
  %734 = vmatprep.subr.mxu0 0.0
  %v735 = vand.u32 %v96, 4294901760
  %v736 = vsub.f32 %v96, %v735
  %v737 = vand.u32 %v736, 4294901760
  %738 = vmatpush1.msra.mxu0 %v737
  %739 = vmatprep.subr.mxu0 0.0
  %v740 = vand.u32 %v97, 4294901760
  %v741 = vsub.f32 %v97, %v740
  %v742 = vand.u32 %v741, 4294901760
  %743 = vmatpush1.msra.mxu0 %v742
  %744 = vmatprep.subr.mxu0 0.0
  %v745 = vand.u32 %v98, 4294901760
  %v746 = vsub.f32 %v98, %v745
  %v747 = vand.u32 %v746, 4294901760
  %748 = vmatpush1.msra.mxu0 %v747
  %749 = vmatprep.subr.mxu0 0.0
  %v750 = vand.u32 %v99, 4294901760
  %v751 = vsub.f32 %v99, %v750
  %v752 = vand.u32 %v751, 4294901760
  %753 = vmatpush1.msra.mxu0 %v752
  %754 = vmatprep.subr.mxu0 0.0
  %v755 = vand.u32 %v100, 4294901760
  %v756 = vsub.f32 %v100, %v755
  %v757 = vand.u32 %v756, 4294901760
  %758 = vmatpush1.msra.mxu0 %v757
  %759 = vmatprep.subr.mxu0 0.0
  %v760 = vand.u32 %v101, 4294901760
  %v761 = vsub.f32 %v101, %v760
  %v762 = vand.u32 %v761, 4294901760
  %763 = vmatpush1.msra.mxu0 %v762
  %764 = vmatprep.subr.mxu0 0.0
  %v765 = vand.u32 %v102, 4294901760
  %v766 = vsub.f32 %v102, %v765
  %v767 = vand.u32 %v766, 4294901760
  %768 = vmatpush1.msra.mxu0 %v767
  %769 = vmatprep.subr.mxu0 0.0
  %v770 = vand.u32 %v103, 4294901760
  %v771 = vsub.f32 %v103, %v770
  %v772 = vand.u32 %v771, 4294901760
  %773 = vmatpush1.msra.mxu0 %v772
  %774 = vmatprep.subr.mxu0 0.0
  %v775 = vand.u32 %v104, 4294901760
  %v776 = vsub.f32 %v104, %v775
  %v777 = vand.u32 %v776, 4294901760
  %778 = vmatpush1.msra.mxu0 %v777
  %779 = vmatprep.subr.mxu0 0.0
  %v780 = vand.u32 %v105, 4294901760
  %v781 = vsub.f32 %v105, %v780
  %v782 = vand.u32 %v781, 4294901760
  %783 = vmatpush1.msra.mxu0 %v782
  %784 = vmatprep.subr.mxu0 0.0
  %v785 = vand.u32 %v106, 4294901760
  %v786 = vsub.f32 %v106, %v785
  %v787 = vand.u32 %v786, 4294901760
  %788 = vmatpush1.msra.mxu0 %v787
  %789 = vmatprep.subr.mxu0 0.0
  %v790 = vand.u32 %v107, 4294901760
  %v791 = vsub.f32 %v107, %v790
  %v792 = vand.u32 %v791, 4294901760
  %793 = vmatpush1.msra.mxu0 %v792
  %794 = vmatprep.subr.mxu0 0.0
  %v795 = vand.u32 %v108, 4294901760
  %v796 = vsub.f32 %v108, %v795
  %v797 = vand.u32 %v796, 4294901760
  %798 = vmatpush1.msra.mxu0 %v797
  %799 = vmatprep.subr.mxu0 0.0
  %v800 = vand.u32 %v109, 4294901760
  %v801 = vsub.f32 %v109, %v800
  %v802 = vand.u32 %v801, 4294901760
  %803 = vmatpush1.msra.mxu0 %v802
  %804 = vmatprep.subr.mxu0 0.0
  %v805 = vand.u32 %v110, 4294901760
  %v806 = vsub.f32 %v110, %v805
  %v807 = vand.u32 %v806, 4294901760
  %808 = vmatpush1.msra.mxu0 %v807
  %809 = vmatprep.subr.mxu0 0.0
  %v810 = vand.u32 %v111, 4294901760
  %v811 = vsub.f32 %v111, %v810
  %v812 = vand.u32 %v811, 4294901760
  %813 = vmatpush1.msra.mxu0 %v812
  %814 = vmatprep.subr.mxu0 0.0
  %v815 = vand.u32 %v112, 4294901760
  %v816 = vsub.f32 %v112, %v815
  %v817 = vand.u32 %v816, 4294901760
  %818 = vmatpush1.msra.mxu0 %v817
  %819 = vmatprep.subr.mxu0 0.0
  %v820 = vand.u32 %v113, 4294901760
  %v821 = vsub.f32 %v113, %v820
  %v822 = vand.u32 %v821, 4294901760
  %823 = vmatpush1.msra.mxu0 %v822
  %824 = vmatprep.subr.mxu0 0.0
  %v825 = vand.u32 %v114, 4294901760
  %v826 = vsub.f32 %v114, %v825
  %v827 = vand.u32 %v826, 4294901760
  %828 = vmatpush1.msra.mxu0 %v827
  %829 = vmatprep.subr.mxu0 0.0
  %v830 = vand.u32 %v115, 4294901760
  %v831 = vsub.f32 %v115, %v830
  %v832 = vand.u32 %v831, 4294901760
  %833 = vmatpush1.msra.mxu0 %v832
  %834 = vmatprep.subr.mxu0 0.0
  %v835 = vand.u32 %v116, 4294901760
  %v836 = vsub.f32 %v116, %v835
  %v837 = vand.u32 %v836, 4294901760
  %838 = vmatpush1.msra.mxu0 %v837
  %839 = vmatprep.subr.mxu0 0.0
  %v840 = vand.u32 %v117, 4294901760
  %v841 = vsub.f32 %v117, %v840
  %v842 = vand.u32 %v841, 4294901760
  %843 = vmatpush1.msra.mxu0 %v842
  %844 = vmatprep.subr.mxu0 0.0
  %v845 = vand.u32 %v118, 4294901760
  %v846 = vsub.f32 %v118, %v845
  %v847 = vand.u32 %v846, 4294901760
  %848 = vmatpush1.msra.mxu0 %v847
  %849 = vmatprep.subr.mxu0 0.0
  %v850 = vand.u32 %v119, 4294901760
  %v851 = vsub.f32 %v119, %v850
  %v852 = vand.u32 %v851, 4294901760
  %853 = vmatpush1.msra.mxu0 %v852
  %854 = vmatprep.subr.mxu0 0.0
  %v855 = vand.u32 %v120, 4294901760
  %v856 = vsub.f32 %v120, %v855
  %v857 = vand.u32 %v856, 4294901760
  %858 = vmatpush1.msra.mxu0 %v857
  %859 = vmatprep.subr.mxu0 0.0
  %v860 = vand.u32 %v121, 4294901760
  %v861 = vsub.f32 %v121, %v860
  %v862 = vand.u32 %v861, 4294901760
  %863 = vmatpush1.msra.mxu0 %v862
  %864 = vmatprep.subr.mxu0 0.0
  %v865 = vand.u32 %v122, 4294901760
  %v866 = vsub.f32 %v122, %v865
  %v867 = vand.u32 %v866, 4294901760
  %868 = vmatpush1.msra.mxu0 %v867
  %869 = vmatprep.subr.mxu0 0.0
  %v870 = vand.u32 %v123, 4294901760
  %v871 = vsub.f32 %v123, %v870
  %v872 = vand.u32 %v871, 4294901760
  %873 = vmatpush1.msra.mxu0 %v872
  %v874 = vand.u32 %v91, 4294901760
  %875 = vmatprep.mubr.f32.mxu0 %v874
  %v876 = vand.u32 %v90, 4294901760
  %877 = vmatmul.mubr.f32.gmra.mrb[0].mxu0 %v876
  %v878 = vpop.f32.mrb[0].mxu0
  %v879 = vadd.f32 %v711, %v878
  %v880 = vpop.f32.mrb[0].mxu0
  %881 = vdwg.mxu0
  %882 = vmatprep.subr.mxu0 0.0
  %v883 = vand.u32 %v92, 4294901760
  %884 = vmatpush1.msra.mxu0 %v883
  %885 = vmatprep.subr.mxu0 0.0
  %v886 = vand.u32 %v93, 4294901760
  %887 = vmatpush1.msra.mxu0 %v886
  %888 = vmatprep.subr.mxu0 0.0
  %v889 = vand.u32 %v94, 4294901760
  %890 = vmatpush1.msra.mxu0 %v889
  %891 = vmatprep.subr.mxu0 0.0
  %v892 = vand.u32 %v95, 4294901760
  %893 = vmatpush1.msra.mxu0 %v892
  %894 = vmatprep.subr.mxu0 0.0
  %v895 = vand.u32 %v96, 4294901760
  %896 = vmatpush1.msra.mxu0 %v895
  %897 = vmatprep.subr.mxu0 0.0
  %v898 = vand.u32 %v97, 4294901760
  %899 = vmatpush1.msra.mxu0 %v898
  %900 = vmatprep.subr.mxu0 0.0
  %v901 = vand.u32 %v98, 4294901760
  %902 = vmatpush1.msra.mxu0 %v901
  %903 = vmatprep.subr.mxu0 0.0
  %v904 = vand.u32 %v99, 4294901760
  %905 = vmatpush1.msra.mxu0 %v904
  %906 = vmatprep.subr.mxu0 0.0
  %v907 = vand.u32 %v100, 4294901760
  %908 = vmatpush1.msra.mxu0 %v907
  %909 = vmatprep.subr.mxu0 0.0
  %v910 = vand.u32 %v101, 4294901760
  %911 = vmatpush1.msra.mxu0 %v910
  %912 = vmatprep.subr.mxu0 0.0
  %v913 = vand.u32 %v102, 4294901760
  %914 = vmatpush1.msra.mxu0 %v913
  %915 = vmatprep.subr.mxu0 0.0
  %v916 = vand.u32 %v103, 4294901760
  %917 = vmatpush1.msra.mxu0 %v916
  %918 = vmatprep.subr.mxu0 0.0
  %v919 = vand.u32 %v104, 4294901760
  %920 = vmatpush1.msra.mxu0 %v919
  %921 = vmatprep.subr.mxu0 0.0
  %v922 = vand.u32 %v105, 4294901760
  %923 = vmatpush1.msra.mxu0 %v922
  %924 = vmatprep.subr.mxu0 0.0
  %v925 = vand.u32 %v106, 4294901760
  %926 = vmatpush1.msra.mxu0 %v925
  %927 = vmatprep.subr.mxu0 0.0
  %v928 = vand.u32 %v107, 4294901760
  %929 = vmatpush1.msra.mxu0 %v928
  %930 = vmatprep.subr.mxu0 0.0
  %v931 = vand.u32 %v108, 4294901760
  %932 = vmatpush1.msra.mxu0 %v931
  %933 = vmatprep.subr.mxu0 0.0
  %v934 = vand.u32 %v109, 4294901760
  %935 = vmatpush1.msra.mxu0 %v934
  %936 = vmatprep.subr.mxu0 0.0
  %v937 = vand.u32 %v110, 4294901760
  %938 = vmatpush1.msra.mxu0 %v937
  %939 = vmatprep.subr.mxu0 0.0
  %v940 = vand.u32 %v111, 4294901760
  %941 = vmatpush1.msra.mxu0 %v940
  %942 = vmatprep.subr.mxu0 0.0
  %v943 = vand.u32 %v112, 4294901760
  %944 = vmatpush1.msra.mxu0 %v943
  %945 = vmatprep.subr.mxu0 0.0
  %v946 = vand.u32 %v113, 4294901760
  %947 = vmatpush1.msra.mxu0 %v946
  %948 = vmatprep.subr.mxu0 0.0
  %v949 = vand.u32 %v114, 4294901760
  %950 = vmatpush1.msra.mxu0 %v949
  %951 = vmatprep.subr.mxu0 0.0
  %v952 = vand.u32 %v115, 4294901760
  %953 = vmatpush1.msra.mxu0 %v952
  %954 = vmatprep.subr.mxu0 0.0
  %v955 = vand.u32 %v116, 4294901760
  %956 = vmatpush1.msra.mxu0 %v955
  %957 = vmatprep.subr.mxu0 0.0
  %v958 = vand.u32 %v117, 4294901760
  %959 = vmatpush1.msra.mxu0 %v958
  %960 = vmatprep.subr.mxu0 0.0
  %v961 = vand.u32 %v118, 4294901760
  %962 = vmatpush1.msra.mxu0 %v961
  %963 = vmatprep.subr.mxu0 0.0
  %v964 = vand.u32 %v119, 4294901760
  %965 = vmatpush1.msra.mxu0 %v964
  %966 = vmatprep.subr.mxu0 0.0
  %v967 = vand.u32 %v120, 4294901760
  %968 = vmatpush1.msra.mxu0 %v967
  %969 = vmatprep.subr.mxu0 0.0
  %v970 = vand.u32 %v121, 4294901760
  %971 = vmatpush1.msra.mxu0 %v970
  %972 = vmatprep.subr.mxu0 0.0
  %v973 = vand.u32 %v122, 4294901760
  %974 = vmatpush1.msra.mxu0 %v973
  %975 = vmatprep.subr.mxu0 0.0
  %v976 = vand.u32 %v123, 4294901760
  %977 = vmatpush1.msra.mxu0 %v976
  %v978 = vand.u32 %v91, 4294901760
  %979 = vmatprep.mubr.f32.mxu0 %v978
  %v980 = vand.u32 %v90, 4294901760
  %981 = vmatmul.mubr.f32.gmra.mrb[0].mxu0 %v980
  %v982 = vpop.f32.mrb[0].mxu0
  %v983 = vadd.f32 %v879, %v982
  %v984 = vpop.f32.mrb[0].mxu0
  %985 = vdwg.mxu0
  %v986 = vld [vmem:[%s4] sm:$0xff]
  %v987 = vld [vmem:[%s4 + $0x8] sm:$0xff]
  %v988 = vld [vmem:[%s4 + $0x10] sm:$0xff]
  %v989 = vld [vmem:[%s4 + $0x18] sm:$0xff]
  %v990 = vld [vmem:[%s4 + $0x20] sm:$0xff]
  %v991 = vld [vmem:[%s4 + $0x28] sm:$0xff]
  %v992 = vld [vmem:[%s4 + $0x30] sm:$0xff]
  %v993 = vld [vmem:[%s4 + $0x38] sm:$0xff]
  %v994 = vld [vmem:[%s4 + $0x40] sm:$0xff]
  %v995 = vld [vmem:[%s4 + $0x48] sm:$0xff]
  %v996 = vld [vmem:[%s4 + $0x50] sm:$0xff]
  %v997 = vld [vmem:[%s4 + $0x58] sm:$0xff]
  %v998 = vld [vmem:[%s4 + $0x60] sm:$0xff]
  %v999 = vld [vmem:[%s4 + $0x68] sm:$0xff]
  %v1000 = vld [vmem:[%s4 + $0x70] sm:$0xff]
  %v1001 = vld [vmem:[%s4 + $0x78] sm:$0xff]
  %v1002 = vld [vmem:[%s4 + $0x80] sm:$0xff]
  %v1003 = vld [vmem:[%s4 + $0x88] sm:$0xff]
  %v1004 = vld [vmem:[%s4 + $0x90] sm:$0xff]
  %v1005 = vld [vmem:[%s4 + $0x98] sm:$0xff]
  %v1006 = vld [vmem:[%s4 + $0xa0] sm:$0xff]
  %v1007 = vld [vmem:[%s4 + $0xa8] sm:$0xff]
  %v1008 = vld [vmem:[%s4 + $0xb0] sm:$0xff]
  %v1009 = vld [vmem:[%s4 + $0xb8] sm:$0xff]
  %v1010 = vld [vmem:[%s4 + $0xc0] sm:$0xff]
  %v1011 = vld [vmem:[%s4 + $0xc8] sm:$0xff]
  %v1012 = vld [vmem:[%s4 + $0xd0] sm:$0xff]
  %v1013 = vld [vmem:[%s4 + $0xd8] sm:$0xff]
  %v1014 = vld [vmem:[%s4 + $0xe0] sm:$0xff]
  %v1015 = vld [vmem:[%s4 + $0xe8] sm:$0xff]
  %v1016 = vld [vmem:[%s4 + $0xf0] sm:$0xff]
  %v1017 = vld [vmem:[%s4 + $0xf8] sm:$0xff]
  %1018 = vmatprep.subr.mxu0 0.0
  %v1019 = vand.u32 %v986, 4294901760
  %1020 = vmatpush1.msra.mxu0 %v1019
  %1021 = vmatprep.subr.mxu0 0.0
  %v1022 = vand.u32 %v987, 4294901760
  %1023 = vmatpush1.msra.mxu0 %v1022
  %1024 = vmatprep.subr.mxu0 0.0
  %v1025 = vand.u32 %v988, 4294901760
  %1026 = vmatpush1.msra.mxu0 %v1025
  %1027 = vmatprep.subr.mxu0 0.0
  %v1028 = vand.u32 %v989, 4294901760
  %1029 = vmatpush1.msra.mxu0 %v1028
  %1030 = vmatprep.subr.mxu0 0.0
  %v1031 = vand.u32 %v990, 4294901760
  %1032 = vmatpush1.msra.mxu0 %v1031
  %1033 = vmatprep.subr.mxu0 0.0
  %v1034 = vand.u32 %v991, 4294901760
  %1035 = vmatpush1.msra.mxu0 %v1034
  %1036 = vmatprep.subr.mxu0 0.0
  %v1037 = vand.u32 %v992, 4294901760
  %1038 = vmatpush1.msra.mxu0 %v1037
  %1039 = vmatprep.subr.mxu0 0.0
  %v1040 = vand.u32 %v993, 4294901760
  %1041 = vmatpush1.msra.mxu0 %v1040
  %1042 = vmatprep.subr.mxu0 0.0
  %v1043 = vand.u32 %v994, 4294901760
  %1044 = vmatpush1.msra.mxu0 %v1043
  %1045 = vmatprep.subr.mxu0 0.0
  %v1046 = vand.u32 %v995, 4294901760
  %1047 = vmatpush1.msra.mxu0 %v1046
  %1048 = vmatprep.subr.mxu0 0.0
  %v1049 = vand.u32 %v996, 4294901760
  %1050 = vmatpush1.msra.mxu0 %v1049
  %1051 = vmatprep.subr.mxu0 0.0
  %v1052 = vand.u32 %v997, 4294901760
  %1053 = vmatpush1.msra.mxu0 %v1052
  %1054 = vmatprep.subr.mxu0 0.0
  %v1055 = vand.u32 %v998, 4294901760
  %1056 = vmatpush1.msra.mxu0 %v1055
  %1057 = vmatprep.subr.mxu0 0.0
  %v1058 = vand.u32 %v999, 4294901760
  %1059 = vmatpush1.msra.mxu0 %v1058
  %1060 = vmatprep.subr.mxu0 0.0
  %v1061 = vand.u32 %v1000, 4294901760
  %1062 = vmatpush1.msra.mxu0 %v1061
  %1063 = vmatprep.subr.mxu0 0.0
  %v1064 = vand.u32 %v1001, 4294901760
  %1065 = vmatpush1.msra.mxu0 %v1064
  %1066 = vmatprep.subr.mxu0 0.0
  %v1067 = vand.u32 %v1002, 4294901760
  %1068 = vmatpush1.msra.mxu0 %v1067
  %1069 = vmatprep.subr.mxu0 0.0
  %v1070 = vand.u32 %v1003, 4294901760
  %1071 = vmatpush1.msra.mxu0 %v1070
  %1072 = vmatprep.subr.mxu0 0.0
  %v1073 = vand.u32 %v1004, 4294901760
  %1074 = vmatpush1.msra.mxu0 %v1073
  %1075 = vmatprep.subr.mxu0 0.0
  %v1076 = vand.u32 %v1005, 4294901760
  %1077 = vmatpush1.msra.mxu0 %v1076
  %1078 = vmatprep.subr.mxu0 0.0
  %v1079 = vand.u32 %v1006, 4294901760
  %1080 = vmatpush1.msra.mxu0 %v1079
  %1081 = vmatprep.subr.mxu0 0.0
  %v1082 = vand.u32 %v1007, 4294901760
  %1083 = vmatpush1.msra.mxu0 %v1082
  %1084 = vmatprep.subr.mxu0 0.0
  %v1085 = vand.u32 %v1008, 4294901760
  %1086 = vmatpush1.msra.mxu0 %v1085
  %1087 = vmatprep.subr.mxu0 0.0
  %v1088 = vand.u32 %v1009, 4294901760
  %1089 = vmatpush1.msra.mxu0 %v1088
  %1090 = vmatprep.subr.mxu0 0.0
  %v1091 = vand.u32 %v1010, 4294901760
  %1092 = vmatpush1.msra.mxu0 %v1091
  %1093 = vmatprep.subr.mxu0 0.0
  %v1094 = vand.u32 %v1011, 4294901760
  %1095 = vmatpush1.msra.mxu0 %v1094
  %1096 = vmatprep.subr.mxu0 0.0
  %v1097 = vand.u32 %v1012, 4294901760
  %1098 = vmatpush1.msra.mxu0 %v1097
  %1099 = vmatprep.subr.mxu0 0.0
  %v1100 = vand.u32 %v1013, 4294901760
  %1101 = vmatpush1.msra.mxu0 %v1100
  %1102 = vmatprep.subr.mxu0 0.0
  %v1103 = vand.u32 %v1014, 4294901760
  %1104 = vmatpush1.msra.mxu0 %v1103
  %1105 = vmatprep.subr.mxu0 0.0
  %v1106 = vand.u32 %v1015, 4294901760
  %1107 = vmatpush1.msra.mxu0 %v1106
  %1108 = vmatprep.subr.mxu0 0.0
  %v1109 = vand.u32 %v1016, 4294901760
  %1110 = vmatpush1.msra.mxu0 %v1109
  %1111 = vmatprep.subr.mxu0 0.0
  %v1112 = vand.u32 %v1017, 4294901760
  %1113 = vmatpush1.msra.mxu0 %v1112
  %v1114 = vand.u32 %v91, 4294901760
  %v1115 = vsub.f32 %v91, %v1114
  %v1116 = vand.u32 %v1115, 4294901760
  %v1117 = vsub.f32 %v1115, %v1116
  %v1118 = vand.u32 %v1117, 4294901760
  %1119 = vmatprep.mubr.f32.mxu0 %v1118
  %v1120 = vand.u32 %v90, 4294901760
  %v1121 = vsub.f32 %v90, %v1120
  %v1122 = vand.u32 %v1121, 4294901760
  %v1123 = vsub.f32 %v1121, %v1122
  %v1124 = vand.u32 %v1123, 4294901760
  %1125 = vmatmul.mubr.f32.gmra.mrb[0].mxu0 %v1124
  %v1126 = vpop.f32.mrb[0].mxu0
  %v1127 = vadd.f32 0.0, %v1126
  %v1128 = vpop.f32.mrb[0].mxu0
  %1129 = vdwg.mxu0
  %1130 = vmatprep.subr.mxu0 0.0
  %v1131 = vand.u32 %v986, 4294901760
  %v1132 = vsub.f32 %v986, %v1131
  %v1133 = vand.u32 %v1132, 4294901760
  %v1134 = vsub.f32 %v1132, %v1133
  %v1135 = vand.u32 %v1134, 4294901760
  %1136 = vmatpush1.msra.mxu0 %v1135
  %1137 = vmatprep.subr.mxu0 0.0
  %v1138 = vand.u32 %v987, 4294901760
  %v1139 = vsub.f32 %v987, %v1138
  %v1140 = vand.u32 %v1139, 4294901760
  %v1141 = vsub.f32 %v1139, %v1140
  %v1142 = vand.u32 %v1141, 4294901760
  %1143 = vmatpush1.msra.mxu0 %v1142
  %1144 = vmatprep.subr.mxu0 0.0
  %v1145 = vand.u32 %v988, 4294901760
  %v1146 = vsub.f32 %v988, %v1145
  %v1147 = vand.u32 %v1146, 4294901760
  %v1148 = vsub.f32 %v1146, %v1147
  %v1149 = vand.u32 %v1148, 4294901760
  %1150 = vmatpush1.msra.mxu0 %v1149
  %1151 = vmatprep.subr.mxu0 0.0
  %v1152 = vand.u32 %v989, 4294901760
  %v1153 = vsub.f32 %v989, %v1152
  %v1154 = vand.u32 %v1153, 4294901760
  %v1155 = vsub.f32 %v1153, %v1154
  %v1156 = vand.u32 %v1155, 4294901760
  %1157 = vmatpush1.msra.mxu0 %v1156
  %1158 = vmatprep.subr.mxu0 0.0
  %v1159 = vand.u32 %v990, 4294901760
  %v1160 = vsub.f32 %v990, %v1159
  %v1161 = vand.u32 %v1160, 4294901760
  %v1162 = vsub.f32 %v1160, %v1161
  %v1163 = vand.u32 %v1162, 4294901760
  %1164 = vmatpush1.msra.mxu0 %v1163
  %1165 = vmatprep.subr.mxu0 0.0
  %v1166 = vand.u32 %v991, 4294901760
  %v1167 = vsub.f32 %v991, %v1166
  %v1168 = vand.u32 %v1167, 4294901760
  %v1169 = vsub.f32 %v1167, %v1168
  %v1170 = vand.u32 %v1169, 4294901760
  %1171 = vmatpush1.msra.mxu0 %v1170
  %1172 = vmatprep.subr.mxu0 0.0
  %v1173 = vand.u32 %v992, 4294901760
  %v1174 = vsub.f32 %v992, %v1173
  %v1175 = vand.u32 %v1174, 4294901760
  %v1176 = vsub.f32 %v1174, %v1175
  %v1177 = vand.u32 %v1176, 4294901760
  %1178 = vmatpush1.msra.mxu0 %v1177
  %1179 = vmatprep.subr.mxu0 0.0
  %v1180 = vand.u32 %v993, 4294901760
  %v1181 = vsub.f32 %v993, %v1180
  %v1182 = vand.u32 %v1181, 4294901760
  %v1183 = vsub.f32 %v1181, %v1182
  %v1184 = vand.u32 %v1183, 4294901760
  %1185 = vmatpush1.msra.mxu0 %v1184
  %1186 = vmatprep.subr.mxu0 0.0
  %v1187 = vand.u32 %v994, 4294901760
  %v1188 = vsub.f32 %v994, %v1187
  %v1189 = vand.u32 %v1188, 4294901760
  %v1190 = vsub.f32 %v1188, %v1189
  %v1191 = vand.u32 %v1190, 4294901760
  %1192 = vmatpush1.msra.mxu0 %v1191
  %1193 = vmatprep.subr.mxu0 0.0
  %v1194 = vand.u32 %v995, 4294901760
  %v1195 = vsub.f32 %v995, %v1194
  %v1196 = vand.u32 %v1195, 4294901760
  %v1197 = vsub.f32 %v1195, %v1196
  %v1198 = vand.u32 %v1197, 4294901760
  %1199 = vmatpush1.msra.mxu0 %v1198
  %1200 = vmatprep.subr.mxu0 0.0
  %v1201 = vand.u32 %v996, 4294901760
  %v1202 = vsub.f32 %v996, %v1201
  %v1203 = vand.u32 %v1202, 4294901760
  %v1204 = vsub.f32 %v1202, %v1203
  %v1205 = vand.u32 %v1204, 4294901760
  %1206 = vmatpush1.msra.mxu0 %v1205
  %1207 = vmatprep.subr.mxu0 0.0
  %v1208 = vand.u32 %v997, 4294901760
  %v1209 = vsub.f32 %v997, %v1208
  %v1210 = vand.u32 %v1209, 4294901760
  %v1211 = vsub.f32 %v1209, %v1210
  %v1212 = vand.u32 %v1211, 4294901760
  %1213 = vmatpush1.msra.mxu0 %v1212
  %1214 = vmatprep.subr.mxu0 0.0
  %v1215 = vand.u32 %v998, 4294901760
  %v1216 = vsub.f32 %v998, %v1215
  %v1217 = vand.u32 %v1216, 4294901760
  %v1218 = vsub.f32 %v1216, %v1217
  %v1219 = vand.u32 %v1218, 4294901760
  %1220 = vmatpush1.msra.mxu0 %v1219
  %1221 = vmatprep.subr.mxu0 0.0
  %v1222 = vand.u32 %v999, 4294901760
  %v1223 = vsub.f32 %v999, %v1222
  %v1224 = vand.u32 %v1223, 4294901760
  %v1225 = vsub.f32 %v1223, %v1224
  %v1226 = vand.u32 %v1225, 4294901760
  %1227 = vmatpush1.msra.mxu0 %v1226
  %1228 = vmatprep.subr.mxu0 0.0
  %v1229 = vand.u32 %v1000, 4294901760
  %v1230 = vsub.f32 %v1000, %v1229
  %v1231 = vand.u32 %v1230, 4294901760
  %v1232 = vsub.f32 %v1230, %v1231
  %v1233 = vand.u32 %v1232, 4294901760
  %1234 = vmatpush1.msra.mxu0 %v1233
  %1235 = vmatprep.subr.mxu0 0.0
  %v1236 = vand.u32 %v1001, 4294901760
  %v1237 = vsub.f32 %v1001, %v1236
  %v1238 = vand.u32 %v1237, 4294901760
  %v1239 = vsub.f32 %v1237, %v1238
  %v1240 = vand.u32 %v1239, 4294901760
  %1241 = vmatpush1.msra.mxu0 %v1240
  %1242 = vmatprep.subr.mxu0 0.0
  %v1243 = vand.u32 %v1002, 4294901760
  %v1244 = vsub.f32 %v1002, %v1243
  %v1245 = vand.u32 %v1244, 4294901760
  %v1246 = vsub.f32 %v1244, %v1245
  %v1247 = vand.u32 %v1246, 4294901760
  %1248 = vmatpush1.msra.mxu0 %v1247
  %1249 = vmatprep.subr.mxu0 0.0
  %v1250 = vand.u32 %v1003, 4294901760
  %v1251 = vsub.f32 %v1003, %v1250
  %v1252 = vand.u32 %v1251, 4294901760
  %v1253 = vsub.f32 %v1251, %v1252
  %v1254 = vand.u32 %v1253, 4294901760
  %1255 = vmatpush1.msra.mxu0 %v1254
  %1256 = vmatprep.subr.mxu0 0.0
  %v1257 = vand.u32 %v1004, 4294901760
  %v1258 = vsub.f32 %v1004, %v1257
  %v1259 = vand.u32 %v1258, 4294901760
  %v1260 = vsub.f32 %v1258, %v1259
  %v1261 = vand.u32 %v1260, 4294901760
  %1262 = vmatpush1.msra.mxu0 %v1261
  %1263 = vmatprep.subr.mxu0 0.0
  %v1264 = vand.u32 %v1005, 4294901760
  %v1265 = vsub.f32 %v1005, %v1264
  %v1266 = vand.u32 %v1265, 4294901760
  %v1267 = vsub.f32 %v1265, %v1266
  %v1268 = vand.u32 %v1267, 4294901760
  %1269 = vmatpush1.msra.mxu0 %v1268
  %1270 = vmatprep.subr.mxu0 0.0
  %v1271 = vand.u32 %v1006, 4294901760
  %v1272 = vsub.f32 %v1006, %v1271
  %v1273 = vand.u32 %v1272, 4294901760
  %v1274 = vsub.f32 %v1272, %v1273
  %v1275 = vand.u32 %v1274, 4294901760
  %1276 = vmatpush1.msra.mxu0 %v1275
  %1277 = vmatprep.subr.mxu0 0.0
  %v1278 = vand.u32 %v1007, 4294901760
  %v1279 = vsub.f32 %v1007, %v1278
  %v1280 = vand.u32 %v1279, 4294901760
  %v1281 = vsub.f32 %v1279, %v1280
  %v1282 = vand.u32 %v1281, 4294901760
  %1283 = vmatpush1.msra.mxu0 %v1282
  %1284 = vmatprep.subr.mxu0 0.0
  %v1285 = vand.u32 %v1008, 4294901760
  %v1286 = vsub.f32 %v1008, %v1285
  %v1287 = vand.u32 %v1286, 4294901760
  %v1288 = vsub.f32 %v1286, %v1287
  %v1289 = vand.u32 %v1288, 4294901760
  %1290 = vmatpush1.msra.mxu0 %v1289
  %1291 = vmatprep.subr.mxu0 0.0
  %v1292 = vand.u32 %v1009, 4294901760
  %v1293 = vsub.f32 %v1009, %v1292
  %v1294 = vand.u32 %v1293, 4294901760
  %v1295 = vsub.f32 %v1293, %v1294
  %v1296 = vand.u32 %v1295, 4294901760
  %1297 = vmatpush1.msra.mxu0 %v1296
  %1298 = vmatprep.subr.mxu0 0.0
  %v1299 = vand.u32 %v1010, 4294901760
  %v1300 = vsub.f32 %v1010, %v1299
  %v1301 = vand.u32 %v1300, 4294901760
  %v1302 = vsub.f32 %v1300, %v1301
  %v1303 = vand.u32 %v1302, 4294901760
  %1304 = vmatpush1.msra.mxu0 %v1303
  %1305 = vmatprep.subr.mxu0 0.0
  %v1306 = vand.u32 %v1011, 4294901760
  %v1307 = vsub.f32 %v1011, %v1306
  %v1308 = vand.u32 %v1307, 4294901760
  %v1309 = vsub.f32 %v1307, %v1308
  %v1310 = vand.u32 %v1309, 4294901760
  %1311 = vmatpush1.msra.mxu0 %v1310
  %1312 = vmatprep.subr.mxu0 0.0
  %v1313 = vand.u32 %v1012, 4294901760
  %v1314 = vsub.f32 %v1012, %v1313
  %v1315 = vand.u32 %v1314, 4294901760
  %v1316 = vsub.f32 %v1314, %v1315
  %v1317 = vand.u32 %v1316, 4294901760
  %1318 = vmatpush1.msra.mxu0 %v1317
  %1319 = vmatprep.subr.mxu0 0.0
  %v1320 = vand.u32 %v1013, 4294901760
  %v1321 = vsub.f32 %v1013, %v1320
  %v1322 = vand.u32 %v1321, 4294901760
  %v1323 = vsub.f32 %v1321, %v1322
  %v1324 = vand.u32 %v1323, 4294901760
  %1325 = vmatpush1.msra.mxu0 %v1324
  %1326 = vmatprep.subr.mxu0 0.0
  %v1327 = vand.u32 %v1014, 4294901760
  %v1328 = vsub.f32 %v1014, %v1327
  %v1329 = vand.u32 %v1328, 4294901760
  %v1330 = vsub.f32 %v1328, %v1329
  %v1331 = vand.u32 %v1330, 4294901760
  %1332 = vmatpush1.msra.mxu0 %v1331
  %1333 = vmatprep.subr.mxu0 0.0
  %v1334 = vand.u32 %v1015, 4294901760
  %v1335 = vsub.f32 %v1015, %v1334
  %v1336 = vand.u32 %v1335, 4294901760
  %v1337 = vsub.f32 %v1335, %v1336
  %v1338 = vand.u32 %v1337, 4294901760
  %1339 = vmatpush1.msra.mxu0 %v1338
  %1340 = vmatprep.subr.mxu0 0.0
  %v1341 = vand.u32 %v1016, 4294901760
  %v1342 = vsub.f32 %v1016, %v1341
  %v1343 = vand.u32 %v1342, 4294901760
  %v1344 = vsub.f32 %v1342, %v1343
  %v1345 = vand.u32 %v1344, 4294901760
  %1346 = vmatpush1.msra.mxu0 %v1345
  %1347 = vmatprep.subr.mxu0 0.0
  %v1348 = vand.u32 %v1017, 4294901760
  %v1349 = vsub.f32 %v1017, %v1348
  %v1350 = vand.u32 %v1349, 4294901760
  %v1351 = vsub.f32 %v1349, %v1350
  %v1352 = vand.u32 %v1351, 4294901760
  %1353 = vmatpush1.msra.mxu0 %v1352
  %v1354 = vand.u32 %v91, 4294901760
  %1355 = vmatprep.mubr.f32.mxu0 %v1354
  %v1356 = vand.u32 %v90, 4294901760
  %1357 = vmatmul.mubr.f32.gmra.mrb[0].mxu0 %v1356
  %v1358 = vpop.f32.mrb[0].mxu0
  %v1359 = vadd.f32 %v1127, %v1358
  %v1360 = vpop.f32.mrb[0].mxu0
  %1361 = vdwg.mxu0
  %1362 = vmatprep.subr.mxu0 0.0
  %v1363 = vand.u32 %v986, 4294901760
  %v1364 = vsub.f32 %v986, %v1363
  %1365 = vmatpush1.msra.mxu0 %v1364
  %1366 = vmatprep.subr.mxu0 0.0
  %v1367 = vand.u32 %v987, 4294901760
  %v1368 = vsub.f32 %v987, %v1367
  %1369 = vmatpush1.msra.mxu0 %v1368
  %1370 = vmatprep.subr.mxu0 0.0
  %v1371 = vand.u32 %v988, 4294901760
  %v1372 = vsub.f32 %v988, %v1371
  %1373 = vmatpush1.msra.mxu0 %v1372
  %1374 = vmatprep.subr.mxu0 0.0
  %v1375 = vand.u32 %v989, 4294901760
  %v1376 = vsub.f32 %v989, %v1375
  %1377 = vmatpush1.msra.mxu0 %v1376
  %1378 = vmatprep.subr.mxu0 0.0
  %v1379 = vand.u32 %v990, 4294901760
  %v1380 = vsub.f32 %v990, %v1379
  %1381 = vmatpush1.msra.mxu0 %v1380
  %1382 = vmatprep.subr.mxu0 0.0
  %v1383 = vand.u32 %v991, 4294901760
  %v1384 = vsub.f32 %v991, %v1383
  %1385 = vmatpush1.msra.mxu0 %v1384
  %1386 = vmatprep.subr.mxu0 0.0
  %v1387 = vand.u32 %v992, 4294901760
  %v1388 = vsub.f32 %v992, %v1387
  %1389 = vmatpush1.msra.mxu0 %v1388
  %1390 = vmatprep.subr.mxu0 0.0
  %v1391 = vand.u32 %v993, 4294901760
  %v1392 = vsub.f32 %v993, %v1391
  %1393 = vmatpush1.msra.mxu0 %v1392
  %1394 = vmatprep.subr.mxu0 0.0
  %v1395 = vand.u32 %v994, 4294901760
  %v1396 = vsub.f32 %v994, %v1395
  %1397 = vmatpush1.msra.mxu0 %v1396
  %1398 = vmatprep.subr.mxu0 0.0
  %v1399 = vand.u32 %v995, 4294901760
  %v1400 = vsub.f32 %v995, %v1399
  %1401 = vmatpush1.msra.mxu0 %v1400
  %1402 = vmatprep.subr.mxu0 0.0
  %v1403 = vand.u32 %v996, 4294901760
  %v1404 = vsub.f32 %v996, %v1403
  %1405 = vmatpush1.msra.mxu0 %v1404
  %1406 = vmatprep.subr.mxu0 0.0
  %v1407 = vand.u32 %v997, 4294901760
  %v1408 = vsub.f32 %v997, %v1407
  %1409 = vmatpush1.msra.mxu0 %v1408
  %1410 = vmatprep.subr.mxu0 0.0
  %v1411 = vand.u32 %v998, 4294901760
  %v1412 = vsub.f32 %v998, %v1411
  %1413 = vmatpush1.msra.mxu0 %v1412
  %1414 = vmatprep.subr.mxu0 0.0
  %v1415 = vand.u32 %v999, 4294901760
  %v1416 = vsub.f32 %v999, %v1415
  %1417 = vmatpush1.msra.mxu0 %v1416
  %1418 = vmatprep.subr.mxu0 0.0
  %v1419 = vand.u32 %v1000, 4294901760
  %v1420 = vsub.f32 %v1000, %v1419
  %1421 = vmatpush1.msra.mxu0 %v1420
  %1422 = vmatprep.subr.mxu0 0.0
  %v1423 = vand.u32 %v1001, 4294901760
  %v1424 = vsub.f32 %v1001, %v1423
  %1425 = vmatpush1.msra.mxu0 %v1424
  %1426 = vmatprep.subr.mxu0 0.0
  %v1427 = vand.u32 %v1002, 4294901760
  %v1428 = vsub.f32 %v1002, %v1427
  %1429 = vmatpush1.msra.mxu0 %v1428
  %1430 = vmatprep.subr.mxu0 0.0
  %v1431 = vand.u32 %v1003, 4294901760
  %v1432 = vsub.f32 %v1003, %v1431
  %1433 = vmatpush1.msra.mxu0 %v1432
  %1434 = vmatprep.subr.mxu0 0.0
  %v1435 = vand.u32 %v1004, 4294901760
  %v1436 = vsub.f32 %v1004, %v1435
  %1437 = vmatpush1.msra.mxu0 %v1436
  %1438 = vmatprep.subr.mxu0 0.0
  %v1439 = vand.u32 %v1005, 4294901760
  %v1440 = vsub.f32 %v1005, %v1439
  %1441 = vmatpush1.msra.mxu0 %v1440
  %1442 = vmatprep.subr.mxu0 0.0
  %v1443 = vand.u32 %v1006, 4294901760
  %v1444 = vsub.f32 %v1006, %v1443
  %1445 = vmatpush1.msra.mxu0 %v1444
  %1446 = vmatprep.subr.mxu0 0.0
  %v1447 = vand.u32 %v1007, 4294901760
  %v1448 = vsub.f32 %v1007, %v1447
  %1449 = vmatpush1.msra.mxu0 %v1448
  %1450 = vmatprep.subr.mxu0 0.0
  %v1451 = vand.u32 %v1008, 4294901760
  %v1452 = vsub.f32 %v1008, %v1451
  %1453 = vmatpush1.msra.mxu0 %v1452
  %1454 = vmatprep.subr.mxu0 0.0
  %v1455 = vand.u32 %v1009, 4294901760
  %v1456 = vsub.f32 %v1009, %v1455
  %1457 = vmatpush1.msra.mxu0 %v1456
  %1458 = vmatprep.subr.mxu0 0.0
  %v1459 = vand.u32 %v1010, 4294901760
  %v1460 = vsub.f32 %v1010, %v1459
  %1461 = vmatpush1.msra.mxu0 %v1460
  %1462 = vmatprep.subr.mxu0 0.0
  %v1463 = vand.u32 %v1011, 4294901760
  %v1464 = vsub.f32 %v1011, %v1463
  %1465 = vmatpush1.msra.mxu0 %v1464
  %1466 = vmatprep.subr.mxu0 0.0
  %v1467 = vand.u32 %v1012, 4294901760
  %v1468 = vsub.f32 %v1012, %v1467
  %1469 = vmatpush1.msra.mxu0 %v1468
  %1470 = vmatprep.subr.mxu0 0.0
  %v1471 = vand.u32 %v1013, 4294901760
  %v1472 = vsub.f32 %v1013, %v1471
  %1473 = vmatpush1.msra.mxu0 %v1472
  %1474 = vmatprep.subr.mxu0 0.0
  %v1475 = vand.u32 %v1014, 4294901760
  %v1476 = vsub.f32 %v1014, %v1475
  %1477 = vmatpush1.msra.mxu0 %v1476
  %1478 = vmatprep.subr.mxu0 0.0
  %v1479 = vand.u32 %v1015, 4294901760
  %v1480 = vsub.f32 %v1015, %v1479
  %1481 = vmatpush1.msra.mxu0 %v1480
  %1482 = vmatprep.subr.mxu0 0.0
  %v1483 = vand.u32 %v1016, 4294901760
  %v1484 = vsub.f32 %v1016, %v1483
  %1485 = vmatpush1.msra.mxu0 %v1484
  %1486 = vmatprep.subr.mxu0 0.0
  %v1487 = vand.u32 %v1017, 4294901760
  %v1488 = vsub.f32 %v1017, %v1487
  %1489 = vmatpush1.msra.mxu0 %v1488
  %v1490 = vand.u32 %v91, 4294901760
  %v1491 = vsub.f32 %v91, %v1490
  %1492 = vmatprep.mubr.f32.mxu0 %v1491
  %v1493 = vand.u32 %v90, 4294901760
  %v1494 = vsub.f32 %v90, %v1493
  %1495 = vmatmul.mubr.f32.gmra.mrb[0].mxu0 %v1494
  %v1496 = vpop.f32.mrb[0].mxu0
  %v1497 = vadd.f32 %v1359, %v1496
  %v1498 = vpop.f32.mrb[0].mxu0
  %1499 = vdwg.mxu0
  %1500 = vmatprep.subr.mxu0 0.0
  %v1501 = vand.u32 %v986, 4294901760
  %1502 = vmatpush1.msra.mxu0 %v1501
  %1503 = vmatprep.subr.mxu0 0.0
  %v1504 = vand.u32 %v987, 4294901760
  %1505 = vmatpush1.msra.mxu0 %v1504
  %1506 = vmatprep.subr.mxu0 0.0
  %v1507 = vand.u32 %v988, 4294901760
  %1508 = vmatpush1.msra.mxu0 %v1507
  %1509 = vmatprep.subr.mxu0 0.0
  %v1510 = vand.u32 %v989, 4294901760
  %1511 = vmatpush1.msra.mxu0 %v1510
  %1512 = vmatprep.subr.mxu0 0.0
  %v1513 = vand.u32 %v990, 4294901760
  %1514 = vmatpush1.msra.mxu0 %v1513
  %1515 = vmatprep.subr.mxu0 0.0
  %v1516 = vand.u32 %v991, 4294901760
  %1517 = vmatpush1.msra.mxu0 %v1516
  %1518 = vmatprep.subr.mxu0 0.0
  %v1519 = vand.u32 %v992, 4294901760
  %1520 = vmatpush1.msra.mxu0 %v1519
  %1521 = vmatprep.subr.mxu0 0.0
  %v1522 = vand.u32 %v993, 4294901760
  %1523 = vmatpush1.msra.mxu0 %v1522
  %1524 = vmatprep.subr.mxu0 0.0
  %v1525 = vand.u32 %v994, 4294901760
  %1526 = vmatpush1.msra.mxu0 %v1525
  %1527 = vmatprep.subr.mxu0 0.0
  %v1528 = vand.u32 %v995, 4294901760
  %1529 = vmatpush1.msra.mxu0 %v1528
  %1530 = vmatprep.subr.mxu0 0.0
  %v1531 = vand.u32 %v996, 4294901760
  %1532 = vmatpush1.msra.mxu0 %v1531
  %1533 = vmatprep.subr.mxu0 0.0
  %v1534 = vand.u32 %v997, 4294901760
  %1535 = vmatpush1.msra.mxu0 %v1534
  %1536 = vmatprep.subr.mxu0 0.0
  %v1537 = vand.u32 %v998, 4294901760
  %1538 = vmatpush1.msra.mxu0 %v1537
  %1539 = vmatprep.subr.mxu0 0.0
  %v1540 = vand.u32 %v999, 4294901760
  %1541 = vmatpush1.msra.mxu0 %v1540
  %1542 = vmatprep.subr.mxu0 0.0
  %v1543 = vand.u32 %v1000, 4294901760
  %1544 = vmatpush1.msra.mxu0 %v1543
  %1545 = vmatprep.subr.mxu0 0.0
  %v1546 = vand.u32 %v1001, 4294901760
  %1547 = vmatpush1.msra.mxu0 %v1546
  %1548 = vmatprep.subr.mxu0 0.0
  %v1549 = vand.u32 %v1002, 4294901760
  %1550 = vmatpush1.msra.mxu0 %v1549
  %1551 = vmatprep.subr.mxu0 0.0
  %v1552 = vand.u32 %v1003, 4294901760
  %1553 = vmatpush1.msra.mxu0 %v1552
  %1554 = vmatprep.subr.mxu0 0.0
  %v1555 = vand.u32 %v1004, 4294901760
  %1556 = vmatpush1.msra.mxu0 %v1555
  %1557 = vmatprep.subr.mxu0 0.0
  %v1558 = vand.u32 %v1005, 4294901760
  %1559 = vmatpush1.msra.mxu0 %v1558
  %1560 = vmatprep.subr.mxu0 0.0
  %v1561 = vand.u32 %v1006, 4294901760
  %1562 = vmatpush1.msra.mxu0 %v1561
  %1563 = vmatprep.subr.mxu0 0.0
  %v1564 = vand.u32 %v1007, 4294901760
  %1565 = vmatpush1.msra.mxu0 %v1564
  %1566 = vmatprep.subr.mxu0 0.0
  %v1567 = vand.u32 %v1008, 4294901760
  %1568 = vmatpush1.msra.mxu0 %v1567
  %1569 = vmatprep.subr.mxu0 0.0
  %v1570 = vand.u32 %v1009, 4294901760
  %1571 = vmatpush1.msra.mxu0 %v1570
  %1572 = vmatprep.subr.mxu0 0.0
  %v1573 = vand.u32 %v1010, 4294901760
  %1574 = vmatpush1.msra.mxu0 %v1573
  %1575 = vmatprep.subr.mxu0 0.0
  %v1576 = vand.u32 %v1011, 4294901760
  %1577 = vmatpush1.msra.mxu0 %v1576
  %1578 = vmatprep.subr.mxu0 0.0
  %v1579 = vand.u32 %v1012, 4294901760
  %1580 = vmatpush1.msra.mxu0 %v1579
  %1581 = vmatprep.subr.mxu0 0.0
  %v1582 = vand.u32 %v1013, 4294901760
  %1583 = vmatpush1.msra.mxu0 %v1582
  %1584 = vmatprep.subr.mxu0 0.0
  %v1585 = vand.u32 %v1014, 4294901760
  %1586 = vmatpush1.msra.mxu0 %v1585
  %1587 = vmatprep.subr.mxu0 0.0
  %v1588 = vand.u32 %v1015, 4294901760
  %1589 = vmatpush1.msra.mxu0 %v1588
  %1590 = vmatprep.subr.mxu0 0.0
  %v1591 = vand.u32 %v1016, 4294901760
  %1592 = vmatpush1.msra.mxu0 %v1591
  %1593 = vmatprep.subr.mxu0 0.0
  %v1594 = vand.u32 %v1017, 4294901760
  %1595 = vmatpush1.msra.mxu0 %v1594
  %v1596 = vand.u32 %v91, 4294901760
  %v1597 = vsub.f32 %v91, %v1596
  %v1598 = vand.u32 %v1597, 4294901760
  %1599 = vmatprep.mubr.f32.mxu0 %v1598
  %v1600 = vand.u32 %v90, 4294901760
  %v1601 = vsub.f32 %v90, %v1600
  %v1602 = vand.u32 %v1601, 4294901760
  %1603 = vmatmul.mubr.f32.gmra.mrb[0].mxu0 %v1602
  %v1604 = vpop.f32.mrb[0].mxu0
  %v1605 = vadd.f32 %v1497, %v1604
  %v1606 = vpop.f32.mrb[0].mxu0
  %1607 = vdwg.mxu0
  %1608 = vmatprep.subr.mxu0 0.0
  %v1609 = vand.u32 %v986, 4294901760
  %v1610 = vsub.f32 %v986, %v1609
  %v1611 = vand.u32 %v1610, 4294901760
  %1612 = vmatpush1.msra.mxu0 %v1611
  %1613 = vmatprep.subr.mxu0 0.0
  %v1614 = vand.u32 %v987, 4294901760
  %v1615 = vsub.f32 %v987, %v1614
  %v1616 = vand.u32 %v1615, 4294901760
  %1617 = vmatpush1.msra.mxu0 %v1616
  %1618 = vmatprep.subr.mxu0 0.0
  %v1619 = vand.u32 %v988, 4294901760
  %v1620 = vsub.f32 %v988, %v1619
  %v1621 = vand.u32 %v1620, 4294901760
  %1622 = vmatpush1.msra.mxu0 %v1621
  %1623 = vmatprep.subr.mxu0 0.0
  %v1624 = vand.u32 %v989, 4294901760
  %v1625 = vsub.f32 %v989, %v1624
  %v1626 = vand.u32 %v1625, 4294901760
  %1627 = vmatpush1.msra.mxu0 %v1626
  %1628 = vmatprep.subr.mxu0 0.0
  %v1629 = vand.u32 %v990, 4294901760
  %v1630 = vsub.f32 %v990, %v1629
  %v1631 = vand.u32 %v1630, 4294901760
  %1632 = vmatpush1.msra.mxu0 %v1631
  %1633 = vmatprep.subr.mxu0 0.0
  %v1634 = vand.u32 %v991, 4294901760
  %v1635 = vsub.f32 %v991, %v1634
  %v1636 = vand.u32 %v1635, 4294901760
  %1637 = vmatpush1.msra.mxu0 %v1636
  %1638 = vmatprep.subr.mxu0 0.0
  %v1639 = vand.u32 %v992, 4294901760
  %v1640 = vsub.f32 %v992, %v1639
  %v1641 = vand.u32 %v1640, 4294901760
  %1642 = vmatpush1.msra.mxu0 %v1641
  %1643 = vmatprep.subr.mxu0 0.0
  %v1644 = vand.u32 %v993, 4294901760
  %v1645 = vsub.f32 %v993, %v1644
  %v1646 = vand.u32 %v1645, 4294901760
  %1647 = vmatpush1.msra.mxu0 %v1646
  %1648 = vmatprep.subr.mxu0 0.0
  %v1649 = vand.u32 %v994, 4294901760
  %v1650 = vsub.f32 %v994, %v1649
  %v1651 = vand.u32 %v1650, 4294901760
  %1652 = vmatpush1.msra.mxu0 %v1651
  %1653 = vmatprep.subr.mxu0 0.0
  %v1654 = vand.u32 %v995, 4294901760
  %v1655 = vsub.f32 %v995, %v1654
  %v1656 = vand.u32 %v1655, 4294901760
  %1657 = vmatpush1.msra.mxu0 %v1656
  %1658 = vmatprep.subr.mxu0 0.0
  %v1659 = vand.u32 %v996, 4294901760
  %v1660 = vsub.f32 %v996, %v1659
  %v1661 = vand.u32 %v1660, 4294901760
  %1662 = vmatpush1.msra.mxu0 %v1661
  %1663 = vmatprep.subr.mxu0 0.0
  %v1664 = vand.u32 %v997, 4294901760
  %v1665 = vsub.f32 %v997, %v1664
  %v1666 = vand.u32 %v1665, 4294901760
  %1667 = vmatpush1.msra.mxu0 %v1666
  %1668 = vmatprep.subr.mxu0 0.0
  %v1669 = vand.u32 %v998, 4294901760
  %v1670 = vsub.f32 %v998, %v1669
  %v1671 = vand.u32 %v1670, 4294901760
  %1672 = vmatpush1.msra.mxu0 %v1671
  %1673 = vmatprep.subr.mxu0 0.0
  %v1674 = vand.u32 %v999, 4294901760
  %v1675 = vsub.f32 %v999, %v1674
  %v1676 = vand.u32 %v1675, 4294901760
  %1677 = vmatpush1.msra.mxu0 %v1676
  %1678 = vmatprep.subr.mxu0 0.0
  %v1679 = vand.u32 %v1000, 4294901760
  %v1680 = vsub.f32 %v1000, %v1679
  %v1681 = vand.u32 %v1680, 4294901760
  %1682 = vmatpush1.msra.mxu0 %v1681
  %1683 = vmatprep.subr.mxu0 0.0
  %v1684 = vand.u32 %v1001, 4294901760
  %v1685 = vsub.f32 %v1001, %v1684
  %v1686 = vand.u32 %v1685, 4294901760
  %1687 = vmatpush1.msra.mxu0 %v1686
  %1688 = vmatprep.subr.mxu0 0.0
  %v1689 = vand.u32 %v1002, 4294901760
  %v1690 = vsub.f32 %v1002, %v1689
  %v1691 = vand.u32 %v1690, 4294901760
  %1692 = vmatpush1.msra.mxu0 %v1691
  %1693 = vmatprep.subr.mxu0 0.0
  %v1694 = vand.u32 %v1003, 4294901760
  %v1695 = vsub.f32 %v1003, %v1694
  %v1696 = vand.u32 %v1695, 4294901760
  %1697 = vmatpush1.msra.mxu0 %v1696
  %1698 = vmatprep.subr.mxu0 0.0
  %v1699 = vand.u32 %v1004, 4294901760
  %v1700 = vsub.f32 %v1004, %v1699
  %v1701 = vand.u32 %v1700, 4294901760
  %1702 = vmatpush1.msra.mxu0 %v1701
  %1703 = vmatprep.subr.mxu0 0.0
  %v1704 = vand.u32 %v1005, 4294901760
  %v1705 = vsub.f32 %v1005, %v1704
  %v1706 = vand.u32 %v1705, 4294901760
  %1707 = vmatpush1.msra.mxu0 %v1706
  %1708 = vmatprep.subr.mxu0 0.0
  %v1709 = vand.u32 %v1006, 4294901760
  %v1710 = vsub.f32 %v1006, %v1709
  %v1711 = vand.u32 %v1710, 4294901760
  %1712 = vmatpush1.msra.mxu0 %v1711
  %1713 = vmatprep.subr.mxu0 0.0
  %v1714 = vand.u32 %v1007, 4294901760
  %v1715 = vsub.f32 %v1007, %v1714
  %v1716 = vand.u32 %v1715, 4294901760
  %1717 = vmatpush1.msra.mxu0 %v1716
  %1718 = vmatprep.subr.mxu0 0.0
  %v1719 = vand.u32 %v1008, 4294901760
  %v1720 = vsub.f32 %v1008, %v1719
  %v1721 = vand.u32 %v1720, 4294901760
  %1722 = vmatpush1.msra.mxu0 %v1721
  %1723 = vmatprep.subr.mxu0 0.0
  %v1724 = vand.u32 %v1009, 4294901760
  %v1725 = vsub.f32 %v1009, %v1724
  %v1726 = vand.u32 %v1725, 4294901760
  %1727 = vmatpush1.msra.mxu0 %v1726
  %1728 = vmatprep.subr.mxu0 0.0
  %v1729 = vand.u32 %v1010, 4294901760
  %v1730 = vsub.f32 %v1010, %v1729
  %v1731 = vand.u32 %v1730, 4294901760
  %1732 = vmatpush1.msra.mxu0 %v1731
  %1733 = vmatprep.subr.mxu0 0.0
  %v1734 = vand.u32 %v1011, 4294901760
  %v1735 = vsub.f32 %v1011, %v1734
  %v1736 = vand.u32 %v1735, 4294901760
  %1737 = vmatpush1.msra.mxu0 %v1736
  %1738 = vmatprep.subr.mxu0 0.0
  %v1739 = vand.u32 %v1012, 4294901760
  %v1740 = vsub.f32 %v1012, %v1739
  %v1741 = vand.u32 %v1740, 4294901760
  %1742 = vmatpush1.msra.mxu0 %v1741
  %1743 = vmatprep.subr.mxu0 0.0
  %v1744 = vand.u32 %v1013, 4294901760
  %v1745 = vsub.f32 %v1013, %v1744
  %v1746 = vand.u32 %v1745, 4294901760
  %1747 = vmatpush1.msra.mxu0 %v1746
  %1748 = vmatprep.subr.mxu0 0.0
  %v1749 = vand.u32 %v1014, 4294901760
  %v1750 = vsub.f32 %v1014, %v1749
  %v1751 = vand.u32 %v1750, 4294901760
  %1752 = vmatpush1.msra.mxu0 %v1751
  %1753 = vmatprep.subr.mxu0 0.0
  %v1754 = vand.u32 %v1015, 4294901760
  %v1755 = vsub.f32 %v1015, %v1754
  %v1756 = vand.u32 %v1755, 4294901760
  %1757 = vmatpush1.msra.mxu0 %v1756
  %1758 = vmatprep.subr.mxu0 0.0
  %v1759 = vand.u32 %v1016, 4294901760
  %v1760 = vsub.f32 %v1016, %v1759
  %v1761 = vand.u32 %v1760, 4294901760
  %1762 = vmatpush1.msra.mxu0 %v1761
  %1763 = vmatprep.subr.mxu0 0.0
  %v1764 = vand.u32 %v1017, 4294901760
  %v1765 = vsub.f32 %v1017, %v1764
  %v1766 = vand.u32 %v1765, 4294901760
  %1767 = vmatpush1.msra.mxu0 %v1766
  %v1768 = vand.u32 %v91, 4294901760
  %1769 = vmatprep.mubr.f32.mxu0 %v1768
  %v1770 = vand.u32 %v90, 4294901760
  %1771 = vmatmul.mubr.f32.gmra.mrb[0].mxu0 %v1770
  %v1772 = vpop.f32.mrb[0].mxu0
  %v1773 = vadd.f32 %v1605, %v1772
  %v1774 = vpop.f32.mrb[0].mxu0
  %1775 = vdwg.mxu0
  %1776 = vmatprep.subr.mxu0 0.0
  %v1777 = vand.u32 %v986, 4294901760
  %1778 = vmatpush1.msra.mxu0 %v1777
  %1779 = vmatprep.subr.mxu0 0.0
  %v1780 = vand.u32 %v987, 4294901760
  %1781 = vmatpush1.msra.mxu0 %v1780
  %1782 = vmatprep.subr.mxu0 0.0
  %v1783 = vand.u32 %v988, 4294901760
  %1784 = vmatpush1.msra.mxu0 %v1783
  %1785 = vmatprep.subr.mxu0 0.0
  %v1786 = vand.u32 %v989, 4294901760
  %1787 = vmatpush1.msra.mxu0 %v1786
  %1788 = vmatprep.subr.mxu0 0.0
  %v1789 = vand.u32 %v990, 4294901760
  %1790 = vmatpush1.msra.mxu0 %v1789
  %1791 = vmatprep.subr.mxu0 0.0
  %v1792 = vand.u32 %v991, 4294901760
  %1793 = vmatpush1.msra.mxu0 %v1792
  %1794 = vmatprep.subr.mxu0 0.0
  %v1795 = vand.u32 %v992, 4294901760
  %1796 = vmatpush1.msra.mxu0 %v1795
  %1797 = vmatprep.subr.mxu0 0.0
  %v1798 = vand.u32 %v993, 4294901760
  %1799 = vmatpush1.msra.mxu0 %v1798
  %1800 = vmatprep.subr.mxu0 0.0
  %v1801 = vand.u32 %v994, 4294901760
  %1802 = vmatpush1.msra.mxu0 %v1801
  %1803 = vmatprep.subr.mxu0 0.0
  %v1804 = vand.u32 %v995, 4294901760
  %1805 = vmatpush1.msra.mxu0 %v1804
  %1806 = vmatprep.subr.mxu0 0.0
  %v1807 = vand.u32 %v996, 4294901760
  %1808 = vmatpush1.msra.mxu0 %v1807
  %1809 = vmatprep.subr.mxu0 0.0
  %v1810 = vand.u32 %v997, 4294901760
  %1811 = vmatpush1.msra.mxu0 %v1810
  %1812 = vmatprep.subr.mxu0 0.0
  %v1813 = vand.u32 %v998, 4294901760
  %1814 = vmatpush1.msra.mxu0 %v1813
  %1815 = vmatprep.subr.mxu0 0.0
  %v1816 = vand.u32 %v999, 4294901760
  %1817 = vmatpush1.msra.mxu0 %v1816
  %1818 = vmatprep.subr.mxu0 0.0
  %v1819 = vand.u32 %v1000, 4294901760
  %1820 = vmatpush1.msra.mxu0 %v1819
  %1821 = vmatprep.subr.mxu0 0.0
  %v1822 = vand.u32 %v1001, 4294901760
  %1823 = vmatpush1.msra.mxu0 %v1822
  %1824 = vmatprep.subr.mxu0 0.0
  %v1825 = vand.u32 %v1002, 4294901760
  %1826 = vmatpush1.msra.mxu0 %v1825
  %1827 = vmatprep.subr.mxu0 0.0
  %v1828 = vand.u32 %v1003, 4294901760
  %1829 = vmatpush1.msra.mxu0 %v1828
  %1830 = vmatprep.subr.mxu0 0.0
  %v1831 = vand.u32 %v1004, 4294901760
  %1832 = vmatpush1.msra.mxu0 %v1831
  %1833 = vmatprep.subr.mxu0 0.0
  %v1834 = vand.u32 %v1005, 4294901760
  %1835 = vmatpush1.msra.mxu0 %v1834
  %1836 = vmatprep.subr.mxu0 0.0
  %v1837 = vand.u32 %v1006, 4294901760
  %1838 = vmatpush1.msra.mxu0 %v1837
  %1839 = vmatprep.subr.mxu0 0.0
  %v1840 = vand.u32 %v1007, 4294901760
  %1841 = vmatpush1.msra.mxu0 %v1840
  %1842 = vmatprep.subr.mxu0 0.0
  %v1843 = vand.u32 %v1008, 4294901760
  %1844 = vmatpush1.msra.mxu0 %v1843
  %1845 = vmatprep.subr.mxu0 0.0
  %v1846 = vand.u32 %v1009, 4294901760
  %1847 = vmatpush1.msra.mxu0 %v1846
  %1848 = vmatprep.subr.mxu0 0.0
  %v1849 = vand.u32 %v1010, 4294901760
  %1850 = vmatpush1.msra.mxu0 %v1849
  %1851 = vmatprep.subr.mxu0 0.0
  %v1852 = vand.u32 %v1011, 4294901760
  %1853 = vmatpush1.msra.mxu0 %v1852
  %1854 = vmatprep.subr.mxu0 0.0
  %v1855 = vand.u32 %v1012, 4294901760
  %1856 = vmatpush1.msra.mxu0 %v1855
  %1857 = vmatprep.subr.mxu0 0.0
  %v1858 = vand.u32 %v1013, 4294901760
  %1859 = vmatpush1.msra.mxu0 %v1858
  %1860 = vmatprep.subr.mxu0 0.0
  %v1861 = vand.u32 %v1014, 4294901760
  %1862 = vmatpush1.msra.mxu0 %v1861
  %1863 = vmatprep.subr.mxu0 0.0
  %v1864 = vand.u32 %v1015, 4294901760
  %1865 = vmatpush1.msra.mxu0 %v1864
  %1866 = vmatprep.subr.mxu0 0.0
  %v1867 = vand.u32 %v1016, 4294901760
  %1868 = vmatpush1.msra.mxu0 %v1867
  %1869 = vmatprep.subr.mxu0 0.0
  %v1870 = vand.u32 %v1017, 4294901760
  %1871 = vmatpush1.msra.mxu0 %v1870
  %v1872 = vand.u32 %v91, 4294901760
  %1873 = vmatprep.mubr.f32.mxu0 %v1872
  %v1874 = vand.u32 %v90, 4294901760
  %1875 = vmatmul.mubr.f32.gmra.mrb[0].mxu0 %v1874
  %v1876 = vpop.f32.mrb[0].mxu0
  %v1877 = vadd.f32 %v1773, %v1876
  %v1878 = vpop.f32.mrb[0].mxu0
  %1879 = vdwg.mxu0
  %v1880 = vmax.f32 %v983, %v1877
  %1881 = vst [vmem:[%s5] sm:$0x3f] %v1880
  // Predicated region
  $region22: #{down_conv_forward.5} parent=0 // pred_check
    _
  $region23: #{down_conv_forward.5} parent=0 // pred_check_branch
    %1883 = sbr.rel (0) target = $region25
  $region24: #{down_conv_forward.5} parent=0 // pred_region
    _
  $region25: #{down_conv_forward.5} parent=0 // pred_fallthru
    _
  // Predicated region
  $region26: #{down_conv_forward.5} parent=0 // pred_check
    _
  $region27: #{down_conv_forward.5} parent=0 // pred_check_branch
    %1885 = sbr.rel (0) target = $region29
  $region28: #{down_conv_forward.5} parent=0 // pred_region
    _
  $region29: #{down_conv_forward.5} parent=0 // pred_fallthru
    _

</llo_original>
